<compile_context>
chip_gen: v6e
topology: v6e:2x2x1
jax: 0.10.0
libtpu: 0.0.40
codegen_flags: <defaults>
</compile_context>

<pallas_src>
import functools
import math

import jax
import jax.numpy as jnp
from jax.experimental import pallas as pl
from jax.experimental.pallas import tpu as pltpu

NEG_INF = -1e9


# ----------------------------------------------------------------------------
# Pallas kernel: one transformer layer per grid step (weights streamed per layer)
# ----------------------------------------------------------------------------

def _layernorm(x, g, b, eps=1e-5):
    mu = jnp.mean(x, axis=-1, keepdims=True)
    var = jnp.mean((x - mu) ** 2, axis=-1, keepdims=True)
    return (x - mu) * jax.lax.rsqrt(var + eps) * g + b


def _layer_kernel(
    # graph / activations (resident across all grid steps)
    x_ref, adj_ref, qmask_ref,
    # per-layer streamed tensors
    tcond_ref,
    # input projection (resident)
    in_w_ref, in_b_ref,
    # per-layer streamed weights
    qemb_ref, ln1_g_ref, ln1_b_ref,
    wq_w_ref, wq_b_ref, wk_w_ref, wk_b_ref, wv_w_ref, wv_b_ref,
    wo_w_ref, wo_b_ref,
    ln2_g_ref, ln2_b_ref,
    f1_w_ref, f1_b_ref, f2_w_ref, f2_b_ref,
    # merged output heads (resident)
    head_w_ref, head_b_ref,
    # output
    out_ref,
    # scratch: residual stream, persists across grid steps
    h_ref,
    *, num_heads,
):
    f32 = jnp.float32
    bf16 = jnp.bfloat16
    l = pl.program_id(0)
    n_layers = pl.num_programs(0)
    n, d = h_ref.shape
    dh = d // num_heads
    scale = 1.0 / math.sqrt(dh)

    # ---- input projection (first grid step only) ----
    @pl.when(l == 0)
    def _():
        x16 = x_ref[...].astype(bf16)
        h_ref[...] = (jnp.dot(x16, in_w_ref[...], preferred_element_type=f32)
                      + in_b_ref[...])

    # additive attention mask from int8 adjacency (cheap VPU select, no f32 HBM mask)
    adj_f = adj_ref[...].astype(f32)
    mask_bias = jnp.where(adj_f > 0.0, 0.0, NEG_INF).astype(f32)

    # ---- timestep + query-node conditioning (t_cond precomputed in wrapper) ----
    h = h_ref[...] + tcond_ref[...] + qmask_ref[...] * qemb_ref[...]

    # ---- masked multi-head self-attention (pre-LN, residual) ----
    hn = _layernorm(h, ln1_g_ref[...], ln1_b_ref[...]).astype(bf16)
    # 1/sqrt(dh) folded into Q
    q = (jnp.dot(hn, wq_w_ref[...], preferred_element_type=f32) + wq_b_ref[...]) * scale
    k = jnp.dot(hn, wk_w_ref[...], preferred_element_type=f32) + wk_b_ref[...]
    v = jnp.dot(hn, wv_w_ref[...], preferred_element_type=f32) + wv_b_ref[...]

    kT = k.T                                    # one XLU transpose per layer
    wo_w = wo_w_ref[...]                        # (D, D) bf16
    attn_proj = jnp.zeros((n, d), f32)
    # TODO(synk): for large N, tile this flash-style over KV blocks (online softmax)
    #             instead of materializing full (N, N) scores per head.
    for hd in range(num_heads):                 # static heads; concat folded into W_O
        lo = hd * dh
        qh = q[:, lo:lo + dh].astype(bf16)
        khT = kT[lo:lo + dh, :].astype(bf16)
        s = jnp.dot(qh, khT, preferred_element_type=f32) + mask_bias      # (N, N)
        s = s - jnp.max(s, axis=-1, keepdims=True)
        p = jnp.exp(s)
        p = p * pl.reciprocal(jnp.sum(p, axis=-1, keepdims=True), approx=True)
        vh = v[:, lo:lo + dh].astype(bf16)
        oh = jnp.dot(p.astype(bf16), vh, preferred_element_type=f32)      # (N, dh)
        # accumulate this head's contribution through its W_O row block
        attn_proj = attn_proj + jnp.dot(oh.astype(bf16), wo_w[lo:lo + dh, :],
                                        preferred_element_type=f32)
    h = h + attn_proj + wo_b_ref[...]

    # ---- feed-forward (pre-LN, residual) ----
    hn2 = _layernorm(h, ln2_g_ref[...], ln2_b_ref[...]).astype(bf16)
    ff = jnp.dot(hn2, f1_w_ref[...], preferred_element_type=f32) + f1_b_ref[...]
    # TODO(synk): PyTorch nn.GELU defaults to exact erf; tanh approximation used here.
    ff = jax.nn.gelu(ff, approximate=True)
    h = h + jnp.dot(ff.astype(bf16), f2_w_ref[...], preferred_element_type=f32) + f2_b_ref[...]

    h_ref[...] = h

    # ---- merged node_head + community_head, lane-dense padded store (last step) ----
    @pl.when(l == n_layers - 1)
    def _():
        out_ref[...] = (jnp.dot(h.astype(bf16), head_w_ref[...],
                                preferred_element_type=f32) + head_b_ref[...])


# ----------------------------------------------------------------------------
# Parameter construction & wrapper
# ----------------------------------------------------------------------------

def sinusoidal_embedding(t, dim):
    half = dim // 2
    freqs = jnp.exp(-math.log(10000.0) * jnp.arange(half, dtype=jnp.float32) / half)
    args = jnp.asarray(t, jnp.float32) * freqs
    return jnp.concatenate([jnp.sin(args), jnp.cos(args)], axis=-1).reshape(1, dim)


def _uniform_linear(key, din, dout, w_dtype=jnp.float32):
    kw, kb = jax.random.split(key)
    bound = 1.0 / math.sqrt(din)
    w = jax.random.uniform(kw, (din, dout), jnp.float32, -bound, bound).astype(w_dtype)
    b = jax.random.uniform(kb, (1, dout), jnp.float32, -bound, bound)   # pre-broadcast
    return w, b


def init_params(key, in_dim, hidden_dim, num_layers):
    d = hidden_dim
    bf16 = jnp.bfloat16
    k_in, k_node, k_comm, k_layers = jax.random.split(key, 4)
    in_w, in_b = _uniform_linear(k_in, in_dim, d, bf16)
    node_w, node_b = _uniform_linear(k_node, d, in_dim, bf16)
    comm_w, comm_b = _uniform_linear(k_comm, d, 2, bf16)

    names = ["wt", "wq", "wk", "wv", "wo", "f1", "f2"]
    dtypes = {"wt": jnp.float32, "wq": bf16, "wk": bf16, "wv": bf16,
              "wo": bf16, "f1": bf16, "f2": bf16}
    dims = {"wt": (d, d), "wq": (d, d), "wk": (d, d), "wv": (d, d),
            "wo": (d, d), "f1": (d, 4 * d), "f2": (4 * d, d)}
    stacks = {f"{n}_{s}": [] for n in names for s in ("w", "b")}
    stacks["qemb"] = []
    for lk in jax.random.split(k_layers, num_layers):
        ks = jax.random.split(lk, 8)
        for i, nm in enumerate(names):
            w, b = _uniform_linear(ks[i], *dims[nm], dtypes[nm])
            stacks[f"{nm}_w"].append(w)
            stacks[f"{nm}_b"].append(b)
        stacks["qemb"].append(0.02 * jax.random.normal(ks[7], (1, d), jnp.float32))

    params = {
        "in_w": in_w, "in_b": in_b,
        "node_w": node_w, "node_b": node_b,
        "comm_w": comm_w, "comm_b": comm_b,
        "ln1_g": jnp.ones((num_layers, 1, d), jnp.float32),
        "ln1_b": jnp.zeros((num_layers, 1, d), jnp.float32),
        "ln2_g": jnp.ones((num_layers, 1, d), jnp.float32),
        "ln2_b": jnp.zeros((num_layers, 1, d), jnp.float32),
    }
    for k_, v_ in stacks.items():
        params[k_] = jnp.stack(v_, axis=0)
    return params


def denoising_network_forward(params, node_feats, adj, query_mask, t, *, num_heads):
    f32 = jnp.float32
    bf16 = jnp.bfloat16
    n, in_dim = node_feats.shape
    num_layers, _, d = params["wq_w"].shape            # static (concrete) shapes
    out_dim = in_dim + 2
    out_pad = ((out_dim + 127) // 128) * 128           # lane-dense output width

    # Hoisted timestep conditioning: (L, 1, D), computed once outside the kernel.
    t_emb = sinusoidal_embedding(t, d)
    t_cond = (jnp.einsum("od,lde->loe", t_emb, params["wt_w"].astype(f32))
              + params["wt_b"]).astype(f32)

    # Merged node_head + community_head, zero-padded to a lane-dense width.
    head_w = jnp.zeros((d, out_pad), bf16)
    head_w = head_w.at[:, :in_dim].set(params["node_w"])
    head_w = head_w.at[:, in_dim:out_dim].set(params["comm_w"])
    head_b = jnp.zeros((1, out_pad), f32)
    head_b = head_b.at[:, :in_dim].set(params["node_b"])
    head_b = head_b.at[:, in_dim:out_dim].set(params["comm_b"])

    adj_i8 = (adj > 0).astype(jnp.int8)                # 4x less HBM/VMEM than f32 mask
    qmask2d = query_mask.reshape(n, 1).astype(f32)

    inputs = (
        node_feats.astype(f32), adj_i8, qmask2d, t_cond,
        params["in_w"], params["in_b"],
        params["qemb"], params["ln1_g"], params["ln1_b"],
        params["wq_w"], params["wq_b"], params["wk_w"], params["wk_b"],
        params["wv_w"], params["wv_b"], params["wo_w"], params["wo_b"],
        params["ln2_g"], params["ln2_b"],
        params["f1_w"], params["f1_b"], params["f2_w"], params["f2_b"],
        head_w, head_b,
    )
    resident_idx = {0, 1, 2, 4, 5, 23, 24}             # same block every step

    def res_spec(a):                                   # resident: full array, block (0,...)
        nd = a.ndim
        return pl.BlockSpec(tuple(a.shape), lambda l: (0,) * nd)

    def stream_spec(a):                                # per-layer slice, leading dim squeezed
        nd = a.ndim
        return pl.BlockSpec((None,) + tuple(a.shape[1:]),
                            lambda l: (l,) + (0,) * (nd - 1))

    in_specs = [res_spec(a) if i in resident_idx else stream_spec(a)
                for i, a in enumerate(inputs)]
    out_specs = pl.BlockSpec((n, out_pad), lambda l: (0, 0))

    # Advisory cost estimate for XLA scheduling around the custom call.
    flops = (2 * n * in_dim * d + 2 * n * d * out_pad
             + num_layers * (24 * n * d * d + 4 * n * n * d))
    transc = num_layers * (num_heads * n * n + 4 * n * d + 2 * n)
    bytes_acc = sum(int(a.size) * a.dtype.itemsize for a in inputs) + n * out_pad * 4

    # Scoped-VMEM budget: resident inputs + 2x (double-buffered) per-layer slices + acts.
    resident_bytes = sum(int(inputs[i].size) * inputs[i].dtype.itemsize
                         for i in resident_idx)
    layer_bytes = sum(int(inputs[i].size) * inputs[i].dtype.itemsize
                      for i in range(len(inputs)) if i not in resident_idx) // num_layers
    act_bytes = n * (16 * d + 8 * n) * 4
    vmem_limit = 2 * (resident_bytes + 2 * layer_bytes
                      + n * out_pad * 4 + n * d * 4 + act_bytes)
    vmem_limit = int(min(max(vmem_limit, 32 * 1024 * 1024), 100 * 1024 * 1024))

    kernel = functools.partial(_layer_kernel, num_heads=num_heads)
    out = pl.pallas_call(
        kernel,
        out_shape=jax.ShapeDtypeStruct((n, out_pad), f32),
        grid_spec=pltpu.PrefetchScalarGridSpec(
            num_scalar_prefetch=0,
            grid=(num_layers,),
            in_specs=in_specs,
            out_specs=out_specs,
            scratch_shapes=[pltpu.VMEM((n, d), f32)],   # residual stream, persists
        ),
        compiler_params=pltpu.CompilerParams(
            dimension_semantics=("arbitrary",),         # layers are sequential (carry in h)
            vmem_limit_bytes=vmem_limit,
        ),
        cost_estimate=pl.CostEstimate(flops=flops, transcendentals=transc,
                                      bytes_accessed=bytes_acc),
    )(*inputs)

    node_pred = out[:, :in_dim]
    community_pred = out[:, in_dim:out_dim]
    return node_pred, community_pred


# ----------------------------------------------------------------------------
# Example run
# ----------------------------------------------------------------------------

if __name__ == "__main__":
    N = 16          # number of graph nodes
    IN_DIM = 8      # g.v feature dim
    HIDDEN = 32
    NUM_LAYERS = 2
    NUM_HEADS = 4

    key = jax.random.PRNGKey(0)
    k_param, k_feat, k_edge = jax.random.split(key, 3)

    params = init_params(k_param, IN_DIM, HIDDEN, NUM_LAYERS)

    # Graph: node features (N, IN_DIM), dense symmetric adjacency with self-loops.
    node_feats = jax.random.normal(k_feat, (N, IN_DIM), jnp.float32)
    adj = (jax.random.uniform(k_edge, (N, N)) < 0.25).astype(jnp.float32)
    adj = jnp.maximum(jnp.maximum(adj, adj.T), jnp.eye(N, dtype=jnp.float32))

    # Query nodes as an indicator mask; timestep t.
    query_nodes = jnp.array([0, 3], dtype=jnp.int32)
    query_mask = jnp.zeros((N,), jnp.float32).at[query_nodes].set(1.0)
    t = jnp.array(7, dtype=jnp.int32)

    # num_heads is a static Python int bound via partial (NOT a traced arg).
    fwd = jax.jit(functools.partial(denoising_network_forward, num_heads=NUM_HEADS))
    node_pred, community_pred = fwd(params, node_feats, adj, query_mask, t)
    jax.block_until_ready((node_pred, community_pred))

    assert node_pred.shape == (N, IN_DIM)
    assert community_pred.shape == (N, 2)
    assert bool(jnp.all(jnp.isfinite(node_pred)))
    assert bool(jnp.all(jnp.isfinite(community_pred)))
    print("KERNEL_OK")
</pallas_src>

<mosaic_0001>
module attributes {stable_mosaic.version = 11 : i64} {
  func.func @_layer_kernel(%arg0: i32, %arg1: memref<16x8xf32, #tpu.memory_space<vmem>>, %arg2: memref<16x16xi8, #tpu.memory_space<vmem>>, %arg3: memref<16x1xf32, #tpu.memory_space<vmem>>, %arg4: memref<1x1x32xf32, #tpu.memory_space<vmem>>, %arg5: memref<8x32xbf16, #tpu.memory_space<vmem>>, %arg6: memref<1x32xf32, #tpu.memory_space<vmem>>, %arg7: memref<1x1x32xf32, #tpu.memory_space<vmem>>, %arg8: memref<1x1x32xf32, #tpu.memory_space<vmem>>, %arg9: memref<1x1x32xf32, #tpu.memory_space<vmem>>, %arg10: memref<1x32x32xbf16, #tpu.memory_space<vmem>>, %arg11: memref<1x1x32xf32, #tpu.memory_space<vmem>>, %arg12: memref<1x32x32xbf16, #tpu.memory_space<vmem>>, %arg13: memref<1x1x32xf32, #tpu.memory_space<vmem>>, %arg14: memref<1x32x32xbf16, #tpu.memory_space<vmem>>, %arg15: memref<1x1x32xf32, #tpu.memory_space<vmem>>, %arg16: memref<1x32x32xbf16, #tpu.memory_space<vmem>>, %arg17: memref<1x1x32xf32, #tpu.memory_space<vmem>>, %arg18: memref<1x1x32xf32, #tpu.memory_space<vmem>>, %arg19: memref<1x1x32xf32, #tpu.memory_space<vmem>>, %arg20: memref<1x32x128xbf16, #tpu.memory_space<vmem>>, %arg21: memref<1x1x128xf32, #tpu.memory_space<vmem>>, %arg22: memref<1x128x32xbf16, #tpu.memory_space<vmem>>, %arg23: memref<1x1x32xf32, #tpu.memory_space<vmem>>, %arg24: memref<32x128xbf16, #tpu.memory_space<vmem>>, %arg25: memref<1x128xf32, #tpu.memory_space<vmem>>, %arg26: memref<16x128xf32, #tpu.memory_space<vmem>>, %arg27: memref<16x32xf32, #tpu.memory_space<vmem>>) attributes {dimension_semantics = [#tpu.dimension_semantics<arbitrary>], iteration_bounds = array<i64: 2>, scalar_prefetch = 0 : i64, scratch_operands = 1 : i64, tpu.core_type = #tpu.core_type<tc>, window_params = [{pipeline_mode = #tpu.pipeline_mode<synchronous>, transform_indices = @transform_0, window_bounds = array<i64: 16, 8>}, {pipeline_mode = #tpu.pipeline_mode<synchronous>, transform_indices = @transform_1, window_bounds = array<i64: 16, 16>}, {pipeline_mode = #tpu.pipeline_mode<synchronous>, transform_indices = @transform_2, window_bounds = array<i64: 16, 1>}, {transform_indices = @transform_3, window_bounds = array<i64: 1, 1, 32>}, {pipeline_mode = #tpu.pipeline_mode<synchronous>, transform_indices = @transform_4, window_bounds = array<i64: 8, 32>}, {pipeline_mode = #tpu.pipeline_mode<synchronous>, transform_indices = @transform_5, window_bounds = array<i64: 1, 32>}, {transform_indices = @transform_6, window_bounds = array<i64: 1, 1, 32>}, {transform_indices = @transform_7, window_bounds = array<i64: 1, 1, 32>}, {transform_indices = @transform_8, window_bounds = array<i64: 1, 1, 32>}, {transform_indices = @transform_9, window_bounds = array<i64: 1, 32, 32>}, {transform_indices = @transform_10, window_bounds = array<i64: 1, 1, 32>}, {transform_indices = @transform_11, window_bounds = array<i64: 1, 32, 32>}, {transform_indices = @transform_12, window_bounds = array<i64: 1, 1, 32>}, {transform_indices = @transform_13, window_bounds = array<i64: 1, 32, 32>}, {transform_indices = @transform_14, window_bounds = array<i64: 1, 1, 32>}, {transform_indices = @transform_15, window_bounds = array<i64: 1, 32, 32>}, {transform_indices = @transform_16, window_bounds = array<i64: 1, 1, 32>}, {transform_indices = @transform_17, window_bounds = array<i64: 1, 1, 32>}, {transform_indices = @transform_18, window_bounds = array<i64: 1, 1, 32>}, {transform_indices = @transform_19, window_bounds = array<i64: 1, 32, 128>}, {transform_indices = @transform_20, window_bounds = array<i64: 1, 1, 128>}, {transform_indices = @transform_21, window_bounds = array<i64: 1, 128, 32>}, {transform_indices = @transform_22, window_bounds = array<i64: 1, 1, 32>}, {pipeline_mode = #tpu.pipeline_mode<synchronous>, transform_indices = @transform_23, window_bounds = array<i64: 32, 128>}, {pipeline_mode = #tpu.pipeline_mode<synchronous>, transform_indices = @transform_24, window_bounds = array<i64: 1, 128>}, {pipeline_mode = #tpu.pipeline_mode<synchronous>, transform_indices = @transform_25, window_bounds = array<i64: 16, 128>}]} {
    %c0_i32 = arith.constant 0 : i32
    %0 = arith.cmpi eq, %arg0, %c0_i32 : i32
    %1 = arith.extui %0 : i1 to i32
    %c0_i32_0 = arith.constant 0 : i32
    %2 = arith.cmpi ne, %1, %c0_i32_0 : i32
    scf.if %2 {
      %c0_106 = arith.constant 0 : index
      %c0_107 = arith.constant 0 : index
      %237 = vector.load %arg1[%c0_106, %c0_107] : memref<16x8xf32, #tpu.memory_space<vmem>>, vector<16x8xf32>
      %238 = arith.truncf %237 : vector<16x8xf32> to vector<16x8xbf16>
      %c0_108 = arith.constant 0 : index
      %c0_109 = arith.constant 0 : index
      %239 = vector.load %arg5[%c0_108, %c0_109] : memref<8x32xbf16, #tpu.memory_space<vmem>>, vector<8x32xbf16>
      %cst_110 = arith.constant dense<0.000000e+00> : vector<16x32xf32>
      %240 = tpu.matmul %238, %239, %cst_110 {dimension_numbers = #tpu.dot_dimension_numbers<[1], [0], [0], [1], [0, 0, 1, 1], [], []>} : vector<16x8xbf16>, vector<8x32xbf16>, vector<16x32xf32> -> vector<16x32xf32>
      %c0_111 = arith.constant 0 : index
      %c0_112 = arith.constant 0 : index
      %241 = vector.load %arg6[%c0_111, %c0_112] : memref<1x32xf32, #tpu.memory_space<vmem>>, vector<1x32xf32>
      %242 = vector.broadcast %241 : vector<1x32xf32> to vector<16x32xf32>
      %243 = arith.addf %240, %242 : vector<16x32xf32>
      %c0_113 = arith.constant 0 : index
      %c0_114 = arith.constant 0 : index
      %244 = vector.load %arg27[%c0_113, %c0_114] : memref<16x32xf32, #tpu.memory_space<vmem>>, vector<16x32xf32>
      tpu.vector_store %arg27[%c0_113, %c0_114], %243 {strides = array<i32>} : memref<16x32xf32, #tpu.memory_space<vmem>>, vector<16x32xf32>,
    } else {
    }
    %c0 = arith.constant 0 : index
    %c0_1 = arith.constant 0 : index
    %3 = vector.load %arg2[%c0, %c0_1] : memref<16x16xi8, #tpu.memory_space<vmem>>, vector<16x16xi8>
    %4 = arith.sitofp %3 : vector<16x16xi8> to vector<16x16xf32>
    %cst = arith.constant 0.000000e+00 : f32
    %5 = vector.broadcast %cst : f32 to vector<16x16xf32>
    %6 = arith.cmpf ogt, %4, %5 : vector<16x16xf32>
    %cst_2 = arith.constant 0.000000e+00 : f32
    %cst_3 = arith.constant -1.000000e+09 : f32
    %7 = vector.broadcast %cst_2 : f32 to vector<16x16xf32>
    %8 = vector.broadcast %cst_3 : f32 to vector<16x16xf32>
    %9 = arith.select %6, %7, %8 : vector<16x16xi1>, vector<16x16xf32>
    %c0_4 = arith.constant 0 : index
    %c0_5 = arith.constant 0 : index
    %10 = vector.load %arg27[%c0_4, %c0_5] : memref<16x32xf32, #tpu.memory_space<vmem>>, vector<16x32xf32>
    %c0_6 = arith.constant 0 : index
    %c0_7 = arith.constant 0 : index
    %c0_8 = arith.constant 0 : index
    %11 = vector.load %arg4[%c0_6, %c0_7, %c0_8] : memref<1x1x32xf32, #tpu.memory_space<vmem>>, vector<1x1x32xf32>
    %12 = vector.shape_cast %11 : vector<1x1x32xf32> to vector<1x32xf32>
    %13 = vector.broadcast %12 : vector<1x32xf32> to vector<16x32xf32>
    %14 = arith.addf %10, %13 : vector<16x32xf32>
    %c0_9 = arith.constant 0 : index
    %c0_10 = arith.constant 0 : index
    %15 = vector.load %arg3[%c0_9, %c0_10] : memref<16x1xf32, #tpu.memory_space<vmem>>, vector<16x1xf32>
    %c0_11 = arith.constant 0 : index
    %c0_12 = arith.constant 0 : index
    %c0_13 = arith.constant 0 : index
    %16 = vector.load %arg7[%c0_11, %c0_12, %c0_13] : memref<1x1x32xf32, #tpu.memory_space<vmem>>, vector<1x1x32xf32>
    %17 = vector.shape_cast %16 : vector<1x1x32xf32> to vector<1x32xf32>
    %18 = vector.broadcast %15 : vector<16x1xf32> to vector<16x32xf32>
    %19 = vector.broadcast %17 : vector<1x32xf32> to vector<16x32xf32>
    %20 = arith.mulf %18, %19 : vector<16x32xf32>
    %21 = arith.addf %14, %20 : vector<16x32xf32>
    %c0_14 = arith.constant 0 : index
    %c0_15 = arith.constant 0 : index
    %c0_16 = arith.constant 0 : index
    %22 = vector.load %arg8[%c0_14, %c0_15, %c0_16] : memref<1x1x32xf32, #tpu.memory_space<vmem>>, vector<1x1x32xf32>
    %23 = vector.shape_cast %22 : vector<1x1x32xf32> to vector<1x32xf32>
    %c0_17 = arith.constant 0 : index
    %c0_18 = arith.constant 0 : index
    %c0_19 = arith.constant 0 : index
    %24 = vector.load %arg9[%c0_17, %c0_18, %c0_19] : memref<1x1x32xf32, #tpu.memory_space<vmem>>, vector<1x1x32xf32>
    %25 = vector.shape_cast %24 : vector<1x1x32xf32> to vector<1x32xf32>
    %cst_20 = arith.constant dense<0.000000e+00> : vector<16xf32>
    %26 = vector.multi_reduction <add>, %21, %cst_20 [1] : vector<16x32xf32> to vector<16xf32>
    %27 = vector.shape_cast %26 : vector<16xf32> to vector<16x1xf32>
    %cst_21 = arith.constant 3.200000e+01 : f32
    %28 = vector.broadcast %cst_21 : f32 to vector<16x1xf32>
    %29 = arith.divf %27, %28 : vector<16x1xf32>
    %30 = vector.broadcast %29 : vector<16x1xf32> to vector<16x32xf32>
    %31 = arith.subf %21, %30 : vector<16x32xf32>
    %32 = arith.mulf %31, %31 : vector<16x32xf32>
    %cst_22 = arith.constant dense<0.000000e+00> : vector<16xf32>
    %33 = vector.multi_reduction <add>, %32, %cst_22 [1] : vector<16x32xf32> to vector<16xf32>
    %34 = vector.shape_cast %33 : vector<16xf32> to vector<16x1xf32>
    %cst_23 = arith.constant 3.200000e+01 : f32
    %35 = vector.broadcast %cst_23 : f32 to vector<16x1xf32>
    %36 = arith.divf %34, %35 : vector<16x1xf32>
    %37 = vector.broadcast %29 : vector<16x1xf32> to vector<16x32xf32>
    %38 = arith.subf %21, %37 : vector<16x32xf32>
    %cst_24 = arith.constant 9.99999974E-6 : f32
    %39 = vector.broadcast %cst_24 : f32 to vector<16x1xf32>
    %40 = arith.addf %36, %39 : vector<16x1xf32>
    %41 = math.rsqrt %40 : vector<16x1xf32>
    %42 = vector.broadcast %41 : vector<16x1xf32> to vector<16x32xf32>
    %43 = arith.mulf %38, %42 : vector<16x32xf32>
    %44 = vector.broadcast %23 : vector<1x32xf32> to vector<16x32xf32>
    %45 = arith.mulf %43, %44 : vector<16x32xf32>
    %46 = vector.broadcast %25 : vector<1x32xf32> to vector<16x32xf32>
    %47 = arith.addf %45, %46 : vector<16x32xf32>
    %48 = arith.truncf %47 : vector<16x32xf32> to vector<16x32xbf16>
    %c0_25 = arith.constant 0 : index
    %c0_26 = arith.constant 0 : index
    %c0_27 = arith.constant 0 : index
    %49 = vector.load %arg10[%c0_25, %c0_26, %c0_27] : memref<1x32x32xbf16, #tpu.memory_space<vmem>>, vector<1x32x32xbf16>
    %50 = vector.shape_cast %49 : vector<1x32x32xbf16> to vector<32x32xbf16>
    %cst_28 = arith.constant dense<0.000000e+00> : vector<16x32xf32>
    %51 = tpu.matmul %48, %50, %cst_28 {dimension_numbers = #tpu.dot_dimension_numbers<[1], [0], [0], [1], [0, 0, 1, 1], [], []>} : vector<16x32xbf16>, vector<32x32xbf16>, vector<16x32xf32> -> vector<16x32xf32>
    %c0_29 = arith.constant 0 : index
    %c0_30 = arith.constant 0 : index
    %c0_31 = arith.constant 0 : index
    %52 = vector.load %arg11[%c0_29, %c0_30, %c0_31] : memref<1x1x32xf32, #tpu.memory_space<vmem>>, vector<1x1x32xf32>
    %53 = vector.shape_cast %52 : vector<1x1x32xf32> to vector<1x32xf32>
    %54 = vector.broadcast %53 : vector<1x32xf32> to vector<16x32xf32>
    %55 = arith.addf %51, %54 : vector<16x32xf32>
    %cst_32 = arith.constant 0.353553385 : f32
    %56 = vector.broadcast %cst_32 : f32 to vector<16x32xf32>
    %57 = arith.mulf %55, %56 : vector<16x32xf32>
    %c0_33 = arith.constant 0 : index
    %c0_34 = arith.constant 0 : index
    %c0_35 = arith.constant 0 : index
    %58 = vector.load %arg12[%c0_33, %c0_34, %c0_35] : memref<1x32x32xbf16, #tpu.memory_space<vmem>>, vector<1x32x32xbf16>
    %59 = vector.shape_cast %58 : vector<1x32x32xbf16> to vector<32x32xbf16>
    %cst_36 = arith.constant dense<0.000000e+00> : vector<16x32xf32>
    %60 = tpu.matmul %48, %59, %cst_36 {dimension_numbers = #tpu.dot_dimension_numbers<[1], [0], [0], [1], [0, 0, 1, 1], [], []>} : vector<16x32xbf16>, vector<32x32xbf16>, vector<16x32xf32> -> vector<16x32xf32>
    %c0_37 = arith.constant 0 : index
    %c0_38 = arith.constant 0 : index
    %c0_39 = arith.constant 0 : index
    %61 = vector.load %arg13[%c0_37, %c0_38, %c0_39] : memref<1x1x32xf32, #tpu.memory_space<vmem>>, vector<1x1x32xf32>
    %62 = vector.shape_cast %61 : vector<1x1x32xf32> to vector<1x32xf32>
    %63 = vector.broadcast %62 : vector<1x32xf32> to vector<16x32xf32>
    %64 = arith.addf %60, %63 : vector<16x32xf32>
    %c0_40 = arith.constant 0 : index
    %c0_41 = arith.constant 0 : index
    %c0_42 = arith.constant 0 : index
    %65 = vector.load %arg14[%c0_40, %c0_41, %c0_42] : memref<1x32x32xbf16, #tpu.memory_space<vmem>>, vector<1x32x32xbf16>
    %66 = vector.shape_cast %65 : vector<1x32x32xbf16> to vector<32x32xbf16>
    %cst_43 = arith.constant dense<0.000000e+00> : vector<16x32xf32>
    %67 = tpu.matmul %48, %66, %cst_43 {dimension_numbers = #tpu.dot_dimension_numbers<[1], [0], [0], [1], [0, 0, 1, 1], [], []>} : vector<16x32xbf16>, vector<32x32xbf16>, vector<16x32xf32> -> vector<16x32xf32>
    %c0_44 = arith.constant 0 : index
    %c0_45 = arith.constant 0 : index
    %c0_46 = arith.constant 0 : index
    %68 = vector.load %arg15[%c0_44, %c0_45, %c0_46] : memref<1x1x32xf32, #tpu.memory_space<vmem>>, vector<1x1x32xf32>
    %69 = vector.shape_cast %68 : vector<1x1x32xf32> to vector<1x32xf32>
    %70 = vector.broadcast %69 : vector<1x32xf32> to vector<16x32xf32>
    %71 = arith.addf %67, %70 : vector<16x32xf32>
    %72 = tpu.transpose %64, [1, 0] : vector<16x32xf32> -> vector<32x16xf32>
    %c0_47 = arith.constant 0 : index
    %c0_48 = arith.constant 0 : index
    %c0_49 = arith.constant 0 : index
    %73 = vector.load %arg16[%c0_47, %c0_48, %c0_49] : memref<1x32x32xbf16, #tpu.memory_space<vmem>>, vector<1x32x32xbf16>
    %74 = vector.shape_cast %73 : vector<1x32x32xbf16> to vector<32x32xbf16>
    %cst_50 = arith.constant 0.000000e+00 : f32
    %75 = vector.broadcast %cst_50 : f32 to vector<16x32xf32>
    %76 = vector.extract_strided_slice %57 {offsets = [0, 0], sizes = [16, 8], strides = [1, 1]} : vector<16x32xf32> to vector<16x8xf32>
    %77 = arith.truncf %76 : vector<16x8xf32> to vector<16x8xbf16>
    %78 = vector.extract_strided_slice %72 {offsets = [0, 0], sizes = [8, 16], strides = [1, 1]} : vector<32x16xf32> to vector<8x16xf32>
    %79 = arith.truncf %78 : vector<8x16xf32> to vector<8x16xbf16>
    %cst_51 = arith.constant dense<0.000000e+00> : vector<16x16xf32>
    %80 = tpu.matmul %77, %79, %cst_51 {dimension_numbers = #tpu.dot_dimension_numbers<[1], [0], [0], [1], [0, 0, 1, 1], [], []>} : vector<16x8xbf16>, vector<8x16xbf16>, vector<16x16xf32> -> vector<16x16xf32>
    %81 = arith.addf %80, %9 : vector<16x16xf32>
    %cst_52 = arith.constant dense<0xFF800000> : vector<16xf32>
    %82 = vector.multi_reduction <maximumf>, %81, %cst_52 [1] : vector<16x16xf32> to vector<16xf32>
    %83 = vector.shape_cast %82 : vector<16xf32> to vector<16x1xf32>
    %84 = vector.broadcast %83 : vector<16x1xf32> to vector<16x16xf32>
    %85 = arith.subf %81, %84 : vector<16x16xf32>
    %86 = math.exp %85 : vector<16x16xf32>
    %cst_53 = arith.constant dense<0.000000e+00> : vector<16xf32>
    %87 = vector.multi_reduction <add>, %86, %cst_53 [1] : vector<16x16xf32> to vector<16xf32>
    %88 = vector.shape_cast %87 : vector<16xf32> to vector<16x1xf32>
    %89 = tpu.reciprocal %88 {approx = true} : vector<16x1xf32> -> vector<16x1xf32>
    %90 = vector.broadcast %89 : vector<16x1xf32> to vector<16x16xf32>
    %91 = arith.mulf %86, %90 : vector<16x16xf32>
    %92 = vector.extract_strided_slice %71 {offsets = [0, 0], sizes = [16, 8], strides = [1, 1]} : vector<16x32xf32> to vector<16x8xf32>
    %93 = arith.truncf %92 : vector<16x8xf32> to vector<16x8xbf16>
    %94 = arith.truncf %91 : vector<16x16xf32> to vector<16x16xbf16>
    %cst_54 = arith.constant dense<0.000000e+00> : vector<16x8xf32>
    %95 = tpu.matmul %94, %93, %cst_54 {dimension_numbers = #tpu.dot_dimension_numbers<[1], [0], [0], [1], [0, 0, 1, 1], [], []>} : vector<16x16xbf16>, vector<16x8xbf16>, vector<16x8xf32> -> vector<16x8xf32>
    %96 = arith.truncf %95 : vector<16x8xf32> to vector<16x8xbf16>
    %97 = vector.extract_strided_slice %74 {offsets = [0, 0], sizes = [8, 32], strides = [1, 1]} : vector<32x32xbf16> to vector<8x32xbf16>
    %cst_55 = arith.constant dense<0.000000e+00> : vector<16x32xf32>
    %98 = tpu.matmul %96, %97, %cst_55 {dimension_numbers = #tpu.dot_dimension_numbers<[1], [0], [0], [1], [0, 0, 1, 1], [], []>} : vector<16x8xbf16>, vector<8x32xbf16>, vector<16x32xf32> -> vector<16x32xf32>
    %99 = arith.addf %75, %98 : vector<16x32xf32>
    %100 = vector.extract_strided_slice %57 {offsets = [0, 8], sizes = [16, 8], strides = [1, 1]} : vector<16x32xf32> to vector<16x8xf32>
    %101 = arith.truncf %100 : vector<16x8xf32> to vector<16x8xbf16>
    %102 = vector.extract_strided_slice %72 {offsets = [8, 0], sizes = [8, 16], strides = [1, 1]} : vector<32x16xf32> to vector<8x16xf32>
    %103 = arith.truncf %102 : vector<8x16xf32> to vector<8x16xbf16>
    %cst_56 = arith.constant dense<0.000000e+00> : vector<16x16xf32>
    %104 = tpu.matmul %101, %103, %cst_56 {dimension_numbers = #tpu.dot_dimension_numbers<[1], [0], [0], [1], [0, 0, 1, 1], [], []>} : vector<16x8xbf16>, vector<8x16xbf16>, vector<16x16xf32> -> vector<16x16xf32>
    %105 = arith.addf %104, %9 : vector<16x16xf32>
    %cst_57 = arith.constant dense<0xFF800000> : vector<16xf32>
    %106 = vector.multi_reduction <maximumf>, %105, %cst_57 [1] : vector<16x16xf32> to vector<16xf32>
    %107 = vector.shape_cast %106 : vector<16xf32> to vector<16x1xf32>
    %108 = vector.broadcast %107 : vector<16x1xf32> to vector<16x16xf32>
    %109 = arith.subf %105, %108 : vector<16x16xf32>
    %110 = math.exp %109 : vector<16x16xf32>
    %cst_58 = arith.constant dense<0.000000e+00> : vector<16xf32>
    %111 = vector.multi_reduction <add>, %110, %cst_58 [1] : vector<16x16xf32> to vector<16xf32>
    %112 = vector.shape_cast %111 : vector<16xf32> to vector<16x1xf32>
    %113 = tpu.reciprocal %112 {approx = true} : vector<16x1xf32> -> vector<16x1xf32>
    %114 = vector.broadcast %113 : vector<16x1xf32> to vector<16x16xf32>
    %115 = arith.mulf %110, %114 : vector<16x16xf32>
    %116 = vector.extract_strided_slice %71 {offsets = [0, 8], sizes = [16, 8], strides = [1, 1]} : vector<16x32xf32> to vector<16x8xf32>
    %117 = arith.truncf %116 : vector<16x8xf32> to vector<16x8xbf16>
    %118 = arith.truncf %115 : vector<16x16xf32> to vector<16x16xbf16>
    %cst_59 = arith.constant dense<0.000000e+00> : vector<16x8xf32>
    %119 = tpu.matmul %118, %117, %cst_59 {dimension_numbers = #tpu.dot_dimension_numbers<[1], [0], [0], [1], [0, 0, 1, 1], [], []>} : vector<16x16xbf16>, vector<16x8xbf16>, vector<16x8xf32> -> vector<16x8xf32>
    %120 = arith.truncf %119 : vector<16x8xf32> to vector<16x8xbf16>
    %121 = vector.extract_strided_slice %74 {offsets = [8, 0], sizes = [8, 32], strides = [1, 1]} : vector<32x32xbf16> to vector<8x32xbf16>
    %cst_60 = arith.constant dense<0.000000e+00> : vector<16x32xf32>
    %122 = tpu.matmul %120, %121, %cst_60 {dimension_numbers = #tpu.dot_dimension_numbers<[1], [0], [0], [1], [0, 0, 1, 1], [], []>} : vector<16x8xbf16>, vector<8x32xbf16>, vector<16x32xf32> -> vector<16x32xf32>
    %123 = arith.addf %99, %122 : vector<16x32xf32>
    %124 = vector.extract_strided_slice %57 {offsets = [0, 16], sizes = [16, 8], strides = [1, 1]} : vector<16x32xf32> to vector<16x8xf32>
    %125 = arith.truncf %124 : vector<16x8xf32> to vector<16x8xbf16>
    %126 = vector.extract_strided_slice %72 {offsets = [16, 0], sizes = [8, 16], strides = [1, 1]} : vector<32x16xf32> to vector<8x16xf32>
    %127 = arith.truncf %126 : vector<8x16xf32> to vector<8x16xbf16>
    %cst_61 = arith.constant dense<0.000000e+00> : vector<16x16xf32>
    %128 = tpu.matmul %125, %127, %cst_61 {dimension_numbers = #tpu.dot_dimension_numbers<[1], [0], [0], [1], [0, 0, 1, 1], [], []>} : vector<16x8xbf16>, vector<8x16xbf16>, vector<16x16xf32> -> vector<16x16xf32>
    %129 = arith.addf %128, %9 : vector<16x16xf32>
    %cst_62 = arith.constant dense<0xFF800000> : vector<16xf32>
    %130 = vector.multi_reduction <maximumf>, %129, %cst_62 [1] : vector<16x16xf32> to vector<16xf32>
    %131 = vector.shape_cast %130 : vector<16xf32> to vector<16x1xf32>
    %132 = vector.broadcast %131 : vector<16x1xf32> to vector<16x16xf32>
    %133 = arith.subf %129, %132 : vector<16x16xf32>
    %134 = math.exp %133 : vector<16x16xf32>
    %cst_63 = arith.constant dense<0.000000e+00> : vector<16xf32>
    %135 = vector.multi_reduction <add>, %134, %cst_63 [1] : vector<16x16xf32> to vector<16xf32>
    %136 = vector.shape_cast %135 : vector<16xf32> to vector<16x1xf32>
    %137 = tpu.reciprocal %136 {approx = true} : vector<16x1xf32> -> vector<16x1xf32>
    %138 = vector.broadcast %137 : vector<16x1xf32> to vector<16x16xf32>
    %139 = arith.mulf %134, %138 : vector<16x16xf32>
    %140 = vector.extract_strided_slice %71 {offsets = [0, 16], sizes = [16, 8], strides = [1, 1]} : vector<16x32xf32> to vector<16x8xf32>
    %141 = arith.truncf %140 : vector<16x8xf32> to vector<16x8xbf16>
    %142 = arith.truncf %139 : vector<16x16xf32> to vector<16x16xbf16>
    %cst_64 = arith.constant dense<0.000000e+00> : vector<16x8xf32>
    %143 = tpu.matmul %142, %141, %cst_64 {dimension_numbers = #tpu.dot_dimension_numbers<[1], [0], [0], [1], [0, 0, 1, 1], [], []>} : vector<16x16xbf16>, vector<16x8xbf16>, vector<16x8xf32> -> vector<16x8xf32>
    %144 = arith.truncf %143 : vector<16x8xf32> to vector<16x8xbf16>
    %145 = vector.extract_strided_slice %74 {offsets = [16, 0], sizes = [8, 32], strides = [1, 1]} : vector<32x32xbf16> to vector<8x32xbf16>
    %cst_65 = arith.constant dense<0.000000e+00> : vector<16x32xf32>
    %146 = tpu.matmul %144, %145, %cst_65 {dimension_numbers = #tpu.dot_dimension_numbers<[1], [0], [0], [1], [0, 0, 1, 1], [], []>} : vector<16x8xbf16>, vector<8x32xbf16>, vector<16x32xf32> -> vector<16x32xf32>
    %147 = arith.addf %123, %146 : vector<16x32xf32>
    %148 = vector.extract_strided_slice %57 {offsets = [0, 24], sizes = [16, 8], strides = [1, 1]} : vector<16x32xf32> to vector<16x8xf32>
    %149 = arith.truncf %148 : vector<16x8xf32> to vector<16x8xbf16>
    %150 = vector.extract_strided_slice %72 {offsets = [24, 0], sizes = [8, 16], strides = [1, 1]} : vector<32x16xf32> to vector<8x16xf32>
    %151 = arith.truncf %150 : vector<8x16xf32> to vector<8x16xbf16>
    %cst_66 = arith.constant dense<0.000000e+00> : vector<16x16xf32>
    %152 = tpu.matmul %149, %151, %cst_66 {dimension_numbers = #tpu.dot_dimension_numbers<[1], [0], [0], [1], [0, 0, 1, 1], [], []>} : vector<16x8xbf16>, vector<8x16xbf16>, vector<16x16xf32> -> vector<16x16xf32>
    %153 = arith.addf %152, %9 : vector<16x16xf32>
    %cst_67 = arith.constant dense<0xFF800000> : vector<16xf32>
    %154 = vector.multi_reduction <maximumf>, %153, %cst_67 [1] : vector<16x16xf32> to vector<16xf32>
    %155 = vector.shape_cast %154 : vector<16xf32> to vector<16x1xf32>
    %156 = vector.broadcast %155 : vector<16x1xf32> to vector<16x16xf32>
    %157 = arith.subf %153, %156 : vector<16x16xf32>
    %158 = math.exp %157 : vector<16x16xf32>
    %cst_68 = arith.constant dense<0.000000e+00> : vector<16xf32>
    %159 = vector.multi_reduction <add>, %158, %cst_68 [1] : vector<16x16xf32> to vector<16xf32>
    %160 = vector.shape_cast %159 : vector<16xf32> to vector<16x1xf32>
    %161 = tpu.reciprocal %160 {approx = true} : vector<16x1xf32> -> vector<16x1xf32>
    %162 = vector.broadcast %161 : vector<16x1xf32> to vector<16x16xf32>
    %163 = arith.mulf %158, %162 : vector<16x16xf32>
    %164 = vector.extract_strided_slice %71 {offsets = [0, 24], sizes = [16, 8], strides = [1, 1]} : vector<16x32xf32> to vector<16x8xf32>
    %165 = arith.truncf %164 : vector<16x8xf32> to vector<16x8xbf16>
    %166 = arith.truncf %163 : vector<16x16xf32> to vector<16x16xbf16>
    %cst_69 = arith.constant dense<0.000000e+00> : vector<16x8xf32>
    %167 = tpu.matmul %166, %165, %cst_69 {dimension_numbers = #tpu.dot_dimension_numbers<[1], [0], [0], [1], [0, 0, 1, 1], [], []>} : vector<16x16xbf16>, vector<16x8xbf16>, vector<16x8xf32> -> vector<16x8xf32>
    %168 = arith.truncf %167 : vector<16x8xf32> to vector<16x8xbf16>
    %169 = vector.extract_strided_slice %74 {offsets = [24, 0], sizes = [8, 32], strides = [1, 1]} : vector<32x32xbf16> to vector<8x32xbf16>
    %cst_70 = arith.constant dense<0.000000e+00> : vector<16x32xf32>
    %170 = tpu.matmul %168, %169, %cst_70 {dimension_numbers = #tpu.dot_dimension_numbers<[1], [0], [0], [1], [0, 0, 1, 1], [], []>} : vector<16x8xbf16>, vector<8x32xbf16>, vector<16x32xf32> -> vector<16x32xf32>
    %171 = arith.addf %147, %170 : vector<16x32xf32>
    %172 = arith.addf %21, %171 : vector<16x32xf32>
    %c0_71 = arith.constant 0 : index
    %c0_72 = arith.constant 0 : index
    %c0_73 = arith.constant 0 : index
    %173 = vector.load %arg17[%c0_71, %c0_72, %c0_73] : memref<1x1x32xf32, #tpu.memory_space<vmem>>, vector<1x1x32xf32>
    %174 = vector.shape_cast %173 : vector<1x1x32xf32> to vector<1x32xf32>
    %175 = vector.broadcast %174 : vector<1x32xf32> to vector<16x32xf32>
    %176 = arith.addf %172, %175 : vector<16x32xf32>
    %c0_74 = arith.constant 0 : index
    %c0_75 = arith.constant 0 : index
    %c0_76 = arith.constant 0 : index
    %177 = vector.load %arg18[%c0_74, %c0_75, %c0_76] : memref<1x1x32xf32, #tpu.memory_space<vmem>>, vector<1x1x32xf32>
    %178 = vector.shape_cast %177 : vector<1x1x32xf32> to vector<1x32xf32>
    %c0_77 = arith.constant 0 : index
    %c0_78 = arith.constant 0 : index
    %c0_79 = arith.constant 0 : index
    %179 = vector.load %arg19[%c0_77, %c0_78, %c0_79] : memref<1x1x32xf32, #tpu.memory_space<vmem>>, vector<1x1x32xf32>
    %180 = vector.shape_cast %179 : vector<1x1x32xf32> to vector<1x32xf32>
    %cst_80 = arith.constant dense<0.000000e+00> : vector<16xf32>
    %181 = vector.multi_reduction <add>, %176, %cst_80 [1] : vector<16x32xf32> to vector<16xf32>
    %182 = vector.shape_cast %181 : vector<16xf32> to vector<16x1xf32>
    %cst_81 = arith.constant 3.200000e+01 : f32
    %183 = vector.broadcast %cst_81 : f32 to vector<16x1xf32>
    %184 = arith.divf %182, %183 : vector<16x1xf32>
    %185 = vector.broadcast %184 : vector<16x1xf32> to vector<16x32xf32>
    %186 = arith.subf %176, %185 : vector<16x32xf32>
    %187 = arith.mulf %186, %186 : vector<16x32xf32>
    %cst_82 = arith.constant dense<0.000000e+00> : vector<16xf32>
    %188 = vector.multi_reduction <add>, %187, %cst_82 [1] : vector<16x32xf32> to vector<16xf32>
    %189 = vector.shape_cast %188 : vector<16xf32> to vector<16x1xf32>
    %cst_83 = arith.constant 3.200000e+01 : f32
    %190 = vector.broadcast %cst_83 : f32 to vector<16x1xf32>
    %191 = arith.divf %189, %190 : vector<16x1xf32>
    %192 = vector.broadcast %184 : vector<16x1xf32> to vector<16x32xf32>
    %193 = arith.subf %176, %192 : vector<16x32xf32>
    %cst_84 = arith.constant 9.99999974E-6 : f32
    %194 = vector.broadcast %cst_84 : f32 to vector<16x1xf32>
    %195 = arith.addf %191, %194 : vector<16x1xf32>
    %196 = math.rsqrt %195 : vector<16x1xf32>
    %197 = vector.broadcast %196 : vector<16x1xf32> to vector<16x32xf32>
    %198 = arith.mulf %193, %197 : vector<16x32xf32>
    %199 = vector.broadcast %178 : vector<1x32xf32> to vector<16x32xf32>
    %200 = arith.mulf %198, %199 : vector<16x32xf32>
    %201 = vector.broadcast %180 : vector<1x32xf32> to vector<16x32xf32>
    %202 = arith.addf %200, %201 : vector<16x32xf32>
    %203 = arith.truncf %202 : vector<16x32xf32> to vector<16x32xbf16>
    %c0_85 = arith.constant 0 : index
    %c0_86 = arith.constant 0 : index
    %c0_87 = arith.constant 0 : index
    %204 = vector.load %arg20[%c0_85, %c0_86, %c0_87] : memref<1x32x128xbf16, #tpu.memory_space<vmem>>, vector<1x32x128xbf16>
    %205 = vector.shape_cast %204 : vector<1x32x128xbf16> to vector<32x128xbf16>
    %cst_88 = arith.constant dense<0.000000e+00> : vector<16x128xf32>
    %206 = tpu.matmul %203, %205, %cst_88 {dimension_numbers = #tpu.dot_dimension_numbers<[1], [0], [0], [1], [0, 0, 1, 1], [], []>} : vector<16x32xbf16>, vector<32x128xbf16>, vector<16x128xf32> -> vector<16x128xf32>
    %c0_89 = arith.constant 0 : index
    %c0_90 = arith.constant 0 : index
    %c0_91 = arith.constant 0 : index
    %207 = vector.load %arg21[%c0_89, %c0_90, %c0_91] : memref<1x1x128xf32, #tpu.memory_space<vmem>>, vector<1x1x128xf32>
    %208 = vector.shape_cast %207 : vector<1x1x128xf32> to vector<1x128xf32>
    %209 = vector.broadcast %208 : vector<1x128xf32> to vector<16x128xf32>
    %210 = arith.addf %206, %209 : vector<16x128xf32>
    %211 = arith.mulf %210, %210 : vector<16x128xf32>
    %212 = arith.mulf %210, %211 : vector<16x128xf32>
    %cst_92 = arith.constant 4.471500e-02 : f32
    %213 = vector.broadcast %cst_92 : f32 to vector<16x128xf32>
    %214 = arith.mulf %213, %212 : vector<16x128xf32>
    %215 = arith.addf %210, %214 : vector<16x128xf32>
    %cst_93 = arith.constant 0.797884583 : f32
    %216 = vector.broadcast %cst_93 : f32 to vector<16x128xf32>
    %217 = arith.mulf %216, %215 : vector<16x128xf32>
    %218 = math.tanh %217 : vector<16x128xf32>
    %cst_94 = arith.constant 1.000000e+00 : f32
    %219 = vector.broadcast %cst_94 : f32 to vector<16x128xf32>
    %220 = arith.addf %219, %218 : vector<16x128xf32>
    %cst_95 = arith.constant 5.000000e-01 : f32
    %221 = vector.broadcast %cst_95 : f32 to vector<16x128xf32>
    %222 = arith.mulf %221, %220 : vector<16x128xf32>
    %223 = arith.mulf %210, %222 : vector<16x128xf32>
    %224 = arith.truncf %223 : vector<16x128xf32> to vector<16x128xbf16>
    %c0_96 = arith.constant 0 : index
    %c0_97 = arith.constant 0 : index
    %c0_98 = arith.constant 0 : index
    %225 = vector.load %arg22[%c0_96, %c0_97, %c0_98] : memref<1x128x32xbf16, #tpu.memory_space<vmem>>, vector<1x128x32xbf16>
    %226 = vector.shape_cast %225 : vector<1x128x32xbf16> to vector<128x32xbf16>
    %cst_99 = arith.constant dense<0.000000e+00> : vector<16x32xf32>
    %227 = tpu.matmul %224, %226, %cst_99 {dimension_numbers = #tpu.dot_dimension_numbers<[1], [0], [0], [1], [0, 0, 1, 1], [], []>} : vector<16x128xbf16>, vector<128x32xbf16>, vector<16x32xf32> -> vector<16x32xf32>
    %228 = arith.addf %176, %227 : vector<16x32xf32>
    %c0_100 = arith.constant 0 : index
    %c0_101 = arith.constant 0 : index
    %c0_102 = arith.constant 0 : index
    %229 = vector.load %arg23[%c0_100, %c0_101, %c0_102] : memref<1x1x32xf32, #tpu.memory_space<vmem>>, vector<1x1x32xf32>
    %230 = vector.shape_cast %229 : vector<1x1x32xf32> to vector<1x32xf32>
    %231 = vector.broadcast %230 : vector<1x32xf32> to vector<16x32xf32>
    %232 = arith.addf %228, %231 : vector<16x32xf32>
    %c0_103 = arith.constant 0 : index
    %c0_104 = arith.constant 0 : index
    %233 = vector.load %arg27[%c0_103, %c0_104] : memref<16x32xf32, #tpu.memory_space<vmem>>, vector<16x32xf32>
    tpu.vector_store %arg27[%c0_103, %c0_104], %232 {strides = array<i32>} : memref<16x32xf32, #tpu.memory_space<vmem>>, vector<16x32xf32>,
    %c1_i32 = arith.constant 1 : i32
    %234 = arith.cmpi eq, %arg0, %c1_i32 : i32
    %235 = arith.extui %234 : i1 to i32
    %c0_i32_105 = arith.constant 0 : i32
    %236 = arith.cmpi ne, %235, %c0_i32_105 : i32
    scf.if %236 {
      %237 = arith.truncf %232 : vector<16x32xf32> to vector<16x32xbf16>
      %c0_106 = arith.constant 0 : index
      %c0_107 = arith.constant 0 : index
      %238 = vector.load %arg24[%c0_106, %c0_107] : memref<32x128xbf16, #tpu.memory_space<vmem>>, vector<32x128xbf16>
      %cst_108 = arith.constant dense<0.000000e+00> : vector<16x128xf32>
      %239 = tpu.matmul %237, %238, %cst_108 {dimension_numbers = #tpu.dot_dimension_numbers<[1], [0], [0], [1], [0, 0, 1, 1], [], []>} : vector<16x32xbf16>, vector<32x128xbf16>, vector<16x128xf32> -> vector<16x128xf32>
      %c0_109 = arith.constant 0 : index
      %c0_110 = arith.constant 0 : index
      %240 = vector.load %arg25[%c0_109, %c0_110] : memref<1x128xf32, #tpu.memory_space<vmem>>, vector<1x128xf32>
      %241 = vector.broadcast %240 : vector<1x128xf32> to vector<16x128xf32>
      %242 = arith.addf %239, %241 : vector<16x128xf32>
      %c0_111 = arith.constant 0 : index
      %c0_112 = arith.constant 0 : index
      %243 = vector.load %arg26[%c0_111, %c0_112] : memref<16x128xf32, #tpu.memory_space<vmem>>, vector<16x128xf32>
      tpu.vector_store %arg26[%c0_111, %c0_112], %242 {strides = array<i32>} : memref<16x128xf32, #tpu.memory_space<vmem>>, vector<16x128xf32>,
    } else {
    }
    return
  }
  func.func @transform_0(%arg0: i32) -> (i32, i32) {
    %c0_i32 = arith.constant 0 : i32
    %c0_i32_0 = arith.constant 0 : i32
    %c0_i32_1 = arith.constant 0 : i32
    return %c0_i32, %c0_i32_0 : i32, i32
  }
  func.func @transform_1(%arg0: i32) -> (i32, i32) {
    %c0_i32 = arith.constant 0 : i32
    %c0_i32_0 = arith.constant 0 : i32
    %c0_i32_1 = arith.constant 0 : i32
    return %c0_i32, %c0_i32_0 : i32, i32
  }
  func.func @transform_2(%arg0: i32) -> (i32, i32) {
    %c0_i32 = arith.constant 0 : i32
    %c0_i32_0 = arith.constant 0 : i32
    %c0_i32_1 = arith.constant 0 : i32
    return %c0_i32, %c0_i32_0 : i32, i32
  }
  func.func @transform_3(%arg0: i32) -> (i32, i32, i32) {
    %c0_i32 = arith.constant 0 : i32
    %c0_i32_0 = arith.constant 0 : i32
    %c0_i32_1 = arith.constant 0 : i32
    return %arg0, %c0_i32, %c0_i32_0 : i32, i32, i32
  }
  func.func @transform_4(%arg0: i32) -> (i32, i32) {
    %c0_i32 = arith.constant 0 : i32
    %c0_i32_0 = arith.constant 0 : i32
    %c0_i32_1 = arith.constant 0 : i32
    return %c0_i32, %c0_i32_0 : i32, i32
  }
  func.func @transform_5(%arg0: i32) -> (i32, i32) {
    %c0_i32 = arith.constant 0 : i32
    %c0_i32_0 = arith.constant 0 : i32
    %c0_i32_1 = arith.constant 0 : i32
    return %c0_i32, %c0_i32_0 : i32, i32
  }
  func.func @transform_6(%arg0: i32) -> (i32, i32, i32) {
    %c0_i32 = arith.constant 0 : i32
    %c0_i32_0 = arith.constant 0 : i32
    %c0_i32_1 = arith.constant 0 : i32
    return %arg0, %c0_i32, %c0_i32_0 : i32, i32, i32
  }
  func.func @transform_7(%arg0: i32) -> (i32, i32, i32) {
    %c0_i32 = arith.constant 0 : i32
    %c0_i32_0 = arith.constant 0 : i32
    %c0_i32_1 = arith.constant 0 : i32
    return %arg0, %c0_i32, %c0_i32_0 : i32, i32, i32
  }
  func.func @transform_8(%arg0: i32) -> (i32, i32, i32) {
    %c0_i32 = arith.constant 0 : i32
    %c0_i32_0 = arith.constant 0 : i32
    %c0_i32_1 = arith.constant 0 : i32
    return %arg0, %c0_i32, %c0_i32_0 : i32, i32, i32
  }
  func.func @transform_9(%arg0: i32) -> (i32, i32, i32) {
    %c0_i32 = arith.constant 0 : i32
    %c0_i32_0 = arith.constant 0 : i32
    %c0_i32_1 = arith.constant 0 : i32
    return %arg0, %c0_i32, %c0_i32_0 : i32, i32, i32
  }
  func.func @transform_10(%arg0: i32) -> (i32, i32, i32) {
    %c0_i32 = arith.constant 0 : i32
    %c0_i32_0 = arith.constant 0 : i32
    %c0_i32_1 = arith.constant 0 : i32
    return %arg0, %c0_i32, %c0_i32_0 : i32, i32, i32
  }
  func.func @transform_11(%arg0: i32) -> (i32, i32, i32) {
    %c0_i32 = arith.constant 0 : i32
    %c0_i32_0 = arith.constant 0 : i32
    %c0_i32_1 = arith.constant 0 : i32
    return %arg0, %c0_i32, %c0_i32_0 : i32, i32, i32
  }
  func.func @transform_12(%arg0: i32) -> (i32, i32, i32) {
    %c0_i32 = arith.constant 0 : i32
    %c0_i32_0 = arith.constant 0 : i32
    %c0_i32_1 = arith.constant 0 : i32
    return %arg0, %c0_i32, %c0_i32_0 : i32, i32, i32
  }
  func.func @transform_13(%arg0: i32) -> (i32, i32, i32) {
    %c0_i32 = arith.constant 0 : i32
    %c0_i32_0 = arith.constant 0 : i32
    %c0_i32_1 = arith.constant 0 : i32
    return %arg0, %c0_i32, %c0_i32_0 : i32, i32, i32
  }
  func.func @transform_14(%arg0: i32) -> (i32, i32, i32) {
    %c0_i32 = arith.constant 0 : i32
    %c0_i32_0 = arith.constant 0 : i32
    %c0_i32_1 = arith.constant 0 : i32
    return %arg0, %c0_i32, %c0_i32_0 : i32, i32, i32
  }
  func.func @transform_15(%arg0: i32) -> (i32, i32, i32) {
    %c0_i32 = arith.constant 0 : i32
    %c0_i32_0 = arith.constant 0 : i32
    %c0_i32_1 = arith.constant 0 : i32
    return %arg0, %c0_i32, %c0_i32_0 : i32, i32, i32
  }
  func.func @transform_16(%arg0: i32) -> (i32, i32, i32) {
    %c0_i32 = arith.constant 0 : i32
    %c0_i32_0 = arith.constant 0 : i32
    %c0_i32_1 = arith.constant 0 : i32
    return %arg0, %c0_i32, %c0_i32_0 : i32, i32, i32
  }
  func.func @transform_17(%arg0: i32) -> (i32, i32, i32) {
    %c0_i32 = arith.constant 0 : i32
    %c0_i32_0 = arith.constant 0 : i32
    %c0_i32_1 = arith.constant 0 : i32
    return %arg0, %c0_i32, %c0_i32_0 : i32, i32, i32
  }
  func.func @transform_18(%arg0: i32) -> (i32, i32, i32) {
    %c0_i32 = arith.constant 0 : i32
    %c0_i32_0 = arith.constant 0 : i32
    %c0_i32_1 = arith.constant 0 : i32
    return %arg0, %c0_i32, %c0_i32_0 : i32, i32, i32
  }
  func.func @transform_19(%arg0: i32) -> (i32, i32, i32) {
    %c0_i32 = arith.constant 0 : i32
    %c0_i32_0 = arith.constant 0 : i32
    %c0_i32_1 = arith.constant 0 : i32
    return %arg0, %c0_i32, %c0_i32_0 : i32, i32, i32
  }
  func.func @transform_20(%arg0: i32) -> (i32, i32, i32) {
    %c0_i32 = arith.constant 0 : i32
    %c0_i32_0 = arith.constant 0 : i32
    %c0_i32_1 = arith.constant 0 : i32
    return %arg0, %c0_i32, %c0_i32_0 : i32, i32, i32
  }
  func.func @transform_21(%arg0: i32) -> (i32, i32, i32) {
    %c0_i32 = arith.constant 0 : i32
    %c0_i32_0 = arith.constant 0 : i32
    %c0_i32_1 = arith.constant 0 : i32
    return %arg0, %c0_i32, %c0_i32_0 : i32, i32, i32
  }
  func.func @transform_22(%arg0: i32) -> (i32, i32, i32) {
    %c0_i32 = arith.constant 0 : i32
    %c0_i32_0 = arith.constant 0 : i32
    %c0_i32_1 = arith.constant 0 : i32
    return %arg0, %c0_i32, %c0_i32_0 : i32, i32, i32
  }
  func.func @transform_23(%arg0: i32) -> (i32, i32) {
    %c0_i32 = arith.constant 0 : i32
    %c0_i32_0 = arith.constant 0 : i32
    %c0_i32_1 = arith.constant 0 : i32
    return %c0_i32, %c0_i32_0 : i32, i32
  }
  func.func @transform_24(%arg0: i32) -> (i32, i32) {
    %c0_i32 = arith.constant 0 : i32
    %c0_i32_0 = arith.constant 0 : i32
    %c0_i32_1 = arith.constant 0 : i32
    return %c0_i32, %c0_i32_0 : i32, i32
  }
  func.func @transform_25(%arg0: i32) -> (i32, i32) {
    %c0_i32 = arith.constant 0 : i32
    %c0_i32_0 = arith.constant 0 : i32
    %c0_i32_1 = arith.constant 0 : i32
    return %c0_i32, %c0_i32_0 : i32, i32
  }
}

</mosaic_0001>

<llo_original>
// kernel: denoising_network_forward.1
$region0: #{denoising_network_forward.1}
  #allocation0 [shape = 'u32[]', space=smem, size = 0x4, offset = 0x4, fixed_abs, tag = 'smem constant byte address 0x4 - core index']
  #allocation1 [shape = 'u32[144,128]{1,0:T(1,128)}', space=vmem, size = 0x12000, scoped, tag = 'internal scratch']
  #allocation2 [shape = 'f32[16,32]{1,0:T(8,128)}', space=vmem, size = 0x2000, scoped, tag = 'scratch operand']
  %s0 = inlined_call_operand.vmem [shape: f32[16,8], index: 0, kind: input, shape index: {}]
  %s1 = inlined_call_operand.vmem [shape: s8[16,16], index: 1, kind: input, shape index: {}]
  %s2 = inlined_call_operand.vmem [shape: f32[16,1], index: 2, kind: input, shape index: {}]
  %s3 = inlined_call_operand.vmem [shape: f32[2,1,32], index: 3, kind: input, shape index: {}]
  %s4 = inlined_call_operand.vmem [shape: bf16[8,32], index: 4, kind: input, shape index: {}]
  %s5 = inlined_call_operand.vmem [shape: f32[1,32], index: 5, kind: input, shape index: {}]
  %s6 = inlined_call_operand.vmem [shape: f32[2,1,32], index: 6, kind: input, shape index: {}]
  %s7 = inlined_call_operand.vmem [shape: f32[2,1,32], index: 7, kind: input, shape index: {}]
  %s8 = inlined_call_operand.vmem [shape: f32[2,1,32], index: 8, kind: input, shape index: {}]
  %s9 = inlined_call_operand.vmem [shape: bf16[2,32,32], index: 9, kind: input, shape index: {}]
  %s10 = inlined_call_operand.vmem [shape: f32[2,1,32], index: 10, kind: input, shape index: {}]
  %s11 = inlined_call_operand.vmem [shape: bf16[2,32,32], index: 11, kind: input, shape index: {}]
  %s12 = inlined_call_operand.vmem [shape: f32[2,1,32], index: 12, kind: input, shape index: {}]
  %s13 = inlined_call_operand.vmem [shape: bf16[2,32,32], index: 13, kind: input, shape index: {}]
  %s14 = inlined_call_operand.vmem [shape: f32[2,1,32], index: 14, kind: input, shape index: {}]
  %s15 = inlined_call_operand.vmem [shape: bf16[2,32,32], index: 15, kind: input, shape index: {}]
  %s16 = inlined_call_operand.vmem [shape: f32[2,1,32], index: 16, kind: input, shape index: {}]
  %s17 = inlined_call_operand.vmem [shape: f32[2,1,32], index: 17, kind: input, shape index: {}]
  %s18 = inlined_call_operand.vmem [shape: f32[2,1,32], index: 18, kind: input, shape index: {}]
  %s19 = inlined_call_operand.vmem [shape: bf16[2,32,128], index: 19, kind: input, shape index: {}]
  %s20 = inlined_call_operand.vmem [shape: f32[2,1,128], index: 20, kind: input, shape index: {}]
  %s21 = inlined_call_operand.vmem [shape: bf16[2,128,32], index: 21, kind: input, shape index: {}]
  %s22 = inlined_call_operand.vmem [shape: f32[2,1,32], index: 22, kind: input, shape index: {}]
  %s23 = inlined_call_operand.vmem [shape: bf16[32,128], index: 23, kind: input, shape index: {}]
  %s24 = inlined_call_operand.vmem [shape: f32[1,128], index: 24, kind: input, shape index: {}]
  %s25 = inlined_call_operand.vmem [shape: f32[16,128], index: 25, kind: output, shape index: {}]
  %s26 = sld [smem:[#allocation0]]
  $region141: #{denoising_network_forward.1} parent=0
    _
  %s28 = ssub.s32 1, %s26
  %s29 = scalar_select 0, %s28, %s26
  loop: start=0, step=1, limit=4
  $region2: #{denoising_network_forward.1} parent=0 // loop_pre_header
    _
  $region3: #{denoising_network_forward.1} parent=0 // loop_header
    %s31 = sphi 0, %s35
    %p32 = scmp.ge.s32.totalorder %s31, 4
    %s39 = sphi 0, %s39
    %s41 = sphi 0, %s39
    %s42 = sphi 0, %s41
    %s56 = sphi 0, %s42
    %s60 = sphi 0, %s60
    %s62 = sphi 0, %s60
    %s63 = sphi 0, %s62
    %s77 = sphi 0, %s63
    %s81 = sphi 0, %s81
    %s83 = sphi 0, %s81
    %s84 = sphi 0, %s83
    %s98 = sphi 0, %s84
    %s104 = sphi 0, %s106
    %s107 = sphi 0, %s104
    %s108 = sphi 0, %s107
    %s124 = sphi 0, %s108
    %s128 = sphi 0, %s128
    %s130 = sphi 0, %s128
    %s131 = sphi 0, %s130
    %s145 = sphi 0, %s131
    %s149 = sphi 0, %s149
    %s151 = sphi 0, %s149
    %s152 = sphi 0, %s151
    %s166 = sphi 0, %s152
    %s172 = sphi 0, %s174
    %s175 = sphi 0, %s172
    %s176 = sphi 0, %s175
    %s192 = sphi 0, %s176
    %s198 = sphi 0, %s200
    %s201 = sphi 0, %s198
    %s202 = sphi 0, %s201
    %s218 = sphi 0, %s202
    %s224 = sphi 0, %s226
    %s227 = sphi 0, %s224
    %s228 = sphi 0, %s227
    %s244 = sphi 0, %s228
    %s250 = sphi 0, %s252
    %s253 = sphi 0, %s250
    %s254 = sphi 0, %s253
    %s270 = sphi 0, %s254
    %s276 = sphi 0, %s278
    %s279 = sphi 0, %s276
    %s280 = sphi 0, %s279
    %s296 = sphi 0, %s280
    %s302 = sphi 0, %s304
    %s305 = sphi 0, %s302
    %s306 = sphi 0, %s305
    %s322 = sphi 0, %s306
    %s328 = sphi 0, %s330
    %s331 = sphi 0, %s328
    %s332 = sphi 0, %s331
    %s348 = sphi 0, %s332
    %s354 = sphi 0, %s356
    %s357 = sphi 0, %s354
    %s358 = sphi 0, %s357
    %s374 = sphi 0, %s358
    %s380 = sphi 0, %s382
    %s383 = sphi 0, %s380
    %s384 = sphi 0, %s383
    %s400 = sphi 0, %s384
    %s406 = sphi 0, %s408
    %s409 = sphi 0, %s406
    %s410 = sphi 0, %s409
    %s426 = sphi 0, %s410
    %s432 = sphi 0, %s434
    %s435 = sphi 0, %s432
    %s436 = sphi 0, %s435
    %s452 = sphi 0, %s436
    %s458 = sphi 0, %s460
    %s461 = sphi 0, %s458
    %s462 = sphi 0, %s461
    %s478 = sphi 0, %s462
    %s484 = sphi 0, %s486
    %s487 = sphi 0, %s484
    %s488 = sphi 0, %s487
    %s504 = sphi 0, %s488
    %s510 = sphi 0, %s512
    %s513 = sphi 0, %s510
    %s514 = sphi 0, %s513
    %s530 = sphi 0, %s514
    %s536 = sphi 0, %s538
    %s539 = sphi 0, %s536
    %s540 = sphi 0, %s539
    %s556 = sphi 0, %s540
    %s562 = sphi 0, %s564
    %s565 = sphi 0, %s562
    %s566 = sphi 0, %s565
    %s582 = sphi 0, %s566
    %s588 = sphi 0, %s590
    %s591 = sphi 0, %s588
    %s592 = sphi 0, %s591
    %s608 = sphi 0, %s592
    %s612 = sphi 0, %s612
    %s614 = sphi 0, %s612
    %s615 = sphi 0, %s614
    %s629 = sphi 0, %s615
    %s633 = sphi 0, %s633
    %s635 = sphi 0, %s633
    %s636 = sphi 0, %s635
    %s650 = sphi 0, %s636
    %s654 = sphi 0, %s654
    %s656 = sphi 0, %s654
    %s657 = sphi 0, %s656
    %s671 = sphi 0, %s657
  $region4: #{denoising_network_forward.1} parent=0 // loop_header_branch
    %34 = sbr.rel (%p32) target = $region8
  $region5: #{denoising_network_forward.1} parent=0 // loop_body
    %s36 = ssub.s32 %s31, 1
    %s37 = ssub.s32 %s31, 2
    %s38 = sadd.s32 %s31, 1
    %s40 = sadd.s32 %s39, 1
    %p43 = scmp.eq.s32.totalorder %s31, 1
    %p44 = scmp.ne.s32.totalorder %s39, %s41
    %p45 = scmp.eq.s32.totalorder %s31, 0
    %p46 = por %p44, %p45
    %p47 = scmp.ne.s32.totalorder %s39, %s41
    %p48 = scmp.eq.s32.totalorder %s36, 1
    %p49 = por %p47, %p48
    %p50 = scmp.ne.s32.totalorder %s41, %s42
    %p51 = scmp.eq.s32.totalorder %s36, 0
    %p52 = por %p50, %p51
    %p53 = scmp.ne.s32.totalorder %s41, %s42
    %p54 = scmp.eq.s32.totalorder %s37, 1
    %p55 = por %p53, %p54
    %p57 = scmp.ne.s32.totalorder %s42, %s56
    %p58 = scmp.eq.s32.totalorder %s37, 0
    %p59 = por %p57, %p58
    %s61 = sadd.s32 %s60, 1
    %p64 = scmp.eq.s32.totalorder %s31, 1
    %p65 = scmp.ne.s32.totalorder %s60, %s62
    %p66 = scmp.eq.s32.totalorder %s31, 0
    %p67 = por %p65, %p66
    %p68 = scmp.ne.s32.totalorder %s60, %s62
    %p69 = scmp.eq.s32.totalorder %s36, 1
    %p70 = por %p68, %p69
    %p71 = scmp.ne.s32.totalorder %s62, %s63
    %p72 = scmp.eq.s32.totalorder %s36, 0
    %p73 = por %p71, %p72
    %p74 = scmp.ne.s32.totalorder %s62, %s63
    %p75 = scmp.eq.s32.totalorder %s37, 1
    %p76 = por %p74, %p75
    %p78 = scmp.ne.s32.totalorder %s63, %s77
    %p79 = scmp.eq.s32.totalorder %s37, 0
    %p80 = por %p78, %p79
    %s82 = sadd.s32 %s81, 1
    %p85 = scmp.eq.s32.totalorder %s31, 1
    %p86 = scmp.ne.s32.totalorder %s81, %s83
    %p87 = scmp.eq.s32.totalorder %s31, 0
    %p88 = por %p86, %p87
    %p89 = scmp.ne.s32.totalorder %s81, %s83
    %p90 = scmp.eq.s32.totalorder %s36, 1
    %p91 = por %p89, %p90
    %p92 = scmp.ne.s32.totalorder %s83, %s84
    %p93 = scmp.eq.s32.totalorder %s36, 0
    %p94 = por %p92, %p93
    %p95 = scmp.ne.s32.totalorder %s83, %s84
    %p96 = scmp.eq.s32.totalorder %s37, 1
    %p97 = por %p95, %p96
    %p99 = scmp.ne.s32.totalorder %s84, %s98
    %p100 = scmp.eq.s32.totalorder %s37, 0
    %p101 = por %p99, %p100
    %s102 = ssub.s32 %s31, %s38
    %p103 = scmp.eq.s32.totalorder %s102, 0
    %s105 = sadd.s32 %s104, 1
    %s106 = scalar_select %p103, %s104, %s105
    %p109 = pneg %p103
    %p110 = scmp.eq.s32.totalorder %s31, 1
    %p111 = por %p109, %p110
    %p112 = scmp.ne.s32.totalorder %s104, %s107
    %p113 = scmp.eq.s32.totalorder %s31, 0
    %p114 = por %p112, %p113
    %p115 = scmp.ne.s32.totalorder %s104, %s107
    %p116 = scmp.eq.s32.totalorder %s36, 1
    %p117 = por %p115, %p116
    %p118 = scmp.ne.s32.totalorder %s107, %s108
    %p119 = scmp.eq.s32.totalorder %s36, 0
    %p120 = por %p118, %p119
    %p121 = scmp.ne.s32.totalorder %s107, %s108
    %p122 = scmp.eq.s32.totalorder %s37, 1
    %p123 = por %p121, %p122
    %p125 = scmp.ne.s32.totalorder %s108, %s124
    %p126 = scmp.eq.s32.totalorder %s37, 0
    %p127 = por %p125, %p126
    %s129 = sadd.s32 %s128, 1
    %p132 = scmp.eq.s32.totalorder %s31, 1
    %p133 = scmp.ne.s32.totalorder %s128, %s130
    %p134 = scmp.eq.s32.totalorder %s31, 0
    %p135 = por %p133, %p134
    %p136 = scmp.ne.s32.totalorder %s128, %s130
    %p137 = scmp.eq.s32.totalorder %s36, 1
    %p138 = por %p136, %p137
    %p139 = scmp.ne.s32.totalorder %s130, %s131
    %p140 = scmp.eq.s32.totalorder %s36, 0
    %p141 = por %p139, %p140
    %p142 = scmp.ne.s32.totalorder %s130, %s131
    %p143 = scmp.eq.s32.totalorder %s37, 1
    %p144 = por %p142, %p143
    %p146 = scmp.ne.s32.totalorder %s131, %s145
    %p147 = scmp.eq.s32.totalorder %s37, 0
    %p148 = por %p146, %p147
    %s150 = sadd.s32 %s149, 1
    %p153 = scmp.eq.s32.totalorder %s31, 1
    %p154 = scmp.ne.s32.totalorder %s149, %s151
    %p155 = scmp.eq.s32.totalorder %s31, 0
    %p156 = por %p154, %p155
    %p157 = scmp.ne.s32.totalorder %s149, %s151
    %p158 = scmp.eq.s32.totalorder %s36, 1
    %p159 = por %p157, %p158
    %p160 = scmp.ne.s32.totalorder %s151, %s152
    %p161 = scmp.eq.s32.totalorder %s36, 0
    %p162 = por %p160, %p161
    %p163 = scmp.ne.s32.totalorder %s151, %s152
    %p164 = scmp.eq.s32.totalorder %s37, 1
    %p165 = por %p163, %p164
    %p167 = scmp.ne.s32.totalorder %s152, %s166
    %p168 = scmp.eq.s32.totalorder %s37, 0
    %p169 = por %p167, %p168
    %s170 = ssub.s32 %s31, %s38
    %p171 = scmp.eq.s32.totalorder %s170, 0
    %s173 = sadd.s32 %s172, 1
    %s174 = scalar_select %p171, %s172, %s173
    %p177 = pneg %p171
    %p178 = scmp.eq.s32.totalorder %s31, 1
    %p179 = por %p177, %p178
    %p180 = scmp.ne.s32.totalorder %s172, %s175
    %p181 = scmp.eq.s32.totalorder %s31, 0
    %p182 = por %p180, %p181
    %p183 = scmp.ne.s32.totalorder %s172, %s175
    %p184 = scmp.eq.s32.totalorder %s36, 1
    %p185 = por %p183, %p184
    %p186 = scmp.ne.s32.totalorder %s175, %s176
    %p187 = scmp.eq.s32.totalorder %s36, 0
    %p188 = por %p186, %p187
    %p189 = scmp.ne.s32.totalorder %s175, %s176
    %p190 = scmp.eq.s32.totalorder %s37, 1
    %p191 = por %p189, %p190
    %p193 = scmp.ne.s32.totalorder %s176, %s192
    %p194 = scmp.eq.s32.totalorder %s37, 0
    %p195 = por %p193, %p194
    %s196 = ssub.s32 %s31, %s38
    %p197 = scmp.eq.s32.totalorder %s196, 0
    %s199 = sadd.s32 %s198, 1
    %s200 = scalar_select %p197, %s198, %s199
    %p203 = pneg %p197
    %p204 = scmp.eq.s32.totalorder %s31, 1
    %p205 = por %p203, %p204
    %p206 = scmp.ne.s32.totalorder %s198, %s201
    %p207 = scmp.eq.s32.totalorder %s31, 0
    %p208 = por %p206, %p207
    %p209 = scmp.ne.s32.totalorder %s198, %s201
    %p210 = scmp.eq.s32.totalorder %s36, 1
    %p211 = por %p209, %p210
    %p212 = scmp.ne.s32.totalorder %s201, %s202
    %p213 = scmp.eq.s32.totalorder %s36, 0
    %p214 = por %p212, %p213
    %p215 = scmp.ne.s32.totalorder %s201, %s202
    %p216 = scmp.eq.s32.totalorder %s37, 1
    %p217 = por %p215, %p216
    %p219 = scmp.ne.s32.totalorder %s202, %s218
    %p220 = scmp.eq.s32.totalorder %s37, 0
    %p221 = por %p219, %p220
    %s222 = ssub.s32 %s31, %s38
    %p223 = scmp.eq.s32.totalorder %s222, 0
    %s225 = sadd.s32 %s224, 1
    %s226 = scalar_select %p223, %s224, %s225
    %p229 = pneg %p223
    %p230 = scmp.eq.s32.totalorder %s31, 1
    %p231 = por %p229, %p230
    %p232 = scmp.ne.s32.totalorder %s224, %s227
    %p233 = scmp.eq.s32.totalorder %s31, 0
    %p234 = por %p232, %p233
    %p235 = scmp.ne.s32.totalorder %s224, %s227
    %p236 = scmp.eq.s32.totalorder %s36, 1
    %p237 = por %p235, %p236
    %p238 = scmp.ne.s32.totalorder %s227, %s228
    %p239 = scmp.eq.s32.totalorder %s36, 0
    %p240 = por %p238, %p239
    %p241 = scmp.ne.s32.totalorder %s227, %s228
    %p242 = scmp.eq.s32.totalorder %s37, 1
    %p243 = por %p241, %p242
    %p245 = scmp.ne.s32.totalorder %s228, %s244
    %p246 = scmp.eq.s32.totalorder %s37, 0
    %p247 = por %p245, %p246
    %s248 = ssub.s32 %s31, %s38
    %p249 = scmp.eq.s32.totalorder %s248, 0
    %s251 = sadd.s32 %s250, 1
    %s252 = scalar_select %p249, %s250, %s251
    %p255 = pneg %p249
    %p256 = scmp.eq.s32.totalorder %s31, 1
    %p257 = por %p255, %p256
    %p258 = scmp.ne.s32.totalorder %s250, %s253
    %p259 = scmp.eq.s32.totalorder %s31, 0
    %p260 = por %p258, %p259
    %p261 = scmp.ne.s32.totalorder %s250, %s253
    %p262 = scmp.eq.s32.totalorder %s36, 1
    %p263 = por %p261, %p262
    %p264 = scmp.ne.s32.totalorder %s253, %s254
    %p265 = scmp.eq.s32.totalorder %s36, 0
    %p266 = por %p264, %p265
    %p267 = scmp.ne.s32.totalorder %s253, %s254
    %p268 = scmp.eq.s32.totalorder %s37, 1
    %p269 = por %p267, %p268
    %p271 = scmp.ne.s32.totalorder %s254, %s270
    %p272 = scmp.eq.s32.totalorder %s37, 0
    %p273 = por %p271, %p272
    %s274 = ssub.s32 %s31, %s38
    %p275 = scmp.eq.s32.totalorder %s274, 0
    %s277 = sadd.s32 %s276, 1
    %s278 = scalar_select %p275, %s276, %s277
    %p281 = pneg %p275
    %p282 = scmp.eq.s32.totalorder %s31, 1
    %p283 = por %p281, %p282
    %p284 = scmp.ne.s32.totalorder %s276, %s279
    %p285 = scmp.eq.s32.totalorder %s31, 0
    %p286 = por %p284, %p285
    %p287 = scmp.ne.s32.totalorder %s276, %s279
    %p288 = scmp.eq.s32.totalorder %s36, 1
    %p289 = por %p287, %p288
    %p290 = scmp.ne.s32.totalorder %s279, %s280
    %p291 = scmp.eq.s32.totalorder %s36, 0
    %p292 = por %p290, %p291
    %p293 = scmp.ne.s32.totalorder %s279, %s280
    %p294 = scmp.eq.s32.totalorder %s37, 1
    %p295 = por %p293, %p294
    %p297 = scmp.ne.s32.totalorder %s280, %s296
    %p298 = scmp.eq.s32.totalorder %s37, 0
    %p299 = por %p297, %p298
    %s300 = ssub.s32 %s31, %s38
    %p301 = scmp.eq.s32.totalorder %s300, 0
    %s303 = sadd.s32 %s302, 1
    %s304 = scalar_select %p301, %s302, %s303
    %p307 = pneg %p301
    %p308 = scmp.eq.s32.totalorder %s31, 1
    %p309 = por %p307, %p308
    %p310 = scmp.ne.s32.totalorder %s302, %s305
    %p311 = scmp.eq.s32.totalorder %s31, 0
    %p312 = por %p310, %p311
    %p313 = scmp.ne.s32.totalorder %s302, %s305
    %p314 = scmp.eq.s32.totalorder %s36, 1
    %p315 = por %p313, %p314
    %p316 = scmp.ne.s32.totalorder %s305, %s306
    %p317 = scmp.eq.s32.totalorder %s36, 0
    %p318 = por %p316, %p317
    %p319 = scmp.ne.s32.totalorder %s305, %s306
    %p320 = scmp.eq.s32.totalorder %s37, 1
    %p321 = por %p319, %p320
    %p323 = scmp.ne.s32.totalorder %s306, %s322
    %p324 = scmp.eq.s32.totalorder %s37, 0
    %p325 = por %p323, %p324
    %s326 = ssub.s32 %s31, %s38
    %p327 = scmp.eq.s32.totalorder %s326, 0
    %s329 = sadd.s32 %s328, 1
    %s330 = scalar_select %p327, %s328, %s329
    %p333 = pneg %p327
    %p334 = scmp.eq.s32.totalorder %s31, 1
    %p335 = por %p333, %p334
    %p336 = scmp.ne.s32.totalorder %s328, %s331
    %p337 = scmp.eq.s32.totalorder %s31, 0
    %p338 = por %p336, %p337
    %p339 = scmp.ne.s32.totalorder %s328, %s331
    %p340 = scmp.eq.s32.totalorder %s36, 1
    %p341 = por %p339, %p340
    %p342 = scmp.ne.s32.totalorder %s331, %s332
    %p343 = scmp.eq.s32.totalorder %s36, 0
    %p344 = por %p342, %p343
    %p345 = scmp.ne.s32.totalorder %s331, %s332
    %p346 = scmp.eq.s32.totalorder %s37, 1
    %p347 = por %p345, %p346
    %p349 = scmp.ne.s32.totalorder %s332, %s348
    %p350 = scmp.eq.s32.totalorder %s37, 0
    %p351 = por %p349, %p350
    %s352 = ssub.s32 %s31, %s38
    %p353 = scmp.eq.s32.totalorder %s352, 0
    %s355 = sadd.s32 %s354, 1
    %s356 = scalar_select %p353, %s354, %s355
    %p359 = pneg %p353
    %p360 = scmp.eq.s32.totalorder %s31, 1
    %p361 = por %p359, %p360
    %p362 = scmp.ne.s32.totalorder %s354, %s357
    %p363 = scmp.eq.s32.totalorder %s31, 0
    %p364 = por %p362, %p363
    %p365 = scmp.ne.s32.totalorder %s354, %s357
    %p366 = scmp.eq.s32.totalorder %s36, 1
    %p367 = por %p365, %p366
    %p368 = scmp.ne.s32.totalorder %s357, %s358
    %p369 = scmp.eq.s32.totalorder %s36, 0
    %p370 = por %p368, %p369
    %p371 = scmp.ne.s32.totalorder %s357, %s358
    %p372 = scmp.eq.s32.totalorder %s37, 1
    %p373 = por %p371, %p372
    %p375 = scmp.ne.s32.totalorder %s358, %s374
    %p376 = scmp.eq.s32.totalorder %s37, 0
    %p377 = por %p375, %p376
    %s378 = ssub.s32 %s31, %s38
    %p379 = scmp.eq.s32.totalorder %s378, 0
    %s381 = sadd.s32 %s380, 1
    %s382 = scalar_select %p379, %s380, %s381
    %p385 = pneg %p379
    %p386 = scmp.eq.s32.totalorder %s31, 1
    %p387 = por %p385, %p386
    %p388 = scmp.ne.s32.totalorder %s380, %s383
    %p389 = scmp.eq.s32.totalorder %s31, 0
    %p390 = por %p388, %p389
    %p391 = scmp.ne.s32.totalorder %s380, %s383
    %p392 = scmp.eq.s32.totalorder %s36, 1
    %p393 = por %p391, %p392
    %p394 = scmp.ne.s32.totalorder %s383, %s384
    %p395 = scmp.eq.s32.totalorder %s36, 0
    %p396 = por %p394, %p395
    %p397 = scmp.ne.s32.totalorder %s383, %s384
    %p398 = scmp.eq.s32.totalorder %s37, 1
    %p399 = por %p397, %p398
    %p401 = scmp.ne.s32.totalorder %s384, %s400
    %p402 = scmp.eq.s32.totalorder %s37, 0
    %p403 = por %p401, %p402
    %s404 = ssub.s32 %s31, %s38
    %p405 = scmp.eq.s32.totalorder %s404, 0
    %s407 = sadd.s32 %s406, 1
    %s408 = scalar_select %p405, %s406, %s407
    %p411 = pneg %p405
    %p412 = scmp.eq.s32.totalorder %s31, 1
    %p413 = por %p411, %p412
    %p414 = scmp.ne.s32.totalorder %s406, %s409
    %p415 = scmp.eq.s32.totalorder %s31, 0
    %p416 = por %p414, %p415
    %p417 = scmp.ne.s32.totalorder %s406, %s409
    %p418 = scmp.eq.s32.totalorder %s36, 1
    %p419 = por %p417, %p418
    %p420 = scmp.ne.s32.totalorder %s409, %s410
    %p421 = scmp.eq.s32.totalorder %s36, 0
    %p422 = por %p420, %p421
    %p423 = scmp.ne.s32.totalorder %s409, %s410
    %p424 = scmp.eq.s32.totalorder %s37, 1
    %p425 = por %p423, %p424
    %p427 = scmp.ne.s32.totalorder %s410, %s426
    %p428 = scmp.eq.s32.totalorder %s37, 0
    %p429 = por %p427, %p428
    %s430 = ssub.s32 %s31, %s38
    %p431 = scmp.eq.s32.totalorder %s430, 0
    %s433 = sadd.s32 %s432, 1
    %s434 = scalar_select %p431, %s432, %s433
    %p437 = pneg %p431
    %p438 = scmp.eq.s32.totalorder %s31, 1
    %p439 = por %p437, %p438
    %p440 = scmp.ne.s32.totalorder %s432, %s435
    %p441 = scmp.eq.s32.totalorder %s31, 0
    %p442 = por %p440, %p441
    %p443 = scmp.ne.s32.totalorder %s432, %s435
    %p444 = scmp.eq.s32.totalorder %s36, 1
    %p445 = por %p443, %p444
    %p446 = scmp.ne.s32.totalorder %s435, %s436
    %p447 = scmp.eq.s32.totalorder %s36, 0
    %p448 = por %p446, %p447
    %p449 = scmp.ne.s32.totalorder %s435, %s436
    %p450 = scmp.eq.s32.totalorder %s37, 1
    %p451 = por %p449, %p450
    %p453 = scmp.ne.s32.totalorder %s436, %s452
    %p454 = scmp.eq.s32.totalorder %s37, 0
    %p455 = por %p453, %p454
    %s456 = ssub.s32 %s31, %s38
    %p457 = scmp.eq.s32.totalorder %s456, 0
    %s459 = sadd.s32 %s458, 1
    %s460 = scalar_select %p457, %s458, %s459
    %p463 = pneg %p457
    %p464 = scmp.eq.s32.totalorder %s31, 1
    %p465 = por %p463, %p464
    %p466 = scmp.ne.s32.totalorder %s458, %s461
    %p467 = scmp.eq.s32.totalorder %s31, 0
    %p468 = por %p466, %p467
    %p469 = scmp.ne.s32.totalorder %s458, %s461
    %p470 = scmp.eq.s32.totalorder %s36, 1
    %p471 = por %p469, %p470
    %p472 = scmp.ne.s32.totalorder %s461, %s462
    %p473 = scmp.eq.s32.totalorder %s36, 0
    %p474 = por %p472, %p473
    %p475 = scmp.ne.s32.totalorder %s461, %s462
    %p476 = scmp.eq.s32.totalorder %s37, 1
    %p477 = por %p475, %p476
    %p479 = scmp.ne.s32.totalorder %s462, %s478
    %p480 = scmp.eq.s32.totalorder %s37, 0
    %p481 = por %p479, %p480
    %s482 = ssub.s32 %s31, %s38
    %p483 = scmp.eq.s32.totalorder %s482, 0
    %s485 = sadd.s32 %s484, 1
    %s486 = scalar_select %p483, %s484, %s485
    %p489 = pneg %p483
    %p490 = scmp.eq.s32.totalorder %s31, 1
    %p491 = por %p489, %p490
    %p492 = scmp.ne.s32.totalorder %s484, %s487
    %p493 = scmp.eq.s32.totalorder %s31, 0
    %p494 = por %p492, %p493
    %p495 = scmp.ne.s32.totalorder %s484, %s487
    %p496 = scmp.eq.s32.totalorder %s36, 1
    %p497 = por %p495, %p496
    %p498 = scmp.ne.s32.totalorder %s487, %s488
    %p499 = scmp.eq.s32.totalorder %s36, 0
    %p500 = por %p498, %p499
    %p501 = scmp.ne.s32.totalorder %s487, %s488
    %p502 = scmp.eq.s32.totalorder %s37, 1
    %p503 = por %p501, %p502
    %p505 = scmp.ne.s32.totalorder %s488, %s504
    %p506 = scmp.eq.s32.totalorder %s37, 0
    %p507 = por %p505, %p506
    %s508 = ssub.s32 %s31, %s38
    %p509 = scmp.eq.s32.totalorder %s508, 0
    %s511 = sadd.s32 %s510, 1
    %s512 = scalar_select %p509, %s510, %s511
    %p515 = pneg %p509
    %p516 = scmp.eq.s32.totalorder %s31, 1
    %p517 = por %p515, %p516
    %p518 = scmp.ne.s32.totalorder %s510, %s513
    %p519 = scmp.eq.s32.totalorder %s31, 0
    %p520 = por %p518, %p519
    %p521 = scmp.ne.s32.totalorder %s510, %s513
    %p522 = scmp.eq.s32.totalorder %s36, 1
    %p523 = por %p521, %p522
    %p524 = scmp.ne.s32.totalorder %s513, %s514
    %p525 = scmp.eq.s32.totalorder %s36, 0
    %p526 = por %p524, %p525
    %p527 = scmp.ne.s32.totalorder %s513, %s514
    %p528 = scmp.eq.s32.totalorder %s37, 1
    %p529 = por %p527, %p528
    %p531 = scmp.ne.s32.totalorder %s514, %s530
    %p532 = scmp.eq.s32.totalorder %s37, 0
    %p533 = por %p531, %p532
    %s534 = ssub.s32 %s31, %s38
    %p535 = scmp.eq.s32.totalorder %s534, 0
    %s537 = sadd.s32 %s536, 1
    %s538 = scalar_select %p535, %s536, %s537
    %p541 = pneg %p535
    %p542 = scmp.eq.s32.totalorder %s31, 1
    %p543 = por %p541, %p542
    %p544 = scmp.ne.s32.totalorder %s536, %s539
    %p545 = scmp.eq.s32.totalorder %s31, 0
    %p546 = por %p544, %p545
    %p547 = scmp.ne.s32.totalorder %s536, %s539
    %p548 = scmp.eq.s32.totalorder %s36, 1
    %p549 = por %p547, %p548
    %p550 = scmp.ne.s32.totalorder %s539, %s540
    %p551 = scmp.eq.s32.totalorder %s36, 0
    %p552 = por %p550, %p551
    %p553 = scmp.ne.s32.totalorder %s539, %s540
    %p554 = scmp.eq.s32.totalorder %s37, 1
    %p555 = por %p553, %p554
    %p557 = scmp.ne.s32.totalorder %s540, %s556
    %p558 = scmp.eq.s32.totalorder %s37, 0
    %p559 = por %p557, %p558
    %s560 = ssub.s32 %s31, %s38
    %p561 = scmp.eq.s32.totalorder %s560, 0
    %s563 = sadd.s32 %s562, 1
    %s564 = scalar_select %p561, %s562, %s563
    %p567 = pneg %p561
    %p568 = scmp.eq.s32.totalorder %s31, 1
    %p569 = por %p567, %p568
    %p570 = scmp.ne.s32.totalorder %s562, %s565
    %p571 = scmp.eq.s32.totalorder %s31, 0
    %p572 = por %p570, %p571
    %p573 = scmp.ne.s32.totalorder %s562, %s565
    %p574 = scmp.eq.s32.totalorder %s36, 1
    %p575 = por %p573, %p574
    %p576 = scmp.ne.s32.totalorder %s565, %s566
    %p577 = scmp.eq.s32.totalorder %s36, 0
    %p578 = por %p576, %p577
    %p579 = scmp.ne.s32.totalorder %s565, %s566
    %p580 = scmp.eq.s32.totalorder %s37, 1
    %p581 = por %p579, %p580
    %p583 = scmp.ne.s32.totalorder %s566, %s582
    %p584 = scmp.eq.s32.totalorder %s37, 0
    %p585 = por %p583, %p584
    %s586 = ssub.s32 %s31, %s38
    %p587 = scmp.eq.s32.totalorder %s586, 0
    %s589 = sadd.s32 %s588, 1
    %s590 = scalar_select %p587, %s588, %s589
    %p593 = pneg %p587
    %p594 = scmp.eq.s32.totalorder %s31, 1
    %p595 = por %p593, %p594
    %p596 = scmp.ne.s32.totalorder %s588, %s591
    %p597 = scmp.eq.s32.totalorder %s31, 0
    %p598 = por %p596, %p597
    %p599 = scmp.ne.s32.totalorder %s588, %s591
    %p600 = scmp.eq.s32.totalorder %s36, 1
    %p601 = por %p599, %p600
    %p602 = scmp.ne.s32.totalorder %s591, %s592
    %p603 = scmp.eq.s32.totalorder %s36, 0
    %p604 = por %p602, %p603
    %p605 = scmp.ne.s32.totalorder %s591, %s592
    %p606 = scmp.eq.s32.totalorder %s37, 1
    %p607 = por %p605, %p606
    %p609 = scmp.ne.s32.totalorder %s592, %s608
    %p610 = scmp.eq.s32.totalorder %s37, 0
    %p611 = por %p609, %p610
    %s613 = sadd.s32 %s612, 1
    %p616 = scmp.eq.s32.totalorder %s31, 1
    %p617 = scmp.ne.s32.totalorder %s612, %s614
    %p618 = scmp.eq.s32.totalorder %s31, 0
    %p619 = por %p617, %p618
    %p620 = scmp.ne.s32.totalorder %s612, %s614
    %p621 = scmp.eq.s32.totalorder %s36, 1
    %p622 = por %p620, %p621
    %p623 = scmp.ne.s32.totalorder %s614, %s615
    %p624 = scmp.eq.s32.totalorder %s36, 0
    %p625 = por %p623, %p624
    %p626 = scmp.ne.s32.totalorder %s614, %s615
    %p627 = scmp.eq.s32.totalorder %s37, 1
    %p628 = por %p626, %p627
    %p630 = scmp.ne.s32.totalorder %s615, %s629
    %p631 = scmp.eq.s32.totalorder %s37, 0
    %p632 = por %p630, %p631
    %s634 = sadd.s32 %s633, 1
    %p637 = scmp.eq.s32.totalorder %s31, 1
    %p638 = scmp.ne.s32.totalorder %s633, %s635
    %p639 = scmp.eq.s32.totalorder %s31, 0
    %p640 = por %p638, %p639
    %p641 = scmp.ne.s32.totalorder %s633, %s635
    %p642 = scmp.eq.s32.totalorder %s36, 1
    %p643 = por %p641, %p642
    %p644 = scmp.ne.s32.totalorder %s635, %s636
    %p645 = scmp.eq.s32.totalorder %s36, 0
    %p646 = por %p644, %p645
    %p647 = scmp.ne.s32.totalorder %s635, %s636
    %p648 = scmp.eq.s32.totalorder %s37, 1
    %p649 = por %p647, %p648
    %p651 = scmp.ne.s32.totalorder %s636, %s650
    %p652 = scmp.eq.s32.totalorder %s37, 0
    %p653 = por %p651, %p652
    %s655 = sadd.s32 %s654, 1
    %p658 = scmp.eq.s32.totalorder %s31, 1
    %p659 = scmp.ne.s32.totalorder %s654, %s656
    %p660 = scmp.eq.s32.totalorder %s31, 0
    %p661 = por %p659, %p660
    %p662 = scmp.ne.s32.totalorder %s654, %s656
    %p663 = scmp.eq.s32.totalorder %s36, 1
    %p664 = por %p662, %p663
    %p665 = scmp.ne.s32.totalorder %s656, %s657
    %p666 = scmp.eq.s32.totalorder %s36, 0
    %p667 = por %p665, %p666
    %p668 = scmp.ne.s32.totalorder %s656, %s657
    %p669 = scmp.eq.s32.totalorder %s37, 1
    %p670 = por %p668, %p669
    %p672 = scmp.ne.s32.totalorder %s657, %s671
    %p673 = scmp.eq.s32.totalorder %s37, 0
    %p674 = por %p672, %p673
    %p675 = scmp.le.s32.totalorder 1, %s31
    %p676 = scmp.lt.s32.totalorder %s31, 3
    %p677 = pnand %p675, %p676
    %p678 = pneg %p677
    // Predicated region
    $region9: #{denoising_network_forward.1} parent=5 // pred_check
      _
    $region10: #{denoising_network_forward.1} parent=5 // pred_check_branch
      %680 = sbr.rel (%p677) target = $region12
    $region11: #{denoising_network_forward.1} parent=5 // pred_region
      %s681 = ssub.s32 %s31, 1
      // Predicated region
      $region13: #{denoising_network_forward.1} parent=11 // pred_check
        %p682 = pneg %p52
      $region14: #{denoising_network_forward.1} parent=11 // pred_check_branch
        %684 = sbr.rel (%p682) target = $region16
      $region15: #{denoising_network_forward.1} parent=11 // pred_region
        _
      $region16: #{denoising_network_forward.1} parent=11 // pred_fallthru
        _
      // Predicated region
      $region17: #{denoising_network_forward.1} parent=11 // pred_check
        %p685 = pneg %p73
      $region18: #{denoising_network_forward.1} parent=11 // pred_check_branch
        %687 = sbr.rel (%p685) target = $region20
      $region19: #{denoising_network_forward.1} parent=11 // pred_region
        _
      $region20: #{denoising_network_forward.1} parent=11 // pred_fallthru
        _
      // Predicated region
      $region21: #{denoising_network_forward.1} parent=11 // pred_check
        %p688 = pneg %p94
      $region22: #{denoising_network_forward.1} parent=11 // pred_check_branch
        %690 = sbr.rel (%p688) target = $region24
      $region23: #{denoising_network_forward.1} parent=11 // pred_region
        _
      $region24: #{denoising_network_forward.1} parent=11 // pred_fallthru
        _
      // Predicated region
      $region25: #{denoising_network_forward.1} parent=11 // pred_check
        %p691 = pneg %p141
      $region26: #{denoising_network_forward.1} parent=11 // pred_check_branch
        %693 = sbr.rel (%p691) target = $region28
      $region27: #{denoising_network_forward.1} parent=11 // pred_region
        _
      $region28: #{denoising_network_forward.1} parent=11 // pred_fallthru
        _
      // Predicated region
      $region29: #{denoising_network_forward.1} parent=11 // pred_check
        %p694 = pneg %p162
      $region30: #{denoising_network_forward.1} parent=11 // pred_check_branch
        %696 = sbr.rel (%p694) target = $region32
      $region31: #{denoising_network_forward.1} parent=11 // pred_region
        _
      $region32: #{denoising_network_forward.1} parent=11 // pred_fallthru
        _
      // Predicated region
      $region33: #{denoising_network_forward.1} parent=11 // pred_check
        %p697 = pneg %p625
      $region34: #{denoising_network_forward.1} parent=11 // pred_check_branch
        %699 = sbr.rel (%p697) target = $region36
      $region35: #{denoising_network_forward.1} parent=11 // pred_region
        _
      $region36: #{denoising_network_forward.1} parent=11 // pred_fallthru
        _
      // Predicated region
      $region37: #{denoising_network_forward.1} parent=11 // pred_check
        %p700 = pneg %p646
      $region38: #{denoising_network_forward.1} parent=11 // pred_check_branch
        %702 = sbr.rel (%p700) target = $region40
      $region39: #{denoising_network_forward.1} parent=11 // pred_region
        _
      $region40: #{denoising_network_forward.1} parent=11 // pred_fallthru
        _
    $region12: #{denoising_network_forward.1} parent=5 // pred_fallthru
      _
    %p703 = scmp.lt.s32.totalorder %s31, 2
    // Predicated region
    $region41: #{denoising_network_forward.1} parent=5 // pred_check
      %p704 = pneg %p703
    $region42: #{denoising_network_forward.1} parent=5 // pred_check_branch
      %706 = sbr.rel (%p704) target = $region44
    $region43: #{denoising_network_forward.1} parent=5 // pred_region
      // Predicated region
      $region45: #{denoising_network_forward.1} parent=43 // pred_check
        %p707 = pneg %p114
      $region46: #{denoising_network_forward.1} parent=43 // pred_check_branch
        %709 = sbr.rel (%p707) target = $region48
      $region47: #{denoising_network_forward.1} parent=43 // pred_region
        %p710 = scmp.lt.s32.totalorder %s31, 1
        %s711 = scalar_select %p710, %s31, 1
        %s712 = scalar_lea.vmem %s3, %s711
      $region48: #{denoising_network_forward.1} parent=43 // pred_fallthru
        _
      // Predicated region
      $region49: #{denoising_network_forward.1} parent=43 // pred_check
        %p713 = pneg %p182
      $region50: #{denoising_network_forward.1} parent=43 // pred_check_branch
        %715 = sbr.rel (%p713) target = $region52
      $region51: #{denoising_network_forward.1} parent=43 // pred_region
        %p716 = scmp.lt.s32.totalorder %s31, 1
        %s717 = scalar_select %p716, %s31, 1
        %s718 = scalar_lea.vmem %s6, %s717
      $region52: #{denoising_network_forward.1} parent=43 // pred_fallthru
        _
      // Predicated region
      $region53: #{denoising_network_forward.1} parent=43 // pred_check
        %p719 = pneg %p208
      $region54: #{denoising_network_forward.1} parent=43 // pred_check_branch
        %721 = sbr.rel (%p719) target = $region56
      $region55: #{denoising_network_forward.1} parent=43 // pred_region
        %p722 = scmp.lt.s32.totalorder %s31, 1
        %s723 = scalar_select %p722, %s31, 1
        %s724 = scalar_lea.vmem %s7, %s723
      $region56: #{denoising_network_forward.1} parent=43 // pred_fallthru
        _
      // Predicated region
      $region57: #{denoising_network_forward.1} parent=43 // pred_check
        %p725 = pneg %p234
      $region58: #{denoising_network_forward.1} parent=43 // pred_check_branch
        %727 = sbr.rel (%p725) target = $region60
      $region59: #{denoising_network_forward.1} parent=43 // pred_region
        %p728 = scmp.lt.s32.totalorder %s31, 1
        %s729 = scalar_select %p728, %s31, 1
        %s730 = scalar_lea.vmem %s8, %s729
      $region60: #{denoising_network_forward.1} parent=43 // pred_fallthru
        _
      // Predicated region
      $region61: #{denoising_network_forward.1} parent=43 // pred_check
        %p731 = pneg %p260
      $region62: #{denoising_network_forward.1} parent=43 // pred_check_branch
        %733 = sbr.rel (%p731) target = $region64
      $region63: #{denoising_network_forward.1} parent=43 // pred_region
        %p734 = scmp.lt.s32.totalorder %s31, 1
        %s735 = scalar_select %p734, %s31, 1
        %s736 = smul.addr %s735, 4
        %s737 = smul.addr %s736, 4
        %s738 = scalar_lea.vmem %s9, %s737
      $region64: #{denoising_network_forward.1} parent=43 // pred_fallthru
        _
      // Predicated region
      $region65: #{denoising_network_forward.1} parent=43 // pred_check
        %p739 = pneg %p286
      $region66: #{denoising_network_forward.1} parent=43 // pred_check_branch
        %741 = sbr.rel (%p739) target = $region68
      $region67: #{denoising_network_forward.1} parent=43 // pred_region
        %p742 = scmp.lt.s32.totalorder %s31, 1
        %s743 = scalar_select %p742, %s31, 1
        %s744 = scalar_lea.vmem %s10, %s743
      $region68: #{denoising_network_forward.1} parent=43 // pred_fallthru
        _
      // Predicated region
      $region69: #{denoising_network_forward.1} parent=43 // pred_check
        %p745 = pneg %p312
      $region70: #{denoising_network_forward.1} parent=43 // pred_check_branch
        %747 = sbr.rel (%p745) target = $region72
      $region71: #{denoising_network_forward.1} parent=43 // pred_region
        %p748 = scmp.lt.s32.totalorder %s31, 1
        %s749 = scalar_select %p748, %s31, 1
        %s750 = smul.addr %s749, 4
        %s751 = smul.addr %s750, 4
        %s752 = scalar_lea.vmem %s11, %s751
      $region72: #{denoising_network_forward.1} parent=43 // pred_fallthru
        _
      // Predicated region
      $region73: #{denoising_network_forward.1} parent=43 // pred_check
        %p753 = pneg %p338
      $region74: #{denoising_network_forward.1} parent=43 // pred_check_branch
        %755 = sbr.rel (%p753) target = $region76
      $region75: #{denoising_network_forward.1} parent=43 // pred_region
        %p756 = scmp.lt.s32.totalorder %s31, 1
        %s757 = scalar_select %p756, %s31, 1
        %s758 = scalar_lea.vmem %s12, %s757
      $region76: #{denoising_network_forward.1} parent=43 // pred_fallthru
        _
      // Predicated region
      $region77: #{denoising_network_forward.1} parent=43 // pred_check
        %p759 = pneg %p364
      $region78: #{denoising_network_forward.1} parent=43 // pred_check_branch
        %761 = sbr.rel (%p759) target = $region80
      $region79: #{denoising_network_forward.1} parent=43 // pred_region
        %p762 = scmp.lt.s32.totalorder %s31, 1
        %s763 = scalar_select %p762, %s31, 1
        %s764 = smul.addr %s763, 4
        %s765 = smul.addr %s764, 4
        %s766 = scalar_lea.vmem %s13, %s765
      $region80: #{denoising_network_forward.1} parent=43 // pred_fallthru
        _
      // Predicated region
      $region81: #{denoising_network_forward.1} parent=43 // pred_check
        %p767 = pneg %p390
      $region82: #{denoising_network_forward.1} parent=43 // pred_check_branch
        %769 = sbr.rel (%p767) target = $region84
      $region83: #{denoising_network_forward.1} parent=43 // pred_region
        %p770 = scmp.lt.s32.totalorder %s31, 1
        %s771 = scalar_select %p770, %s31, 1
        %s772 = scalar_lea.vmem %s14, %s771
      $region84: #{denoising_network_forward.1} parent=43 // pred_fallthru
        _
      // Predicated region
      $region85: #{denoising_network_forward.1} parent=43 // pred_check
        %p773 = pneg %p416
      $region86: #{denoising_network_forward.1} parent=43 // pred_check_branch
        %775 = sbr.rel (%p773) target = $region88
      $region87: #{denoising_network_forward.1} parent=43 // pred_region
        %p776 = scmp.lt.s32.totalorder %s31, 1
        %s777 = scalar_select %p776, %s31, 1
        %s778 = smul.addr %s777, 4
        %s779 = smul.addr %s778, 4
        %s780 = scalar_lea.vmem %s15, %s779
      $region88: #{denoising_network_forward.1} parent=43 // pred_fallthru
        _
      // Predicated region
      $region89: #{denoising_network_forward.1} parent=43 // pred_check
        %p781 = pneg %p442
      $region90: #{denoising_network_forward.1} parent=43 // pred_check_branch
        %783 = sbr.rel (%p781) target = $region92
      $region91: #{denoising_network_forward.1} parent=43 // pred_region
        %p784 = scmp.lt.s32.totalorder %s31, 1
        %s785 = scalar_select %p784, %s31, 1
        %s786 = scalar_lea.vmem %s16, %s785
      $region92: #{denoising_network_forward.1} parent=43 // pred_fallthru
        _
      // Predicated region
      $region93: #{denoising_network_forward.1} parent=43 // pred_check
        %p787 = pneg %p468
      $region94: #{denoising_network_forward.1} parent=43 // pred_check_branch
        %789 = sbr.rel (%p787) target = $region96
      $region95: #{denoising_network_forward.1} parent=43 // pred_region
        %p790 = scmp.lt.s32.totalorder %s31, 1
        %s791 = scalar_select %p790, %s31, 1
        %s792 = scalar_lea.vmem %s17, %s791
      $region96: #{denoising_network_forward.1} parent=43 // pred_fallthru
        _
      // Predicated region
      $region97: #{denoising_network_forward.1} parent=43 // pred_check
        %p793 = pneg %p494
      $region98: #{denoising_network_forward.1} parent=43 // pred_check_branch
        %795 = sbr.rel (%p793) target = $region100
      $region99: #{denoising_network_forward.1} parent=43 // pred_region
        %p796 = scmp.lt.s32.totalorder %s31, 1
        %s797 = scalar_select %p796, %s31, 1
        %s798 = scalar_lea.vmem %s18, %s797
      $region100: #{denoising_network_forward.1} parent=43 // pred_fallthru
        _
      // Predicated region
      $region101: #{denoising_network_forward.1} parent=43 // pred_check
        %p799 = pneg %p520
      $region102: #{denoising_network_forward.1} parent=43 // pred_check_branch
        %801 = sbr.rel (%p799) target = $region104
      $region103: #{denoising_network_forward.1} parent=43 // pred_region
        %p802 = scmp.lt.s32.totalorder %s31, 1
        %s803 = scalar_select %p802, %s31, 1
        %s804 = smul.addr %s803, 4
        %s805 = smul.addr %s804, 4
        %s806 = scalar_lea.vmem %s19, %s805
      $region104: #{denoising_network_forward.1} parent=43 // pred_fallthru
        _
      // Predicated region
      $region105: #{denoising_network_forward.1} parent=43 // pred_check
        %p807 = pneg %p546
      $region106: #{denoising_network_forward.1} parent=43 // pred_check_branch
        %809 = sbr.rel (%p807) target = $region108
      $region107: #{denoising_network_forward.1} parent=43 // pred_region
        %p810 = scmp.lt.s32.totalorder %s31, 1
        %s811 = scalar_select %p810, %s31, 1
        %s812 = scalar_lea.vmem %s20, %s811
      $region108: #{denoising_network_forward.1} parent=43 // pred_fallthru
        _
      // Predicated region
      $region109: #{denoising_network_forward.1} parent=43 // pred_check
        %p813 = pneg %p572
      $region110: #{denoising_network_forward.1} parent=43 // pred_check_branch
        %815 = sbr.rel (%p813) target = $region112
      $region111: #{denoising_network_forward.1} parent=43 // pred_region
        %p816 = scmp.lt.s32.totalorder %s31, 1
        %s817 = scalar_select %p816, %s31, 1
        %s818 = smul.addr %s817, 16
        %s819 = smul.addr %s818, 4
        %s820 = scalar_lea.vmem %s21, %s819
      $region112: #{denoising_network_forward.1} parent=43 // pred_fallthru
        _
      // Predicated region
      $region113: #{denoising_network_forward.1} parent=43 // pred_check
        %p821 = pneg %p598
      $region114: #{denoising_network_forward.1} parent=43 // pred_check_branch
        %823 = sbr.rel (%p821) target = $region116
      $region115: #{denoising_network_forward.1} parent=43 // pred_region
        %p824 = scmp.lt.s32.totalorder %s31, 1
        %s825 = scalar_select %p824, %s31, 1
        %s826 = scalar_lea.vmem %s22, %s825
      $region116: #{denoising_network_forward.1} parent=43 // pred_fallthru
        _
    $region44: #{denoising_network_forward.1} parent=5 // pred_fallthru
      _
    %p827 = scmp.le.s32.totalorder 1, %s31
    %p828 = scmp.lt.s32.totalorder %s31, 3
    %p829 = pnand %p827, %p828
    %p830 = pneg %p829
    // Predicated region
    $region117: #{denoising_network_forward.1} parent=5 // pred_check
      _
    $region118: #{denoising_network_forward.1} parent=5 // pred_check_branch
      %832 = sbr.rel (%p829) target = $region120
    $region119: #{denoising_network_forward.1} parent=5 // pred_region
      %s833 = ssub.s32 %s31, 1
      %p834 = pneg %p52
      %p835 = pneg %p49
      %p836 = pneg %p73
      %p837 = pneg %p70
      %p838 = pneg %p94
      %p839 = pneg %p91
      %p840 = scmp.lt.s32.totalorder %s36, 1
      %s841 = scalar_select %p840, %s36, 1
      %s842 = scalar_lea.vmem %s3, %s841
      %p843 = pneg %p120
      %p844 = pneg %p117
      %p845 = pneg %p141
      %p846 = pneg %p138
      %p847 = pneg %p162
      %p848 = pneg %p159
      %p849 = scmp.lt.s32.totalorder %s36, 1
      %s850 = scalar_select %p849, %s36, 1
      %s851 = scalar_lea.vmem %s6, %s850
      %p852 = pneg %p188
      %p853 = pneg %p185
      %p854 = scmp.lt.s32.totalorder %s36, 1
      %s855 = scalar_select %p854, %s36, 1
      %s856 = scalar_lea.vmem %s7, %s855
      %p857 = pneg %p214
      %p858 = pneg %p211
      %p859 = scmp.lt.s32.totalorder %s36, 1
      %s860 = scalar_select %p859, %s36, 1
      %s861 = scalar_lea.vmem %s8, %s860
      %p862 = pneg %p240
      %p863 = pneg %p237
      %p864 = scmp.lt.s32.totalorder %s36, 1
      %s865 = scalar_select %p864, %s36, 1
      %s866 = smul.addr %s865, 4
      %s867 = smul.addr %s866, 4
      %s868 = scalar_lea.vmem %s9, %s867
      %p869 = pneg %p266
      %p870 = pneg %p263
      %p871 = scmp.lt.s32.totalorder %s36, 1
      %s872 = scalar_select %p871, %s36, 1
      %s873 = scalar_lea.vmem %s10, %s872
      %p874 = pneg %p292
      %p875 = pneg %p289
      %p876 = scmp.lt.s32.totalorder %s36, 1
      %s877 = scalar_select %p876, %s36, 1
      %s878 = smul.addr %s877, 4
      %s879 = smul.addr %s878, 4
      %s880 = scalar_lea.vmem %s11, %s879
      %p881 = pneg %p318
      %p882 = pneg %p315
      %p883 = scmp.lt.s32.totalorder %s36, 1
      %s884 = scalar_select %p883, %s36, 1
      %s885 = scalar_lea.vmem %s12, %s884
      %p886 = pneg %p344
      %p887 = pneg %p341
      %p888 = scmp.lt.s32.totalorder %s36, 1
      %s889 = scalar_select %p888, %s36, 1
      %s890 = smul.addr %s889, 4
      %s891 = smul.addr %s890, 4
      %s892 = scalar_lea.vmem %s13, %s891
      %p893 = pneg %p370
      %p894 = pneg %p367
      %p895 = scmp.lt.s32.totalorder %s36, 1
      %s896 = scalar_select %p895, %s36, 1
      %s897 = scalar_lea.vmem %s14, %s896
      %p898 = pneg %p396
      %p899 = pneg %p393
      %p900 = scmp.lt.s32.totalorder %s36, 1
      %s901 = scalar_select %p900, %s36, 1
      %s902 = smul.addr %s901, 4
      %s903 = smul.addr %s902, 4
      %s904 = scalar_lea.vmem %s15, %s903
      %p905 = pneg %p422
      %p906 = pneg %p419
      %p907 = scmp.lt.s32.totalorder %s36, 1
      %s908 = scalar_select %p907, %s36, 1
      %s909 = scalar_lea.vmem %s16, %s908
      %p910 = pneg %p448
      %p911 = pneg %p445
      %p912 = scmp.lt.s32.totalorder %s36, 1
      %s913 = scalar_select %p912, %s36, 1
      %s914 = scalar_lea.vmem %s17, %s913
      %p915 = pneg %p474
      %p916 = pneg %p471
      %p917 = scmp.lt.s32.totalorder %s36, 1
      %s918 = scalar_select %p917, %s36, 1
      %s919 = scalar_lea.vmem %s18, %s918
      %p920 = pneg %p500
      %p921 = pneg %p497
      %p922 = scmp.lt.s32.totalorder %s36, 1
      %s923 = scalar_select %p922, %s36, 1
      %s924 = smul.addr %s923, 4
      %s925 = smul.addr %s924, 4
      %s926 = scalar_lea.vmem %s19, %s925
      %p927 = pneg %p526
      %p928 = pneg %p523
      %p929 = scmp.lt.s32.totalorder %s36, 1
      %s930 = scalar_select %p929, %s36, 1
      %s931 = scalar_lea.vmem %s20, %s930
      %p932 = pneg %p552
      %p933 = pneg %p549
      %p934 = scmp.lt.s32.totalorder %s36, 1
      %s935 = scalar_select %p934, %s36, 1
      %s936 = smul.addr %s935, 16
      %s937 = smul.addr %s936, 4
      %s938 = scalar_lea.vmem %s21, %s937
      %p939 = pneg %p578
      %p940 = pneg %p575
      %p941 = scmp.lt.s32.totalorder %s36, 1
      %s942 = scalar_select %p941, %s36, 1
      %s943 = scalar_lea.vmem %s22, %s942
      %p944 = pneg %p604
      %p945 = pneg %p601
      %p946 = pneg %p625
      %p947 = pneg %p622
      %p948 = pneg %p646
      %p949 = pneg %p643
      %p950 = pneg %p667
      %p951 = pneg %p664
      %p952 = scmp.lt.s32.totalorder %s36, 1
      %s953 = scalar_select %p952, %s36, 1
      %s954 = scalar_lea.vmem %s3, %s953
      %p955 = scmp.lt.s32.totalorder %s36, 1
      %s956 = scalar_select %p955, %s36, 1
      %s957 = scalar_lea.vmem %s6, %s956
      %p958 = scmp.lt.s32.totalorder %s36, 1
      %s959 = scalar_select %p958, %s36, 1
      %s960 = scalar_lea.vmem %s7, %s959
      %p961 = scmp.lt.s32.totalorder %s36, 1
      %s962 = scalar_select %p961, %s36, 1
      %s963 = scalar_lea.vmem %s8, %s962
      %p964 = scmp.lt.s32.totalorder %s36, 1
      %s965 = scalar_select %p964, %s36, 1
      %s966 = smul.addr %s965, 4
      %s967 = smul.addr %s966, 4
      %s968 = scalar_lea.vmem %s9, %s967
      %p969 = scmp.lt.s32.totalorder %s36, 1
      %s970 = scalar_select %p969, %s36, 1
      %s971 = scalar_lea.vmem %s10, %s970
      %p972 = scmp.lt.s32.totalorder %s36, 1
      %s973 = scalar_select %p972, %s36, 1
      %s974 = smul.addr %s973, 4
      %s975 = smul.addr %s974, 4
      %s976 = scalar_lea.vmem %s11, %s975
      %p977 = scmp.lt.s32.totalorder %s36, 1
      %s978 = scalar_select %p977, %s36, 1
      %s979 = scalar_lea.vmem %s12, %s978
      %p980 = scmp.lt.s32.totalorder %s36, 1
      %s981 = scalar_select %p980, %s36, 1
      %s982 = smul.addr %s981, 4
      %s983 = smul.addr %s982, 4
      %s984 = scalar_lea.vmem %s13, %s983
      %p985 = scmp.lt.s32.totalorder %s36, 1
      %s986 = scalar_select %p985, %s36, 1
      %s987 = scalar_lea.vmem %s14, %s986
      %p988 = scmp.lt.s32.totalorder %s36, 1
      %s989 = scalar_select %p988, %s36, 1
      %s990 = smul.addr %s989, 4
      %s991 = smul.addr %s990, 4
      %s992 = scalar_lea.vmem %s15, %s991
      %p993 = scmp.lt.s32.totalorder %s36, 1
      %s994 = scalar_select %p993, %s36, 1
      %s995 = scalar_lea.vmem %s16, %s994
      %p996 = scmp.lt.s32.totalorder %s36, 1
      %s997 = scalar_select %p996, %s36, 1
      %s998 = scalar_lea.vmem %s17, %s997
      %p999 = scmp.lt.s32.totalorder %s36, 1
      %s1000 = scalar_select %p999, %s36, 1
      %s1001 = scalar_lea.vmem %s18, %s1000
      %p1002 = scmp.lt.s32.totalorder %s36, 1
      %s1003 = scalar_select %p1002, %s36, 1
      %s1004 = smul.addr %s1003, 4
      %s1005 = smul.addr %s1004, 4
      %s1006 = scalar_lea.vmem %s19, %s1005
      %p1007 = scmp.lt.s32.totalorder %s36, 1
      %s1008 = scalar_select %p1007, %s36, 1
      %s1009 = scalar_lea.vmem %s20, %s1008
      %p1010 = scmp.lt.s32.totalorder %s36, 1
      %s1011 = scalar_select %p1010, %s36, 1
      %s1012 = smul.addr %s1011, 16
      %s1013 = smul.addr %s1012, 4
      %s1014 = scalar_lea.vmem %s21, %s1013
      %p1015 = scmp.lt.s32.totalorder %s36, 1
      %s1016 = scalar_select %p1015, %s36, 1
      %s1017 = scalar_lea.vmem %s22, %s1016
      %p1019 = scmp.eq.s32.totalorder %s36, 0
      // Predicated region
      $region121: #{denoising_network_forward.1} parent=119 // pred_check
        %p1020 = pneg %p1019
      $region122: #{denoising_network_forward.1} parent=119 // pred_check_branch
        %1022 = sbr.rel (%p1020) target = $region124
      $region123: #{denoising_network_forward.1} parent=119 // pred_region
        %v1023 = vld [vmem:[%s0] sm:$0xff]
        %v1024 = vld [vmem:[%s0 + $0x8] sm:$0xff]
        %v1025 = vpack.c.bf16 %v1024, %v1023
        %v1026 = vld [vmem:[%s4] sm:$0xf]
        %v1027 = vld [vmem:[%s5] sm:$0x1]
        %v1029 = vlaneseq
        %v1030 = vshrl.u32 %v1029, 7
        %v1031 = vsub.s32 0, %v1030
        %v1032 = vrot.slane %v1027, %v1031
        %vm1034 = vcmask 64512
        %v1036 = vsel %vm1034, %v1025, 0
        %vm1038 = vcmask 1043456
        %v1040 = vsel %vm1038, %v1026, 0
        %1042 = vmatprep.subr.bf16.mxu0 0
        %1043 = vmatpush1.bf16.msra.mxu0 0
        %1044 = vmatprep.subr.bf16.mxu0 0
        %1045 = vmatpush1.bf16.msra.mxu0 0
        %1046 = vmatprep.subr.bf16.mxu0 0
        %1047 = vmatpush1.bf16.msra.mxu0 0
        %1048 = vmatprep.subr.bf16.mxu0 0
        %1049 = vmatpush1.bf16.msra.mxu0 0
        %1050 = vmatprep.subr.bf16.mxu0 0
        %1051 = vmatpush1.bf16.msra.mxu0 0
        %1052 = vmatprep.subr.bf16.mxu0 0
        %1053 = vmatpush1.bf16.msra.mxu0 0
        %1054 = vmatprep.subr.bf16.mxu0 0
        %1055 = vmatpush1.bf16.msra.mxu0 0
        %1056 = vmatprep.subr.bf16.mxu0 0
        %1057 = vmatpush1.bf16.msra.mxu0 %v1040
        %1058 = vmatprep.subr.bf16.mxu0 0
        %1059 = vmatpush2.bf16.msra.mxu0 0
        %1060 = vmatprep.subr.bf16.mxu0 0
        %1061 = vmatpush2.bf16.msra.mxu0 0
        %1062 = vmatprep.subr.bf16.mxu0 0
        %1063 = vmatpush2.bf16.msra.mxu0 0
        %1064 = vmatprep.subr.bf16.mxu0 0
        %1065 = vmatpush2.bf16.msra.mxu0 0
        %1066 = vmatprep.subr.bf16.mxu0 0
        %1067 = vmatpush2.bf16.msra.mxu0 0
        %1068 = vmatprep.subr.bf16.mxu0 0
        %1069 = vmatpush2.bf16.msra.mxu0 0
        %1070 = vmatprep.subr.bf16.mxu0 0
        %1071 = vmatpush2.bf16.msra.mxu0 0
        %1072 = vmatprep.subr.bf16.mxu0 0
        %1073 = vmatpush2.bf16.msra.mxu0 0
        %1074 = vmatprep.mubr.bf16.mxu0 0
        %1075 = vmatmul.mubr.bf16.gmra.mxu0 %v1036
        %v1076 = vpop.f32.mrf.mxu0
        %v1077 = vadd.f32 %v1032, %v1076
        %v1078 = vpop.f32.mrf.mxu0
        %v1079 = vpop.f32.mrf.mxu0
        %v1080 = vadd.f32 %v1032, %v1079
        %v1081 = vpop.f32.mrf.mxu0
        %1082 = vdwg.mxu0
        %vm1083 = vcmask 261120
        %1084 = vst.msk [vmem:[#allocation2] sm:$0xff] %vm1083, %v1077
        %1085 = vst.msk [vmem:[#allocation2 + $0x8] sm:$0xff] %vm1083, %v1080
      $region124: #{denoising_network_forward.1} parent=119 // pred_fallthru
        _
      %v1086 = vld [vmem:[%s1] sm:$0x3]
      %v1087 = vld [vmem:[%s1 + $0x2] sm:$0x3]
      %v1088 = vunpack.c.0.s8 %v1086
      %v1089 = vunpack.c.0.s8 %v1087
      %v1090 = vcvt.s32.f32 %v1088
      %v1091 = vcvt.s32.f32 %v1089
      %vm1092 = vcmp.gt.f32.partialorder %v1090, 0.0
      %vm1093 = vcmp.gt.f32.partialorder %v1091, 0.0
      %v1094 = vsel %vm1092, 0.0, -1e+09
      %v1095 = vsel %vm1093, 0.0, -1e+09
      %v1096 = vld [vmem:[#allocation2] sm:$0xff]
      %v1097 = vld [vmem:[#allocation2 + $0x8] sm:$0xff]
      %v1098 = vld [vmem:[%s954] sm:$0x1]
      %v1100 = vlaneseq
      %v1101 = vshrl.u32 %v1100, 7
      %v1102 = vsub.s32 0, %v1101
      %v1103 = vrot.slane %v1098, %v1102
      %v1105 = vadd.f32 %v1096, %v1103
      %v1106 = vadd.f32 %v1097, %v1103
      %v1107 = vld [vmem:[%s2] sm:$0xff]
      %v1108 = vld [vmem:[%s2 + $0x8] sm:$0xff]
      %v1109 = vld [vmem:[%s957] sm:$0x1]
      %1111 = vset.pattern.permute.xlu0 0
      %1112 = vperm.xlu0 %1111, %v1107
      %v1113 = vpop.permute.xlu0 %1112
      %1116 = vset.pattern.permute.xlu0 0
      %1117 = vperm.xlu0 %1116, %v1108
      %v1118 = vpop.permute.xlu0 %1117
      %v1121 = vlaneseq
      %v1122 = vshrl.u32 %v1121, 7
      %v1123 = vsub.s32 0, %v1122
      %v1124 = vrot.slane %v1109, %v1123
      %v1126 = vmul.f32 %v1113, %v1124
      %v1127 = vmul.f32 %v1118, %v1124
      %v1128 = vadd.f32 %v1105, %v1126
      %v1129 = vadd.f32 %v1106, %v1127
      %v1130 = vld [vmem:[%s960] sm:$0x1]
      %v1131 = vld [vmem:[%s963] sm:$0x1]
      %vm1132 = vcmask 261120
      %v1133 = vsel %vm1132, %v1128, 0.0
      %1134 = vadd.xlane.f32.xlu0 %v1133
      %v1135 = vpop.xlane.xlu0 %1134
      %v1136 = vsel %vm1132, %v1129, 0.0
      %1137 = vadd.xlane.f32.xlu0 %v1136
      %v1138 = vpop.xlane.xlu0 %1137
      %v1139 = vrcp.pop 32.0
      %v1140 = vmul.f32 %v1135, %v1139
      %v1141 = vmul.f32 %v1138, %v1139
      %v1142 = vsub.f32 %v1128, %v1140
      %v1143 = vsub.f32 %v1129, %v1141
      %v1144 = vmul.f32 %v1142, %v1142
      %v1145 = vmul.f32 %v1143, %v1143
      %v1146 = vsel %vm1132, %v1144, 0.0
      %1147 = vadd.xlane.f32.xlu0 %v1146
      %v1148 = vpop.xlane.xlu0 %1147
      %v1149 = vsel %vm1132, %v1145, 0.0
      %1150 = vadd.xlane.f32.xlu0 %v1149
      %v1151 = vpop.xlane.xlu0 %1150
      %v1152 = vmul.f32 %v1148, %v1139
      %v1153 = vmul.f32 %v1151, %v1139
      %v1154 = vadd.f32 %v1152, 1e-05
      %v1155 = vadd.f32 %v1153, 1e-05
      %v1156 = vrsqrt.pop %v1154
      %v1157 = vrsqrt.pop %v1155
      %v1158 = vmul.f32 %v1142, %v1156
      %v1159 = vmul.f32 %v1143, %v1157
      %v1161 = vlaneseq
      %v1162 = vshrl.u32 %v1161, 7
      %v1163 = vsub.s32 0, %v1162
      %v1164 = vrot.slane %v1130, %v1163
      %v1166 = vmul.f32 %v1158, %v1164
      %v1167 = vmul.f32 %v1159, %v1164
      %v1169 = vlaneseq
      %v1170 = vshrl.u32 %v1169, 7
      %v1171 = vsub.s32 0, %v1170
      %v1172 = vrot.slane %v1131, %v1171
      %v1174 = vadd.f32 %v1166, %v1172
      %v1175 = vadd.f32 %v1167, %v1172
      %v1176 = vpack.c.bf16 %v1175, %v1174
      %v1177 = vld [vmem:[%s968] sm:$0xf]
      %v1178 = vld [vmem:[%s968 + $0x4] sm:$0xf]
      %v1179 = vld [vmem:[%s968 + $0x8] sm:$0xf]
      %v1180 = vld [vmem:[%s968 + $0xc] sm:$0xf]
      %v1181 = vld [vmem:[%s971] sm:$0x1]
      %v1183 = vlaneseq
      %v1184 = vshrl.u32 %v1183, 7
      %v1185 = vsub.s32 0, %v1184
      %v1186 = vrot.slane %v1181, %v1185
      %v1192 = vunpack.c.l.b16 %v1177
      %v1193 = vunpack.c.l.b16 %v1178
      %v1194 = vunpack.c.l.b16 %v1179
      %v1195 = vunpack.c.l.b16 %v1180
      %v1196 = vpack.c.b16 %v1193, %v1192
      %v1197 = vpack.c.b16 %v1195, %v1194
      %v1201 = vsel %vm1132, %v1176, 0
      %1203 = vmatprep.subr.bf16.mxu0 0
      %1204 = vmatpush1.bf16.msra.mxu0 0
      %1205 = vmatprep.subr.bf16.mxu0 0
      %1206 = vmatpush1.bf16.msra.mxu0 0
      %1207 = vmatprep.subr.bf16.mxu0 0
      %1208 = vmatpush1.bf16.msra.mxu0 0
      %1209 = vmatprep.subr.bf16.mxu0 0
      %1210 = vmatpush1.bf16.msra.mxu0 0
      %1211 = vmatprep.subr.bf16.mxu0 0
      %1212 = vmatpush1.bf16.msra.mxu0 0
      %1213 = vmatprep.subr.bf16.mxu0 0
      %1214 = vmatpush1.bf16.msra.mxu0 0
      %1215 = vmatprep.subr.bf16.mxu0 0
      %1216 = vmatpush1.bf16.msra.mxu0 %v1197
      %1217 = vmatprep.subr.bf16.mxu0 0
      %1218 = vmatpush1.bf16.msra.mxu0 %v1196
      %1219 = vmatprep.subr.bf16.mxu0 0
      %1220 = vmatpush2.bf16.msra.mxu0 0
      %1221 = vmatprep.subr.bf16.mxu0 0
      %1222 = vmatpush2.bf16.msra.mxu0 0
      %1223 = vmatprep.subr.bf16.mxu0 0
      %1224 = vmatpush2.bf16.msra.mxu0 0
      %1225 = vmatprep.subr.bf16.mxu0 0
      %1226 = vmatpush2.bf16.msra.mxu0 0
      %1227 = vmatprep.subr.bf16.mxu0 0
      %1228 = vmatpush2.bf16.msra.mxu0 0
      %1229 = vmatprep.subr.bf16.mxu0 0
      %1230 = vmatpush2.bf16.msra.mxu0 0
      %1231 = vmatprep.subr.bf16.mxu0 0
      %1232 = vmatpush2.bf16.msra.mxu0 0
      %1233 = vmatprep.subr.bf16.mxu0 0
      %1234 = vmatpush2.bf16.msra.mxu0 0
      %1235 = vmatprep.mubr.bf16.mxu0 0
      %1236 = vmatmul.mubr.bf16.gmra.mxu0 %v1201
      %v1237 = vpop.f32.mrf.mxu0
      %v1238 = vadd.f32 %v1186, %v1237
      %v1239 = vpop.f32.mrf.mxu0
      %v1240 = vpop.f32.mrf.mxu0
      %v1241 = vadd.f32 %v1186, %v1240
      %v1242 = vpop.f32.mrf.mxu0
      %1243 = vdwg.mxu0
      %v1244 = vmul.f32 %v1238, 0.35355338
      %v1245 = vmul.f32 %v1241, 0.35355338
      %v1246 = vld [vmem:[%s976] sm:$0xf]
      %v1247 = vld [vmem:[%s976 + $0x4] sm:$0xf]
      %v1248 = vld [vmem:[%s976 + $0x8] sm:$0xf]
      %v1249 = vld [vmem:[%s976 + $0xc] sm:$0xf]
      %v1250 = vld [vmem:[%s979] sm:$0x1]
      %v1252 = vlaneseq
      %v1253 = vshrl.u32 %v1252, 7
      %v1254 = vsub.s32 0, %v1253
      %v1255 = vrot.slane %v1250, %v1254
      %v1261 = vunpack.c.l.b16 %v1246
      %v1262 = vunpack.c.l.b16 %v1247
      %v1263 = vunpack.c.l.b16 %v1248
      %v1264 = vunpack.c.l.b16 %v1249
      %v1265 = vpack.c.b16 %v1262, %v1261
      %v1266 = vpack.c.b16 %v1264, %v1263
      %1269 = vmatprep.subr.bf16.mxu0 0
      %1270 = vmatpush1.bf16.msra.mxu0 0
      %1271 = vmatprep.subr.bf16.mxu0 0
      %1272 = vmatpush1.bf16.msra.mxu0 0
      %1273 = vmatprep.subr.bf16.mxu0 0
      %1274 = vmatpush1.bf16.msra.mxu0 0
      %1275 = vmatprep.subr.bf16.mxu0 0
      %1276 = vmatpush1.bf16.msra.mxu0 0
      %1277 = vmatprep.subr.bf16.mxu0 0
      %1278 = vmatpush1.bf16.msra.mxu0 0
      %1279 = vmatprep.subr.bf16.mxu0 0
      %1280 = vmatpush1.bf16.msra.mxu0 0
      %1281 = vmatprep.subr.bf16.mxu0 0
      %1282 = vmatpush1.bf16.msra.mxu0 %v1266
      %1283 = vmatprep.subr.bf16.mxu0 0
      %1284 = vmatpush1.bf16.msra.mxu0 %v1265
      %1285 = vmatprep.subr.bf16.mxu0 0
      %1286 = vmatpush2.bf16.msra.mxu0 0
      %1287 = vmatprep.subr.bf16.mxu0 0
      %1288 = vmatpush2.bf16.msra.mxu0 0
      %1289 = vmatprep.subr.bf16.mxu0 0
      %1290 = vmatpush2.bf16.msra.mxu0 0
      %1291 = vmatprep.subr.bf16.mxu0 0
      %1292 = vmatpush2.bf16.msra.mxu0 0
      %1293 = vmatprep.subr.bf16.mxu0 0
      %1294 = vmatpush2.bf16.msra.mxu0 0
      %1295 = vmatprep.subr.bf16.mxu0 0
      %1296 = vmatpush2.bf16.msra.mxu0 0
      %1297 = vmatprep.subr.bf16.mxu0 0
      %1298 = vmatpush2.bf16.msra.mxu0 0
      %1299 = vmatprep.subr.bf16.mxu0 0
      %1300 = vmatpush2.bf16.msra.mxu0 0
      %1301 = vmatprep.mubr.bf16.mxu0 0
      %1302 = vmatmul.mubr.bf16.gmra.mxu0 %v1201
      %v1303 = vpop.f32.mrf.mxu0
      %v1304 = vadd.f32 %v1255, %v1303
      %v1305 = vpop.f32.mrf.mxu0
      %v1306 = vpop.f32.mrf.mxu0
      %v1307 = vadd.f32 %v1255, %v1306
      %v1308 = vpop.f32.mrf.mxu0
      %1309 = vdwg.mxu0
      %v1310 = vld [vmem:[%s984] sm:$0xf]
      %v1311 = vld [vmem:[%s984 + $0x4] sm:$0xf]
      %v1312 = vld [vmem:[%s984 + $0x8] sm:$0xf]
      %v1313 = vld [vmem:[%s984 + $0xc] sm:$0xf]
      %v1314 = vld [vmem:[%s987] sm:$0x1]
      %v1316 = vlaneseq
      %v1317 = vshrl.u32 %v1316, 7
      %v1318 = vsub.s32 0, %v1317
      %v1319 = vrot.slane %v1314, %v1318
      %v1325 = vunpack.c.l.b16 %v1310
      %v1326 = vunpack.c.l.b16 %v1311
      %v1327 = vunpack.c.l.b16 %v1312
      %v1328 = vunpack.c.l.b16 %v1313
      %v1329 = vpack.c.b16 %v1326, %v1325
      %v1330 = vpack.c.b16 %v1328, %v1327
      %1333 = vmatprep.subr.bf16.mxu0 0
      %1334 = vmatpush1.bf16.msra.mxu0 0
      %1335 = vmatprep.subr.bf16.mxu0 0
      %1336 = vmatpush1.bf16.msra.mxu0 0
      %1337 = vmatprep.subr.bf16.mxu0 0
      %1338 = vmatpush1.bf16.msra.mxu0 0
      %1339 = vmatprep.subr.bf16.mxu0 0
      %1340 = vmatpush1.bf16.msra.mxu0 0
      %1341 = vmatprep.subr.bf16.mxu0 0
      %1342 = vmatpush1.bf16.msra.mxu0 0
      %1343 = vmatprep.subr.bf16.mxu0 0
      %1344 = vmatpush1.bf16.msra.mxu0 0
      %1345 = vmatprep.subr.bf16.mxu0 0
      %1346 = vmatpush1.bf16.msra.mxu0 %v1330
      %1347 = vmatprep.subr.bf16.mxu0 0
      %1348 = vmatpush1.bf16.msra.mxu0 %v1329
      %1349 = vmatprep.subr.bf16.mxu0 0
      %1350 = vmatpush2.bf16.msra.mxu0 0
      %1351 = vmatprep.subr.bf16.mxu0 0
      %1352 = vmatpush2.bf16.msra.mxu0 0
      %1353 = vmatprep.subr.bf16.mxu0 0
      %1354 = vmatpush2.bf16.msra.mxu0 0
      %1355 = vmatprep.subr.bf16.mxu0 0
      %1356 = vmatpush2.bf16.msra.mxu0 0
      %1357 = vmatprep.subr.bf16.mxu0 0
      %1358 = vmatpush2.bf16.msra.mxu0 0
      %1359 = vmatprep.subr.bf16.mxu0 0
      %1360 = vmatpush2.bf16.msra.mxu0 0
      %1361 = vmatprep.subr.bf16.mxu0 0
      %1362 = vmatpush2.bf16.msra.mxu0 0
      %1363 = vmatprep.subr.bf16.mxu0 0
      %1364 = vmatpush2.bf16.msra.mxu0 0
      %1365 = vmatprep.mubr.bf16.mxu0 0
      %1366 = vmatmul.mubr.bf16.gmra.mxu0 %v1201
      %v1367 = vpop.f32.mrf.mxu0
      %v1368 = vadd.f32 %v1319, %v1367
      %v1369 = vpop.f32.mrf.mxu0
      %v1370 = vpop.f32.mrf.mxu0
      %v1371 = vadd.f32 %v1319, %v1370
      %v1372 = vpop.f32.mrf.mxu0
      %1373 = vdwg.mxu0
      %1374 = vxpose.xlu0.b32.start [1/16] %v1304, 128
      %1375 = vxpose.xlu0.b32.cont [2/16] %v1307, 128
      %1376 = vxpose.xlu0.b32.cont [3/16] 0.0, 128
      %1377 = vxpose.xlu0.b32.cont [4/16] 0.0, 128
      %1378 = vxpose.xlu0.b32.cont [5/16] 0.0, 128
      %1379 = vxpose.xlu0.b32.cont [6/16] 0.0, 128
      %1380 = vxpose.xlu0.b32.cont [7/16] 0.0, 128
      %1381 = vxpose.xlu0.b32.cont [8/16] 0.0, 128
      %1382 = vxpose.xlu0.b32.cont [9/16] 0.0, 128
      %1383 = vxpose.xlu0.b32.cont [10/16] 0.0, 128
      %1384 = vxpose.xlu0.b32.cont [11/16] 0.0, 128
      %1385 = vxpose.xlu0.b32.cont [12/16] 0.0, 128
      %1386 = vxpose.xlu0.b32.cont [13/16] 0.0, 128
      %1387 = vxpose.xlu0.b32.cont [14/16] 0.0, 128
      %1388 = vxpose.xlu0.b32.cont [15/16] 0.0, 128
      %1389 = vxpose.xlu0.b32.end [16/16] 0.0, 128
      %v1390 = vpop.trf.xlu0
      %v1391 = vpop.trf.xlu0
      %v1392 = vpop.trf.xlu0
      %v1393 = vpop.trf.xlu0
      %v1394 = vpop.trf.xlu0
      %v1395 = vpop.trf.xlu0
      %v1396 = vpop.trf.xlu0
      %v1397 = vpop.trf.xlu0
      %v1398 = vpop.trf.xlu0
      %v1399 = vpop.trf.xlu0
      %v1400 = vpop.trf.xlu0
      %v1401 = vpop.trf.xlu0
      %v1402 = vpop.trf.xlu0
      %v1403 = vpop.trf.xlu0
      %v1404 = vpop.trf.xlu0
      %v1405 = vpop.trf.xlu0
      %v1406 = vld [vmem:[%s992] sm:$0xf]
      %v1407 = vld [vmem:[%s992 + $0x4] sm:$0xf]
      %v1408 = vld [vmem:[%s992 + $0x8] sm:$0xf]
      %v1409 = vld [vmem:[%s992 + $0xc] sm:$0xf]
      %v1410 = vpack.c.bf16 %v1245, %v1244
      %v1411 = vpack.c.bf16 %v1390, %v1390
      %vm1412 = vcmask 64512
      %v1414 = vsel %vm1412, %v1410, 0
      %vm1416 = vcmask 1043456
      %v1418 = vsel %vm1416, %v1411, 0
      %1420 = vmatprep.subr.bf16.mxu0 0
      %1421 = vmatpush1.bf16.msra.mxu0 0
      %1422 = vmatprep.subr.bf16.mxu0 0
      %1423 = vmatpush1.bf16.msra.mxu0 0
      %1424 = vmatprep.subr.bf16.mxu0 0
      %1425 = vmatpush1.bf16.msra.mxu0 0
      %1426 = vmatprep.subr.bf16.mxu0 0
      %1427 = vmatpush1.bf16.msra.mxu0 0
      %1428 = vmatprep.subr.bf16.mxu0 0
      %1429 = vmatpush1.bf16.msra.mxu0 0
      %1430 = vmatprep.subr.bf16.mxu0 0
      %1431 = vmatpush1.bf16.msra.mxu0 0
      %1432 = vmatprep.subr.bf16.mxu0 0
      %1433 = vmatpush1.bf16.msra.mxu0 0
      %1434 = vmatprep.subr.bf16.mxu0 0
      %1435 = vmatpush1.bf16.msra.mxu0 %v1418
      %1436 = vmatprep.subr.bf16.mxu0 0
      %1437 = vmatpush2.bf16.msra.mxu0 0
      %1438 = vmatprep.subr.bf16.mxu0 0
      %1439 = vmatpush2.bf16.msra.mxu0 0
      %1440 = vmatprep.subr.bf16.mxu0 0
      %1441 = vmatpush2.bf16.msra.mxu0 0
      %1442 = vmatprep.subr.bf16.mxu0 0
      %1443 = vmatpush2.bf16.msra.mxu0 0
      %1444 = vmatprep.subr.bf16.mxu0 0
      %1445 = vmatpush2.bf16.msra.mxu0 0
      %1446 = vmatprep.subr.bf16.mxu0 0
      %1447 = vmatpush2.bf16.msra.mxu0 0
      %1448 = vmatprep.subr.bf16.mxu0 0
      %1449 = vmatpush2.bf16.msra.mxu0 0
      %1450 = vmatprep.subr.bf16.mxu0 0
      %1451 = vmatpush2.bf16.msra.mxu0 0
      %1452 = vmatprep.mubr.bf16.mxu0 0
      %1453 = vmatmul.mubr.bf16.gmra.mxu0 %v1414
      %v1454 = vpop.f32.mrf.mxu0
      %v1455 = vadd.f32 %v1094, %v1454
      %v1456 = vpop.f32.mrf.mxu0
      %v1457 = vpop.f32.mrf.mxu0
      %v1458 = vadd.f32 %v1095, %v1457
      %v1459 = vpop.f32.mrf.mxu0
      %1460 = vdwg.mxu0
      %vm1461 = vcmask 130048
      %v1462 = vsel %vm1461, %v1455, -inf
      %1463 = vmax.xlane.f32.xlu0 %v1462
      %v1464 = vpop.xlane.xlu0 %1463
      %v1465 = vsel %vm1461, %v1458, -inf
      %1466 = vmax.xlane.f32.xlu0 %v1465
      %v1467 = vpop.xlane.xlu0 %1466
      %v1468 = vsub.f32 %v1455, %v1464
      %v1469 = vsub.f32 %v1458, %v1467
      %v1470 = vmul.f32 %v1468, 1.442695
      %v1471 = vpow.pop %v1470
      %v1472 = vmul.f32 %v1469, 1.442695
      %v1473 = vpow.pop %v1472
      %v1474 = vsel %vm1461, %v1471, 0.0
      %1475 = vadd.xlane.f32.xlu0 %v1474
      %v1476 = vpop.xlane.xlu0 %1475
      %v1477 = vsel %vm1461, %v1473, 0.0
      %1478 = vadd.xlane.f32.xlu0 %v1477
      %v1479 = vpop.xlane.xlu0 %1478
      %v1480 = vrcp.pop %v1476
      %v1481 = vrcp.pop %v1479
      %v1482 = vmul.f32 %v1471, %v1480
      %v1483 = vmul.f32 %v1473, %v1481
      %v1484 = vpack.c.bf16 %v1371, %v1368
      %v1485 = vpack.c.bf16 %v1483, %v1482
      %v1487 = vsel %vm1461, %v1485, 0
      %1489 = vmatprep.subr.bf16.mxu0 0
      %1490 = vmatpush1.bf16.msra.mxu0 0
      %1491 = vmatprep.subr.bf16.mxu0 0
      %1492 = vmatpush1.bf16.msra.mxu0 0
      %1493 = vmatprep.subr.bf16.mxu0 0
      %1494 = vmatpush1.bf16.msra.mxu0 0
      %1495 = vmatprep.subr.bf16.mxu0 0
      %1496 = vmatpush1.bf16.msra.mxu0 0
      %1497 = vmatprep.subr.bf16.mxu0 0
      %1498 = vmatpush1.bf16.msra.mxu0 0
      %1499 = vmatprep.subr.bf16.mxu0 0
      %1500 = vmatpush1.bf16.msra.mxu0 0
      %1501 = vmatprep.subr.bf16.mxu0 0
      %1502 = vmatpush1.bf16.msra.mxu0 0
      %1503 = vmatprep.subr.bf16.mxu0 0
      %1504 = vmatpush1.bf16.msra.mxu0 %v1484
      %1505 = vmatprep.subr.bf16.mxu0 0
      %1506 = vmatpush2.bf16.msra.mxu0 0
      %1507 = vmatprep.subr.bf16.mxu0 0
      %1508 = vmatpush2.bf16.msra.mxu0 0
      %1509 = vmatprep.subr.bf16.mxu0 0
      %1510 = vmatpush2.bf16.msra.mxu0 0
      %1511 = vmatprep.subr.bf16.mxu0 0
      %1512 = vmatpush2.bf16.msra.mxu0 0
      %1513 = vmatprep.subr.bf16.mxu0 0
      %1514 = vmatpush2.bf16.msra.mxu0 0
      %1515 = vmatprep.subr.bf16.mxu0 0
      %1516 = vmatpush2.bf16.msra.mxu0 0
      %1517 = vmatprep.subr.bf16.mxu0 0
      %1518 = vmatpush2.bf16.msra.mxu0 0
      %1519 = vmatprep.subr.bf16.mxu0 0
      %1520 = vmatpush2.bf16.msra.mxu0 0
      %1521 = vmatprep.mubr.bf16.mxu0 0
      %1522 = vmatmul.mubr.bf16.gmra.mxu0 %v1487
      %v1523 = vpop.f32.mrf.mxu0
      %v1524 = vadd.f32 0.0, %v1523
      %v1525 = vpop.f32.mrf.mxu0
      %v1526 = vpop.f32.mrf.mxu0
      %v1527 = vadd.f32 0.0, %v1526
      %v1528 = vpop.f32.mrf.mxu0
      %1529 = vdwg.mxu0
      %v1530 = vpack.c.bf16 %v1527, %v1524
      %v1531 = vpack.c.bf16 %v1391, %v1391
      %1533 = vrot.lane.b32.xlu0 %v1410, 120
      %v1534 = vpop.permute.xlu0 %1533
      %v1536 = vsel %vm1412, %v1534, 0
      %v1539 = vsel %vm1416, %v1531, 0
      %1541 = vmatprep.subr.bf16.mxu0 0
      %1542 = vmatpush1.bf16.msra.mxu0 0
      %1543 = vmatprep.subr.bf16.mxu0 0
      %1544 = vmatpush1.bf16.msra.mxu0 0
      %1545 = vmatprep.subr.bf16.mxu0 0
      %1546 = vmatpush1.bf16.msra.mxu0 0
      %1547 = vmatprep.subr.bf16.mxu0 0
      %1548 = vmatpush1.bf16.msra.mxu0 0
      %1549 = vmatprep.subr.bf16.mxu0 0
      %1550 = vmatpush1.bf16.msra.mxu0 0
      %1551 = vmatprep.subr.bf16.mxu0 0
      %1552 = vmatpush1.bf16.msra.mxu0 0
      %1553 = vmatprep.subr.bf16.mxu0 0
      %1554 = vmatpush1.bf16.msra.mxu0 0
      %1555 = vmatprep.subr.bf16.mxu0 0
      %1556 = vmatpush1.bf16.msra.mxu0 %v1539
      %1557 = vmatprep.subr.bf16.mxu0 0
      %1558 = vmatpush2.bf16.msra.mxu0 0
      %1559 = vmatprep.subr.bf16.mxu0 0
      %1560 = vmatpush2.bf16.msra.mxu0 0
      %1561 = vmatprep.subr.bf16.mxu0 0
      %1562 = vmatpush2.bf16.msra.mxu0 0
      %1563 = vmatprep.subr.bf16.mxu0 0
      %1564 = vmatpush2.bf16.msra.mxu0 0
      %1565 = vmatprep.subr.bf16.mxu0 0
      %1566 = vmatpush2.bf16.msra.mxu0 0
      %1567 = vmatprep.subr.bf16.mxu0 0
      %1568 = vmatpush2.bf16.msra.mxu0 0
      %1569 = vmatprep.subr.bf16.mxu0 0
      %1570 = vmatpush2.bf16.msra.mxu0 0
      %1571 = vmatprep.subr.bf16.mxu0 0
      %1572 = vmatpush2.bf16.msra.mxu0 0
      %1573 = vmatprep.mubr.bf16.mxu0 0
      %1574 = vmatmul.mubr.bf16.gmra.mxu0 %v1536
      %v1575 = vpop.f32.mrf.mxu0
      %v1576 = vadd.f32 %v1094, %v1575
      %v1577 = vpop.f32.mrf.mxu0
      %v1578 = vpop.f32.mrf.mxu0
      %v1579 = vadd.f32 %v1095, %v1578
      %v1580 = vpop.f32.mrf.mxu0
      %1581 = vdwg.mxu0
      %v1582 = vsel %vm1461, %v1576, -inf
      %1583 = vmax.xlane.f32.xlu0 %v1582
      %v1584 = vpop.xlane.xlu0 %1583
      %v1585 = vsel %vm1461, %v1579, -inf
      %1586 = vmax.xlane.f32.xlu0 %v1585
      %v1587 = vpop.xlane.xlu0 %1586
      %v1588 = vsub.f32 %v1576, %v1584
      %v1589 = vsub.f32 %v1579, %v1587
      %v1590 = vmul.f32 %v1588, 1.442695
      %v1591 = vpow.pop %v1590
      %v1592 = vmul.f32 %v1589, 1.442695
      %v1593 = vpow.pop %v1592
      %v1594 = vsel %vm1461, %v1591, 0.0
      %1595 = vadd.xlane.f32.xlu0 %v1594
      %v1596 = vpop.xlane.xlu0 %1595
      %v1597 = vsel %vm1461, %v1593, 0.0
      %1598 = vadd.xlane.f32.xlu0 %v1597
      %v1599 = vpop.xlane.xlu0 %1598
      %v1600 = vrcp.pop %v1596
      %v1601 = vrcp.pop %v1599
      %v1602 = vmul.f32 %v1591, %v1600
      %v1603 = vmul.f32 %v1593, %v1601
      %v1604 = vpack.c.bf16 %v1603, %v1602
      %1606 = vrot.lane.b32.xlu0 %v1484, 120
      %v1607 = vpop.permute.xlu0 %1606
      %v1610 = vsel %vm1461, %v1604, 0
      %1612 = vmatprep.subr.bf16.mxu0 0
      %1613 = vmatpush1.bf16.msra.mxu0 0
      %1614 = vmatprep.subr.bf16.mxu0 0
      %1615 = vmatpush1.bf16.msra.mxu0 0
      %1616 = vmatprep.subr.bf16.mxu0 0
      %1617 = vmatpush1.bf16.msra.mxu0 0
      %1618 = vmatprep.subr.bf16.mxu0 0
      %1619 = vmatpush1.bf16.msra.mxu0 0
      %1620 = vmatprep.subr.bf16.mxu0 0
      %1621 = vmatpush1.bf16.msra.mxu0 0
      %1622 = vmatprep.subr.bf16.mxu0 0
      %1623 = vmatpush1.bf16.msra.mxu0 0
      %1624 = vmatprep.subr.bf16.mxu0 0
      %1625 = vmatpush1.bf16.msra.mxu0 0
      %1626 = vmatprep.subr.bf16.mxu0 0
      %1627 = vmatpush1.bf16.msra.mxu0 %v1607
      %1628 = vmatprep.subr.bf16.mxu0 0
      %1629 = vmatpush2.bf16.msra.mxu0 0
      %1630 = vmatprep.subr.bf16.mxu0 0
      %1631 = vmatpush2.bf16.msra.mxu0 0
      %1632 = vmatprep.subr.bf16.mxu0 0
      %1633 = vmatpush2.bf16.msra.mxu0 0
      %1634 = vmatprep.subr.bf16.mxu0 0
      %1635 = vmatpush2.bf16.msra.mxu0 0
      %1636 = vmatprep.subr.bf16.mxu0 0
      %1637 = vmatpush2.bf16.msra.mxu0 0
      %1638 = vmatprep.subr.bf16.mxu0 0
      %1639 = vmatpush2.bf16.msra.mxu0 0
      %1640 = vmatprep.subr.bf16.mxu0 0
      %1641 = vmatpush2.bf16.msra.mxu0 0
      %1642 = vmatprep.subr.bf16.mxu0 0
      %1643 = vmatpush2.bf16.msra.mxu0 0
      %1644 = vmatprep.mubr.bf16.mxu0 0
      %1645 = vmatmul.mubr.bf16.gmra.mxu0 %v1610
      %v1646 = vpop.f32.mrf.mxu0
      %v1647 = vadd.f32 0.0, %v1646
      %v1648 = vpop.f32.mrf.mxu0
      %v1649 = vpop.f32.mrf.mxu0
      %v1650 = vadd.f32 0.0, %v1649
      %v1651 = vpop.f32.mrf.mxu0
      %1652 = vdwg.mxu0
      %v1653 = vpack.c.bf16 %v1650, %v1647
      %v1655 = vsel %vm1412, %v1653, 0
      %v1658 = vsel %vm1416, %v1407, 0
      %1660 = vmatprep.subr.bf16.mxu0 0
      %1661 = vmatpush1.bf16.msra.mxu0 0
      %1662 = vmatprep.subr.bf16.mxu0 0
      %1663 = vmatpush1.bf16.msra.mxu0 0
      %1664 = vmatprep.subr.bf16.mxu0 0
      %1665 = vmatpush1.bf16.msra.mxu0 0
      %1666 = vmatprep.subr.bf16.mxu0 0
      %1667 = vmatpush1.bf16.msra.mxu0 0
      %1668 = vmatprep.subr.bf16.mxu0 0
      %1669 = vmatpush1.bf16.msra.mxu0 0
      %1670 = vmatprep.subr.bf16.mxu0 0
      %1671 = vmatpush1.bf16.msra.mxu0 0
      %1672 = vmatprep.subr.bf16.mxu0 0
      %1673 = vmatpush1.bf16.msra.mxu0 0
      %1674 = vmatprep.subr.bf16.mxu0 0
      %1675 = vmatpush1.bf16.msra.mxu0 %v1658
      %1676 = vmatprep.subr.bf16.mxu0 0
      %1677 = vmatpush2.bf16.msra.mxu0 0
      %1678 = vmatprep.subr.bf16.mxu0 0
      %1679 = vmatpush2.bf16.msra.mxu0 0
      %1680 = vmatprep.subr.bf16.mxu0 0
      %1681 = vmatpush2.bf16.msra.mxu0 0
      %1682 = vmatprep.subr.bf16.mxu0 0
      %1683 = vmatpush2.bf16.msra.mxu0 0
      %1684 = vmatprep.subr.bf16.mxu0 0
      %1685 = vmatpush2.bf16.msra.mxu0 0
      %1686 = vmatprep.subr.bf16.mxu0 0
      %1687 = vmatpush2.bf16.msra.mxu0 0
      %1688 = vmatprep.subr.bf16.mxu0 0
      %1689 = vmatpush2.bf16.msra.mxu0 0
      %1690 = vmatprep.subr.bf16.mxu0 0
      %1691 = vmatpush2.bf16.msra.mxu0 0
      %1692 = vmatprep.mubr.bf16.mxu0 0
      %1693 = vmatmul.mubr.bf16.gmra.mxu0 %v1655
      %v1694 = vpop.f32.mrf.mxu0
      %v1695 = vadd.f32 0.0, %v1694
      %v1696 = vpop.f32.mrf.mxu0
      %v1697 = vpop.f32.mrf.mxu0
      %v1698 = vadd.f32 0.0, %v1697
      %v1699 = vpop.f32.mrf.mxu0
      %1700 = vdwg.mxu0
      %v1702 = vsel %vm1412, %v1530, 0
      %v1705 = vsel %vm1416, %v1406, 0
      %1707 = vmatprep.subr.bf16.mxu0 0
      %1708 = vmatpush1.bf16.msra.mxu0 0
      %1709 = vmatprep.subr.bf16.mxu0 0
      %1710 = vmatpush1.bf16.msra.mxu0 0
      %1711 = vmatprep.subr.bf16.mxu0 0
      %1712 = vmatpush1.bf16.msra.mxu0 0
      %1713 = vmatprep.subr.bf16.mxu0 0
      %1714 = vmatpush1.bf16.msra.mxu0 0
      %1715 = vmatprep.subr.bf16.mxu0 0
      %1716 = vmatpush1.bf16.msra.mxu0 0
      %1717 = vmatprep.subr.bf16.mxu0 0
      %1718 = vmatpush1.bf16.msra.mxu0 0
      %1719 = vmatprep.subr.bf16.mxu0 0
      %1720 = vmatpush1.bf16.msra.mxu0 0
      %1721 = vmatprep.subr.bf16.mxu0 0
      %1722 = vmatpush1.bf16.msra.mxu0 %v1705
      %1723 = vmatprep.subr.bf16.mxu0 0
      %1724 = vmatpush2.bf16.msra.mxu0 0
      %1725 = vmatprep.subr.bf16.mxu0 0
      %1726 = vmatpush2.bf16.msra.mxu0 0
      %1727 = vmatprep.subr.bf16.mxu0 0
      %1728 = vmatpush2.bf16.msra.mxu0 0
      %1729 = vmatprep.subr.bf16.mxu0 0
      %1730 = vmatpush2.bf16.msra.mxu0 0
      %1731 = vmatprep.subr.bf16.mxu0 0
      %1732 = vmatpush2.bf16.msra.mxu0 0
      %1733 = vmatprep.subr.bf16.mxu0 0
      %1734 = vmatpush2.bf16.msra.mxu0 0
      %1735 = vmatprep.subr.bf16.mxu0 0
      %1736 = vmatpush2.bf16.msra.mxu0 0
      %1737 = vmatprep.subr.bf16.mxu0 0
      %1738 = vmatpush2.bf16.msra.mxu0 0
      %1739 = vmatprep.mubr.bf16.mxu0 0
      %1740 = vmatmul.mubr.bf16.gmra.mxu0 %v1702
      %v1741 = vpop.f32.mrf.mxu0
      %v1742 = vadd.f32 %v1695, %v1741
      %v1743 = vpop.f32.mrf.mxu0
      %v1744 = vpop.f32.mrf.mxu0
      %v1745 = vadd.f32 %v1698, %v1744
      %v1746 = vpop.f32.mrf.mxu0
      %1747 = vdwg.mxu0
      %v1748 = vpack.c.bf16 %v1392, %v1392
      %1749 = vrot.lane.b32.xlu0 %v1410, 112
      %v1750 = vpop.permute.xlu0 %1749
      %v1752 = vsel %vm1412, %v1750, 0
      %v1755 = vsel %vm1416, %v1748, 0
      %1757 = vmatprep.subr.bf16.mxu0 0
      %1758 = vmatpush1.bf16.msra.mxu0 0
      %1759 = vmatprep.subr.bf16.mxu0 0
      %1760 = vmatpush1.bf16.msra.mxu0 0
      %1761 = vmatprep.subr.bf16.mxu0 0
      %1762 = vmatpush1.bf16.msra.mxu0 0
      %1763 = vmatprep.subr.bf16.mxu0 0
      %1764 = vmatpush1.bf16.msra.mxu0 0
      %1765 = vmatprep.subr.bf16.mxu0 0
      %1766 = vmatpush1.bf16.msra.mxu0 0
      %1767 = vmatprep.subr.bf16.mxu0 0
      %1768 = vmatpush1.bf16.msra.mxu0 0
      %1769 = vmatprep.subr.bf16.mxu0 0
      %1770 = vmatpush1.bf16.msra.mxu0 0
      %1771 = vmatprep.subr.bf16.mxu0 0
      %1772 = vmatpush1.bf16.msra.mxu0 %v1755
      %1773 = vmatprep.subr.bf16.mxu0 0
      %1774 = vmatpush2.bf16.msra.mxu0 0
      %1775 = vmatprep.subr.bf16.mxu0 0
      %1776 = vmatpush2.bf16.msra.mxu0 0
      %1777 = vmatprep.subr.bf16.mxu0 0
      %1778 = vmatpush2.bf16.msra.mxu0 0
      %1779 = vmatprep.subr.bf16.mxu0 0
      %1780 = vmatpush2.bf16.msra.mxu0 0
      %1781 = vmatprep.subr.bf16.mxu0 0
      %1782 = vmatpush2.bf16.msra.mxu0 0
      %1783 = vmatprep.subr.bf16.mxu0 0
      %1784 = vmatpush2.bf16.msra.mxu0 0
      %1785 = vmatprep.subr.bf16.mxu0 0
      %1786 = vmatpush2.bf16.msra.mxu0 0
      %1787 = vmatprep.subr.bf16.mxu0 0
      %1788 = vmatpush2.bf16.msra.mxu0 0
      %1789 = vmatprep.mubr.bf16.mxu0 0
      %1790 = vmatmul.mubr.bf16.gmra.mxu0 %v1752
      %v1791 = vpop.f32.mrf.mxu0
      %v1792 = vadd.f32 %v1094, %v1791
      %v1793 = vpop.f32.mrf.mxu0
      %v1794 = vpop.f32.mrf.mxu0
      %v1795 = vadd.f32 %v1095, %v1794
      %v1796 = vpop.f32.mrf.mxu0
      %1797 = vdwg.mxu0
      %v1798 = vsel %vm1461, %v1792, -inf
      %1799 = vmax.xlane.f32.xlu0 %v1798
      %v1800 = vpop.xlane.xlu0 %1799
      %v1801 = vsel %vm1461, %v1795, -inf
      %1802 = vmax.xlane.f32.xlu0 %v1801
      %v1803 = vpop.xlane.xlu0 %1802
      %v1804 = vsub.f32 %v1792, %v1800
      %v1805 = vsub.f32 %v1795, %v1803
      %v1806 = vmul.f32 %v1804, 1.442695
      %v1807 = vpow.pop %v1806
      %v1808 = vmul.f32 %v1805, 1.442695
      %v1809 = vpow.pop %v1808
      %v1810 = vsel %vm1461, %v1807, 0.0
      %1811 = vadd.xlane.f32.xlu0 %v1810
      %v1812 = vpop.xlane.xlu0 %1811
      %v1813 = vsel %vm1461, %v1809, 0.0
      %1814 = vadd.xlane.f32.xlu0 %v1813
      %v1815 = vpop.xlane.xlu0 %1814
      %v1816 = vrcp.pop %v1812
      %v1817 = vrcp.pop %v1815
      %v1818 = vmul.f32 %v1807, %v1816
      %v1819 = vmul.f32 %v1809, %v1817
      %v1820 = vpack.c.bf16 %v1819, %v1818
      %1821 = vrot.lane.b32.xlu0 %v1484, 112
      %v1822 = vpop.permute.xlu0 %1821
      %v1825 = vsel %vm1461, %v1820, 0
      %1827 = vmatprep.subr.bf16.mxu0 0
      %1828 = vmatpush1.bf16.msra.mxu0 0
      %1829 = vmatprep.subr.bf16.mxu0 0
      %1830 = vmatpush1.bf16.msra.mxu0 0
      %1831 = vmatprep.subr.bf16.mxu0 0
      %1832 = vmatpush1.bf16.msra.mxu0 0
      %1833 = vmatprep.subr.bf16.mxu0 0
      %1834 = vmatpush1.bf16.msra.mxu0 0
      %1835 = vmatprep.subr.bf16.mxu0 0
      %1836 = vmatpush1.bf16.msra.mxu0 0
      %1837 = vmatprep.subr.bf16.mxu0 0
      %1838 = vmatpush1.bf16.msra.mxu0 0
      %1839 = vmatprep.subr.bf16.mxu0 0
      %1840 = vmatpush1.bf16.msra.mxu0 0
      %1841 = vmatprep.subr.bf16.mxu0 0
      %1842 = vmatpush1.bf16.msra.mxu0 %v1822
      %1843 = vmatprep.subr.bf16.mxu0 0
      %1844 = vmatpush2.bf16.msra.mxu0 0
      %1845 = vmatprep.subr.bf16.mxu0 0
      %1846 = vmatpush2.bf16.msra.mxu0 0
      %1847 = vmatprep.subr.bf16.mxu0 0
      %1848 = vmatpush2.bf16.msra.mxu0 0
      %1849 = vmatprep.subr.bf16.mxu0 0
      %1850 = vmatpush2.bf16.msra.mxu0 0
      %1851 = vmatprep.subr.bf16.mxu0 0
      %1852 = vmatpush2.bf16.msra.mxu0 0
      %1853 = vmatprep.subr.bf16.mxu0 0
      %1854 = vmatpush2.bf16.msra.mxu0 0
      %1855 = vmatprep.subr.bf16.mxu0 0
      %1856 = vmatpush2.bf16.msra.mxu0 0
      %1857 = vmatprep.subr.bf16.mxu0 0
      %1858 = vmatpush2.bf16.msra.mxu0 0
      %1859 = vmatprep.mubr.bf16.mxu0 0
      %1860 = vmatmul.mubr.bf16.gmra.mxu0 %v1825
      %v1861 = vpop.f32.mrf.mxu0
      %v1862 = vadd.f32 0.0, %v1861
      %v1863 = vpop.f32.mrf.mxu0
      %v1864 = vpop.f32.mrf.mxu0
      %v1865 = vadd.f32 0.0, %v1864
      %v1866 = vpop.f32.mrf.mxu0
      %1867 = vdwg.mxu0
      %v1868 = vpack.c.bf16 %v1865, %v1862
      %v1870 = vsel %vm1412, %v1868, 0
      %v1873 = vsel %vm1416, %v1408, 0
      %1875 = vmatprep.subr.bf16.mxu0 0
      %1876 = vmatpush1.bf16.msra.mxu0 0
      %1877 = vmatprep.subr.bf16.mxu0 0
      %1878 = vmatpush1.bf16.msra.mxu0 0
      %1879 = vmatprep.subr.bf16.mxu0 0
      %1880 = vmatpush1.bf16.msra.mxu0 0
      %1881 = vmatprep.subr.bf16.mxu0 0
      %1882 = vmatpush1.bf16.msra.mxu0 0
      %1883 = vmatprep.subr.bf16.mxu0 0
      %1884 = vmatpush1.bf16.msra.mxu0 0
      %1885 = vmatprep.subr.bf16.mxu0 0
      %1886 = vmatpush1.bf16.msra.mxu0 0
      %1887 = vmatprep.subr.bf16.mxu0 0
      %1888 = vmatpush1.bf16.msra.mxu0 0
      %1889 = vmatprep.subr.bf16.mxu0 0
      %1890 = vmatpush1.bf16.msra.mxu0 %v1873
      %1891 = vmatprep.subr.bf16.mxu0 0
      %1892 = vmatpush2.bf16.msra.mxu0 0
      %1893 = vmatprep.subr.bf16.mxu0 0
      %1894 = vmatpush2.bf16.msra.mxu0 0
      %1895 = vmatprep.subr.bf16.mxu0 0
      %1896 = vmatpush2.bf16.msra.mxu0 0
      %1897 = vmatprep.subr.bf16.mxu0 0
      %1898 = vmatpush2.bf16.msra.mxu0 0
      %1899 = vmatprep.subr.bf16.mxu0 0
      %1900 = vmatpush2.bf16.msra.mxu0 0
      %1901 = vmatprep.subr.bf16.mxu0 0
      %1902 = vmatpush2.bf16.msra.mxu0 0
      %1903 = vmatprep.subr.bf16.mxu0 0
      %1904 = vmatpush2.bf16.msra.mxu0 0
      %1905 = vmatprep.subr.bf16.mxu0 0
      %1906 = vmatpush2.bf16.msra.mxu0 0
      %1907 = vmatprep.mubr.bf16.mxu0 0
      %1908 = vmatmul.mubr.bf16.gmra.mxu0 %v1870
      %v1909 = vpop.f32.mrf.mxu0
      %v1910 = vadd.f32 0.0, %v1909
      %v1911 = vpop.f32.mrf.mxu0
      %v1912 = vpop.f32.mrf.mxu0
      %v1913 = vadd.f32 0.0, %v1912
      %v1914 = vpop.f32.mrf.mxu0
      %1915 = vdwg.mxu0
      %v1916 = vadd.f32 %v1742, %v1910
      %v1917 = vadd.f32 %v1745, %v1913
      %v1918 = vpack.c.bf16 %v1393, %v1393
      %1919 = vrot.lane.b32.xlu0 %v1410, 104
      %v1920 = vpop.permute.xlu0 %1919
      %v1922 = vsel %vm1412, %v1920, 0
      %v1925 = vsel %vm1416, %v1918, 0
      %1927 = vmatprep.subr.bf16.mxu0 0
      %1928 = vmatpush1.bf16.msra.mxu0 0
      %1929 = vmatprep.subr.bf16.mxu0 0
      %1930 = vmatpush1.bf16.msra.mxu0 0
      %1931 = vmatprep.subr.bf16.mxu0 0
      %1932 = vmatpush1.bf16.msra.mxu0 0
      %1933 = vmatprep.subr.bf16.mxu0 0
      %1934 = vmatpush1.bf16.msra.mxu0 0
      %1935 = vmatprep.subr.bf16.mxu0 0
      %1936 = vmatpush1.bf16.msra.mxu0 0
      %1937 = vmatprep.subr.bf16.mxu0 0
      %1938 = vmatpush1.bf16.msra.mxu0 0
      %1939 = vmatprep.subr.bf16.mxu0 0
      %1940 = vmatpush1.bf16.msra.mxu0 0
      %1941 = vmatprep.subr.bf16.mxu0 0
      %1942 = vmatpush1.bf16.msra.mxu0 %v1925
      %1943 = vmatprep.subr.bf16.mxu0 0
      %1944 = vmatpush2.bf16.msra.mxu0 0
      %1945 = vmatprep.subr.bf16.mxu0 0
      %1946 = vmatpush2.bf16.msra.mxu0 0
      %1947 = vmatprep.subr.bf16.mxu0 0
      %1948 = vmatpush2.bf16.msra.mxu0 0
      %1949 = vmatprep.subr.bf16.mxu0 0
      %1950 = vmatpush2.bf16.msra.mxu0 0
      %1951 = vmatprep.subr.bf16.mxu0 0
      %1952 = vmatpush2.bf16.msra.mxu0 0
      %1953 = vmatprep.subr.bf16.mxu0 0
      %1954 = vmatpush2.bf16.msra.mxu0 0
      %1955 = vmatprep.subr.bf16.mxu0 0
      %1956 = vmatpush2.bf16.msra.mxu0 0
      %1957 = vmatprep.subr.bf16.mxu0 0
      %1958 = vmatpush2.bf16.msra.mxu0 0
      %1959 = vmatprep.mubr.bf16.mxu0 0
      %1960 = vmatmul.mubr.bf16.gmra.mxu0 %v1922
      %v1961 = vpop.f32.mrf.mxu0
      %v1962 = vadd.f32 %v1094, %v1961
      %v1963 = vpop.f32.mrf.mxu0
      %v1964 = vpop.f32.mrf.mxu0
      %v1965 = vadd.f32 %v1095, %v1964
      %v1966 = vpop.f32.mrf.mxu0
      %1967 = vdwg.mxu0
      %v1968 = vsel %vm1461, %v1962, -inf
      %1969 = vmax.xlane.f32.xlu0 %v1968
      %v1970 = vpop.xlane.xlu0 %1969
      %v1971 = vsel %vm1461, %v1965, -inf
      %1972 = vmax.xlane.f32.xlu0 %v1971
      %v1973 = vpop.xlane.xlu0 %1972
      %v1974 = vsub.f32 %v1962, %v1970
      %v1975 = vsub.f32 %v1965, %v1973
      %v1976 = vmul.f32 %v1974, 1.442695
      %v1977 = vpow.pop %v1976
      %v1978 = vmul.f32 %v1975, 1.442695
      %v1979 = vpow.pop %v1978
      %v1980 = vsel %vm1461, %v1977, 0.0
      %1981 = vadd.xlane.f32.xlu0 %v1980
      %v1982 = vpop.xlane.xlu0 %1981
      %v1983 = vsel %vm1461, %v1979, 0.0
      %1984 = vadd.xlane.f32.xlu0 %v1983
      %v1985 = vpop.xlane.xlu0 %1984
      %v1986 = vrcp.pop %v1982
      %v1987 = vrcp.pop %v1985
      %v1988 = vmul.f32 %v1977, %v1986
      %v1989 = vmul.f32 %v1979, %v1987
      %v1990 = vpack.c.bf16 %v1989, %v1988
      %1991 = vrot.lane.b32.xlu0 %v1484, 104
      %v1992 = vpop.permute.xlu0 %1991
      %v1995 = vsel %vm1461, %v1990, 0
      %1997 = vmatprep.subr.bf16.mxu0 0
      %1998 = vmatpush1.bf16.msra.mxu0 0
      %1999 = vmatprep.subr.bf16.mxu0 0
      %2000 = vmatpush1.bf16.msra.mxu0 0
      %2001 = vmatprep.subr.bf16.mxu0 0
      %2002 = vmatpush1.bf16.msra.mxu0 0
      %2003 = vmatprep.subr.bf16.mxu0 0
      %2004 = vmatpush1.bf16.msra.mxu0 0
      %2005 = vmatprep.subr.bf16.mxu0 0
      %2006 = vmatpush1.bf16.msra.mxu0 0
      %2007 = vmatprep.subr.bf16.mxu0 0
      %2008 = vmatpush1.bf16.msra.mxu0 0
      %2009 = vmatprep.subr.bf16.mxu0 0
      %2010 = vmatpush1.bf16.msra.mxu0 0
      %2011 = vmatprep.subr.bf16.mxu0 0
      %2012 = vmatpush1.bf16.msra.mxu0 %v1992
      %2013 = vmatprep.subr.bf16.mxu0 0
      %2014 = vmatpush2.bf16.msra.mxu0 0
      %2015 = vmatprep.subr.bf16.mxu0 0
      %2016 = vmatpush2.bf16.msra.mxu0 0
      %2017 = vmatprep.subr.bf16.mxu0 0
      %2018 = vmatpush2.bf16.msra.mxu0 0
      %2019 = vmatprep.subr.bf16.mxu0 0
      %2020 = vmatpush2.bf16.msra.mxu0 0
      %2021 = vmatprep.subr.bf16.mxu0 0
      %2022 = vmatpush2.bf16.msra.mxu0 0
      %2023 = vmatprep.subr.bf16.mxu0 0
      %2024 = vmatpush2.bf16.msra.mxu0 0
      %2025 = vmatprep.subr.bf16.mxu0 0
      %2026 = vmatpush2.bf16.msra.mxu0 0
      %2027 = vmatprep.subr.bf16.mxu0 0
      %2028 = vmatpush2.bf16.msra.mxu0 0
      %2029 = vmatprep.mubr.bf16.mxu0 0
      %2030 = vmatmul.mubr.bf16.gmra.mxu0 %v1995
      %v2031 = vpop.f32.mrf.mxu0
      %v2032 = vadd.f32 0.0, %v2031
      %v2033 = vpop.f32.mrf.mxu0
      %v2034 = vpop.f32.mrf.mxu0
      %v2035 = vadd.f32 0.0, %v2034
      %v2036 = vpop.f32.mrf.mxu0
      %2037 = vdwg.mxu0
      %v2038 = vpack.c.bf16 %v2035, %v2032
      %v2040 = vsel %vm1412, %v2038, 0
      %v2043 = vsel %vm1416, %v1409, 0
      %2045 = vmatprep.subr.bf16.mxu0 0
      %2046 = vmatpush1.bf16.msra.mxu0 0
      %2047 = vmatprep.subr.bf16.mxu0 0
      %2048 = vmatpush1.bf16.msra.mxu0 0
      %2049 = vmatprep.subr.bf16.mxu0 0
      %2050 = vmatpush1.bf16.msra.mxu0 0
      %2051 = vmatprep.subr.bf16.mxu0 0
      %2052 = vmatpush1.bf16.msra.mxu0 0
      %2053 = vmatprep.subr.bf16.mxu0 0
      %2054 = vmatpush1.bf16.msra.mxu0 0
      %2055 = vmatprep.subr.bf16.mxu0 0
      %2056 = vmatpush1.bf16.msra.mxu0 0
      %2057 = vmatprep.subr.bf16.mxu0 0
      %2058 = vmatpush1.bf16.msra.mxu0 0
      %2059 = vmatprep.subr.bf16.mxu0 0
      %2060 = vmatpush1.bf16.msra.mxu0 %v2043
      %2061 = vmatprep.subr.bf16.mxu0 0
      %2062 = vmatpush2.bf16.msra.mxu0 0
      %2063 = vmatprep.subr.bf16.mxu0 0
      %2064 = vmatpush2.bf16.msra.mxu0 0
      %2065 = vmatprep.subr.bf16.mxu0 0
      %2066 = vmatpush2.bf16.msra.mxu0 0
      %2067 = vmatprep.subr.bf16.mxu0 0
      %2068 = vmatpush2.bf16.msra.mxu0 0
      %2069 = vmatprep.subr.bf16.mxu0 0
      %2070 = vmatpush2.bf16.msra.mxu0 0
      %2071 = vmatprep.subr.bf16.mxu0 0
      %2072 = vmatpush2.bf16.msra.mxu0 0
      %2073 = vmatprep.subr.bf16.mxu0 0
      %2074 = vmatpush2.bf16.msra.mxu0 0
      %2075 = vmatprep.subr.bf16.mxu0 0
      %2076 = vmatpush2.bf16.msra.mxu0 0
      %2077 = vmatprep.mubr.bf16.mxu0 0
      %2078 = vmatmul.mubr.bf16.gmra.mxu0 %v2040
      %v2079 = vpop.f32.mrf.mxu0
      %v2080 = vadd.f32 0.0, %v2079
      %v2081 = vpop.f32.mrf.mxu0
      %v2082 = vpop.f32.mrf.mxu0
      %v2083 = vadd.f32 0.0, %v2082
      %v2084 = vpop.f32.mrf.mxu0
      %2085 = vdwg.mxu0
      %v2086 = vadd.f32 %v1916, %v2080
      %v2087 = vadd.f32 %v1917, %v2083
      %v2088 = vadd.f32 %v1128, %v2086
      %v2089 = vadd.f32 %v1129, %v2087
      %v2090 = vld [vmem:[%s995] sm:$0x1]
      %v2092 = vlaneseq
      %v2093 = vshrl.u32 %v2092, 7
      %v2094 = vsub.s32 0, %v2093
      %v2095 = vrot.slane %v2090, %v2094
      %v2097 = vadd.f32 %v2088, %v2095
      %v2098 = vadd.f32 %v2089, %v2095
      %v2099 = vld [vmem:[%s998] sm:$0x1]
      %v2100 = vld [vmem:[%s1001] sm:$0x1]
      %v2101 = vsel %vm1132, %v2097, 0.0
      %2102 = vadd.xlane.f32.xlu0 %v2101
      %v2103 = vpop.xlane.xlu0 %2102
      %v2104 = vsel %vm1132, %v2098, 0.0
      %2105 = vadd.xlane.f32.xlu0 %v2104
      %v2106 = vpop.xlane.xlu0 %2105
      %v2107 = vmul.f32 %v2103, %v1139
      %v2108 = vmul.f32 %v2106, %v1139
      %v2109 = vsub.f32 %v2097, %v2107
      %v2110 = vsub.f32 %v2098, %v2108
      %v2111 = vmul.f32 %v2109, %v2109
      %v2112 = vmul.f32 %v2110, %v2110
      %v2113 = vsel %vm1132, %v2111, 0.0
      %2114 = vadd.xlane.f32.xlu0 %v2113
      %v2115 = vpop.xlane.xlu0 %2114
      %v2116 = vsel %vm1132, %v2112, 0.0
      %2117 = vadd.xlane.f32.xlu0 %v2116
      %v2118 = vpop.xlane.xlu0 %2117
      %v2119 = vmul.f32 %v2115, %v1139
      %v2120 = vmul.f32 %v2118, %v1139
      %v2121 = vadd.f32 %v2119, 1e-05
      %v2122 = vadd.f32 %v2120, 1e-05
      %v2123 = vrsqrt.pop %v2121
      %v2124 = vrsqrt.pop %v2122
      %v2125 = vmul.f32 %v2109, %v2123
      %v2126 = vmul.f32 %v2110, %v2124
      %v2128 = vlaneseq
      %v2129 = vshrl.u32 %v2128, 7
      %v2130 = vsub.s32 0, %v2129
      %v2131 = vrot.slane %v2099, %v2130
      %v2133 = vmul.f32 %v2125, %v2131
      %v2134 = vmul.f32 %v2126, %v2131
      %v2136 = vlaneseq
      %v2137 = vshrl.u32 %v2136, 7
      %v2138 = vsub.s32 0, %v2137
      %v2139 = vrot.slane %v2100, %v2138
      %v2141 = vadd.f32 %v2133, %v2139
      %v2142 = vadd.f32 %v2134, %v2139
      %v2143 = vpack.c.bf16 %v2142, %v2141
      %v2144 = vld [vmem:[%s1006] sm:$0xf]
      %v2145 = vld [vmem:[%s1006 + $0x4] sm:$0xf]
      %v2146 = vld [vmem:[%s1006 + $0x8] sm:$0xf]
      %v2147 = vld [vmem:[%s1006 + $0xc] sm:$0xf]
      %v2148 = vld [vmem:[%s1009] sm:$0x1]
      %v2150 = vlaneseq
      %v2151 = vshrl.u32 %v2150, 7
      %v2152 = vsub.s32 0, %v2151
      %v2153 = vrot.slane %v2148, %v2152
      %v2159 = vunpack.c.l.b16 %v2144
      %v2160 = vunpack.c.l.b16 %v2145
      %v2161 = vunpack.c.l.b16 %v2146
      %v2162 = vunpack.c.l.b16 %v2147
      %v2163 = vpack.c.b16 %v2160, %v2159
      %v2164 = vpack.c.b16 %v2162, %v2161
      %v2168 = vsel %vm1132, %v2143, 0
      %2170 = vmatprep.subr.bf16.mxu0 0
      %2171 = vmatpush1.bf16.msra.mxu0 0
      %2172 = vmatprep.subr.bf16.mxu0 0
      %2173 = vmatpush1.bf16.msra.mxu0 0
      %2174 = vmatprep.subr.bf16.mxu0 0
      %2175 = vmatpush1.bf16.msra.mxu0 0
      %2176 = vmatprep.subr.bf16.mxu0 0
      %2177 = vmatpush1.bf16.msra.mxu0 0
      %2178 = vmatprep.subr.bf16.mxu0 0
      %2179 = vmatpush1.bf16.msra.mxu0 0
      %2180 = vmatprep.subr.bf16.mxu0 0
      %2181 = vmatpush1.bf16.msra.mxu0 0
      %2182 = vmatprep.subr.bf16.mxu0 0
      %2183 = vmatpush1.bf16.msra.mxu0 %v2164
      %2184 = vmatprep.subr.bf16.mxu0 0
      %2185 = vmatpush1.bf16.msra.mxu0 %v2163
      %2186 = vmatprep.subr.bf16.mxu0 0
      %2187 = vmatpush2.bf16.msra.mxu0 0
      %2188 = vmatprep.subr.bf16.mxu0 0
      %2189 = vmatpush2.bf16.msra.mxu0 0
      %2190 = vmatprep.subr.bf16.mxu0 0
      %2191 = vmatpush2.bf16.msra.mxu0 0
      %2192 = vmatprep.subr.bf16.mxu0 0
      %2193 = vmatpush2.bf16.msra.mxu0 0
      %2194 = vmatprep.subr.bf16.mxu0 0
      %2195 = vmatpush2.bf16.msra.mxu0 0
      %2196 = vmatprep.subr.bf16.mxu0 0
      %2197 = vmatpush2.bf16.msra.mxu0 0
      %2198 = vmatprep.subr.bf16.mxu0 0
      %2199 = vmatpush2.bf16.msra.mxu0 0
      %2200 = vmatprep.subr.bf16.mxu0 0
      %2201 = vmatpush2.bf16.msra.mxu0 0
      %2202 = vmatprep.mubr.bf16.mxu0 0
      %2203 = vmatmul.mubr.bf16.gmra.mxu0 %v2168
      %v2204 = vpop.f32.mrf.mxu0
      %v2205 = vadd.f32 %v2153, %v2204
      %v2206 = vpop.f32.mrf.mxu0
      %v2207 = vpop.f32.mrf.mxu0
      %v2208 = vadd.f32 %v2153, %v2207
      %v2209 = vpop.f32.mrf.mxu0
      %2210 = vdwg.mxu0
      %v2211 = vmul.f32 %v2205, %v2205
      %v2212 = vmul.f32 %v2208, %v2208
      %v2213 = vmul.f32 %v2205, %v2211
      %v2214 = vmul.f32 %v2208, %v2212
      %v2215 = vmul.f32 %v2213, 0.044715
      %v2216 = vmul.f32 %v2214, 0.044715
      %v2217 = vadd.f32 %v2205, %v2215
      %v2218 = vadd.f32 %v2208, %v2216
      %v2219 = vmul.f32 %v2217, 0.7978846
      %v2220 = vmul.f32 %v2218, 0.7978846
      %v2221 = vtanh.pop %v2219
      %v2222 = vtanh.pop %v2220
      %v2223 = vadd.f32 %v2221, 1.0
      %v2224 = vadd.f32 %v2222, 1.0
      %v2225 = vmul.f32 %v2223, 0.5
      %v2226 = vmul.f32 %v2224, 0.5
      %v2227 = vmul.f32 %v2205, %v2225
      %v2228 = vmul.f32 %v2208, %v2226
      %v2229 = vpack.c.bf16 %v2228, %v2227
      %v2230 = vld [vmem:[%s1014] sm:$0xf]
      %v2231 = vld [vmem:[%s1014 + $0x4] sm:$0xf]
      %v2232 = vld [vmem:[%s1014 + $0x8] sm:$0xf]
      %v2233 = vld [vmem:[%s1014 + $0xc] sm:$0xf]
      %v2234 = vld [vmem:[%s1014 + $0x10] sm:$0xf]
      %v2235 = vld [vmem:[%s1014 + $0x14] sm:$0xf]
      %v2236 = vld [vmem:[%s1014 + $0x18] sm:$0xf]
      %v2237 = vld [vmem:[%s1014 + $0x1c] sm:$0xf]
      %v2238 = vld [vmem:[%s1014 + $0x20] sm:$0xf]
      %v2239 = vld [vmem:[%s1014 + $0x24] sm:$0xf]
      %v2240 = vld [vmem:[%s1014 + $0x28] sm:$0xf]
      %v2241 = vld [vmem:[%s1014 + $0x2c] sm:$0xf]
      %v2242 = vld [vmem:[%s1014 + $0x30] sm:$0xf]
      %v2243 = vld [vmem:[%s1014 + $0x34] sm:$0xf]
      %v2244 = vld [vmem:[%s1014 + $0x38] sm:$0xf]
      %v2245 = vld [vmem:[%s1014 + $0x3c] sm:$0xf]
      %v2262 = vunpack.c.l.b16 %v2230
      %v2263 = vunpack.c.l.b16 %v2231
      %v2264 = vunpack.c.l.b16 %v2232
      %v2265 = vunpack.c.l.b16 %v2233
      %v2266 = vunpack.c.l.b16 %v2234
      %v2267 = vunpack.c.l.b16 %v2235
      %v2268 = vunpack.c.l.b16 %v2236
      %v2269 = vunpack.c.l.b16 %v2237
      %v2270 = vunpack.c.l.b16 %v2238
      %v2271 = vunpack.c.l.b16 %v2239
      %v2272 = vunpack.c.l.b16 %v2240
      %v2273 = vunpack.c.l.b16 %v2241
      %v2274 = vunpack.c.l.b16 %v2242
      %v2275 = vunpack.c.l.b16 %v2243
      %v2276 = vunpack.c.l.b16 %v2244
      %v2277 = vunpack.c.l.b16 %v2245
      %v2278 = vpack.c.b16 %v2263, %v2262
      %v2279 = vpack.c.b16 %v2265, %v2264
      %v2280 = vpack.c.b16 %v2267, %v2266
      %v2281 = vpack.c.b16 %v2269, %v2268
      %v2282 = vpack.c.b16 %v2271, %v2270
      %v2283 = vpack.c.b16 %v2273, %v2272
      %v2284 = vpack.c.b16 %v2275, %v2274
      %v2285 = vpack.c.b16 %v2277, %v2276
      %2294 = vmatprep.subr.bf16.mxu0 0
      %2295 = vmatpush1.bf16.msra.mxu0 %v2285
      %2296 = vmatprep.subr.bf16.mxu0 0
      %2297 = vmatpush1.bf16.msra.mxu0 %v2284
      %2298 = vmatprep.subr.bf16.mxu0 0
      %2299 = vmatpush1.bf16.msra.mxu0 %v2283
      %2300 = vmatprep.subr.bf16.mxu0 0
      %2301 = vmatpush1.bf16.msra.mxu0 %v2282
      %2302 = vmatprep.subr.bf16.mxu0 0
      %2303 = vmatpush1.bf16.msra.mxu0 %v2281
      %2304 = vmatprep.subr.bf16.mxu0 0
      %2305 = vmatpush1.bf16.msra.mxu0 %v2280
      %2306 = vmatprep.subr.bf16.mxu0 0
      %2307 = vmatpush1.bf16.msra.mxu0 %v2279
      %2308 = vmatprep.subr.bf16.mxu0 0
      %2309 = vmatpush1.bf16.msra.mxu0 %v2278
      %2310 = vmatprep.subr.bf16.mxu0 0
      %2311 = vmatpush2.bf16.msra.mxu0 0
      %2312 = vmatprep.subr.bf16.mxu0 0
      %2313 = vmatpush2.bf16.msra.mxu0 0
      %2314 = vmatprep.subr.bf16.mxu0 0
      %2315 = vmatpush2.bf16.msra.mxu0 0
      %2316 = vmatprep.subr.bf16.mxu0 0
      %2317 = vmatpush2.bf16.msra.mxu0 0
      %2318 = vmatprep.subr.bf16.mxu0 0
      %2319 = vmatpush2.bf16.msra.mxu0 0
      %2320 = vmatprep.subr.bf16.mxu0 0
      %2321 = vmatpush2.bf16.msra.mxu0 0
      %2322 = vmatprep.subr.bf16.mxu0 0
      %2323 = vmatpush2.bf16.msra.mxu0 0
      %2324 = vmatprep.subr.bf16.mxu0 0
      %2325 = vmatpush2.bf16.msra.mxu0 0
      %2326 = vmatprep.mubr.bf16.mxu0 0
      %2327 = vmatmul.mubr.bf16.gmra.mxu0 %v2229
      %v2328 = vpop.f32.mrf.mxu0
      %v2329 = vadd.f32 0.0, %v2328
      %v2330 = vpop.f32.mrf.mxu0
      %v2331 = vpop.f32.mrf.mxu0
      %v2332 = vadd.f32 0.0, %v2331
      %v2333 = vpop.f32.mrf.mxu0
      %2334 = vdwg.mxu0
      %v2335 = vadd.f32 %v2097, %v2329
      %v2336 = vadd.f32 %v2098, %v2332
      %v2337 = vld [vmem:[%s1017] sm:$0x1]
      %v2339 = vlaneseq
      %v2340 = vshrl.u32 %v2339, 7
      %v2341 = vsub.s32 0, %v2340
      %v2342 = vrot.slane %v2337, %v2341
      %v2344 = vadd.f32 %v2335, %v2342
      %v2345 = vadd.f32 %v2336, %v2342
      %2346 = vst.msk [vmem:[#allocation2] sm:$0xff] %vm1132, %v2344
      %2347 = vst.msk [vmem:[#allocation2 + $0x8] sm:$0xff] %vm1132, %v2345
      %p2348 = scmp.eq.s32.totalorder %s36, 1
      // Predicated region
      $region125: #{denoising_network_forward.1} parent=119 // pred_check
        %p2349 = pneg %p2348
      $region126: #{denoising_network_forward.1} parent=119 // pred_check_branch
        %2351 = sbr.rel (%p2349) target = $region128
      $region127: #{denoising_network_forward.1} parent=119 // pred_region
        %v2352 = vpack.c.bf16 %v2345, %v2344
        %v2353 = vld [vmem:[%s23] sm:$0xf]
        %v2354 = vld [vmem:[%s23 + $0x4] sm:$0xf]
        %v2355 = vld [vmem:[%s23 + $0x8] sm:$0xf]
        %v2356 = vld [vmem:[%s23 + $0xc] sm:$0xf]
        %v2357 = vld [vmem:[%s24] sm:$0x1]
        %v2359 = vlaneseq
        %v2360 = vshrl.u32 %v2359, 7
        %v2361 = vsub.s32 0, %v2360
        %v2362 = vrot.slane %v2357, %v2361
        %v2368 = vunpack.c.l.b16 %v2353
        %v2369 = vunpack.c.l.b16 %v2354
        %v2370 = vunpack.c.l.b16 %v2355
        %v2371 = vunpack.c.l.b16 %v2356
        %v2372 = vpack.c.b16 %v2369, %v2368
        %v2373 = vpack.c.b16 %v2371, %v2370
        %v2377 = vsel %vm1132, %v2352, 0
        %2379 = vmatprep.subr.bf16.mxu0 0
        %2380 = vmatpush1.bf16.msra.mxu0 0
        %2381 = vmatprep.subr.bf16.mxu0 0
        %2382 = vmatpush1.bf16.msra.mxu0 0
        %2383 = vmatprep.subr.bf16.mxu0 0
        %2384 = vmatpush1.bf16.msra.mxu0 0
        %2385 = vmatprep.subr.bf16.mxu0 0
        %2386 = vmatpush1.bf16.msra.mxu0 0
        %2387 = vmatprep.subr.bf16.mxu0 0
        %2388 = vmatpush1.bf16.msra.mxu0 0
        %2389 = vmatprep.subr.bf16.mxu0 0
        %2390 = vmatpush1.bf16.msra.mxu0 0
        %2391 = vmatprep.subr.bf16.mxu0 0
        %2392 = vmatpush1.bf16.msra.mxu0 %v2373
        %2393 = vmatprep.subr.bf16.mxu0 0
        %2394 = vmatpush1.bf16.msra.mxu0 %v2372
        %2395 = vmatprep.subr.bf16.mxu0 0
        %2396 = vmatpush2.bf16.msra.mxu0 0
        %2397 = vmatprep.subr.bf16.mxu0 0
        %2398 = vmatpush2.bf16.msra.mxu0 0
        %2399 = vmatprep.subr.bf16.mxu0 0
        %2400 = vmatpush2.bf16.msra.mxu0 0
        %2401 = vmatprep.subr.bf16.mxu0 0
        %2402 = vmatpush2.bf16.msra.mxu0 0
        %2403 = vmatprep.subr.bf16.mxu0 0
        %2404 = vmatpush2.bf16.msra.mxu0 0
        %2405 = vmatprep.subr.bf16.mxu0 0
        %2406 = vmatpush2.bf16.msra.mxu0 0
        %2407 = vmatprep.subr.bf16.mxu0 0
        %2408 = vmatpush2.bf16.msra.mxu0 0
        %2409 = vmatprep.subr.bf16.mxu0 0
        %2410 = vmatpush2.bf16.msra.mxu0 0
        %2411 = vmatprep.mubr.bf16.mxu0 0
        %2412 = vmatmul.mubr.bf16.gmra.mxu0 %v2377
        %v2413 = vpop.f32.mrf.mxu0
        %v2414 = vadd.f32 %v2362, %v2413
        %v2415 = vpop.f32.mrf.mxu0
        %v2416 = vpop.f32.mrf.mxu0
        %v2417 = vadd.f32 %v2362, %v2416
        %v2418 = vpop.f32.mrf.mxu0
        %2419 = vdwg.mxu0
        %2420 = vst [vmem:[%s25] sm:$0xff] %v2414
        %2421 = vst [vmem:[%s25 + $0x8] sm:$0xff] %v2417
      $region128: #{denoising_network_forward.1} parent=119 // pred_fallthru
        _
      // Predicated region
      $region129: #{denoising_network_forward.1} parent=119 // pred_check
        %p2422 = pneg %p664
      $region130: #{denoising_network_forward.1} parent=119 // pred_check_branch
        %2424 = sbr.rel (%p2422) target = $region132
      $region131: #{denoising_network_forward.1} parent=119 // pred_region
        _
      $region132: #{denoising_network_forward.1} parent=119 // pred_fallthru
        _
      // Predicated region
      $region133: #{denoising_network_forward.1} parent=119 // pred_check
        %p2425 = pneg %p664
      $region134: #{denoising_network_forward.1} parent=119 // pred_check_branch
        %2427 = sbr.rel (%p2425) target = $region136
      $region135: #{denoising_network_forward.1} parent=119 // pred_region
        _
      $region136: #{denoising_network_forward.1} parent=119 // pred_fallthru
        _
    $region120: #{denoising_network_forward.1} parent=5 // pred_fallthru
      _
    %p2428 = scmp.le.s32.totalorder 2, %s31
    // Predicated region
    $region137: #{denoising_network_forward.1} parent=5 // pred_check
      %p2429 = pneg %p2428
    $region138: #{denoising_network_forward.1} parent=5 // pred_check_branch
      %2431 = sbr.rel (%p2429) target = $region140
    $region139: #{denoising_network_forward.1} parent=5 // pred_region
      %s2432 = ssub.s32 %s31, 2
    $region140: #{denoising_network_forward.1} parent=5 // pred_fallthru
      _
  $region6: #{denoising_network_forward.1} parent=0 // loop_footer
    %s35 = sadd.s32 1, %s31
  $region7: #{denoising_network_forward.1} parent=0 // loop_footer_branch
    %30 = sbr.rel target = $region3
  $region8: #{denoising_network_forward.1} parent=0 // loop_exit
    _

</llo_original>
